<compile_context>
chip_gen: v6e
topology: v6e:2x2x1
jax: 0.10.0
libtpu: 0.0.40
codegen_flags: <defaults>
</compile_context>

<pallas_src>
import jax
import jax.numpy as jnp
from jax.experimental import pallas as pl
from jax.experimental.pallas import tpu as pltpu


# ----------------------------- model dimensions -----------------------------
B = 2           # batch
C_LAT = 4       # latent channels (UNet in/out channels)
H = W = 16      # latent spatial size
HW = H * W
C_MODEL = 32    # UNet hidden channels
D_CTX = 32      # cross-attention dim (encoder hidden size)
S_TEXT = 8      # text sequence length
D_IMG = 32      # image_embeds dim (quality embedding)
N_TOKENS = 4    # number of IQA tokens produced by qual_proj_model
D_ADD = 32      # added_cond_kwargs["text_embeds"] dim
N_TIME_IDS = 6  # added_cond_kwargs["time_ids"] dim
D_AUG = D_ADD + N_TIME_IDS
IP_SCALE = 1.0


# --------------------------------- the kernel ---------------------------------
def _iqa_unet_kernel(
    pm_ref, ts_ref, aug_ref, enc_ref, img_ref,
    proj_w_ref, proj_b_ref, ln_g_ref, ln_b_ref,
    t_w1_ref, t_b1_ref, w2a_ref, b2a_ref,
    cin_b_ref, wq_ref,
    w_in_ref, w_kv_ref, w_kv_ip_ref, wo_ref,
    cout_w_ref, cout_b_ref,
    o_ref,
):
    f32 = jnp.float32
    bf16 = jnp.bfloat16

    # --- 1. qual_proj_model: Linear -> N_TOKENS tokens -> LayerNorm (this batch) ---
    img = img_ref[0]                                                   # (1, D_IMG) f32
    tok_flat = jnp.dot(img.astype(bf16), proj_w_ref[...],
                       preferred_element_type=f32) + proj_b_ref[...]   # (1, T*D) f32
    tok = jnp.concatenate(
        [tok_flat[:, t * D_CTX:(t + 1) * D_CTX] for t in range(N_TOKENS)],
        axis=0)                                                        # (T, D)
    mu = jnp.mean(tok, axis=-1, keepdims=True)
    var = jnp.mean(jnp.square(tok - mu), axis=-1, keepdims=True)
    tok = (tok - mu) * jax.lax.rsqrt(var + 1e-5)
    tok = tok * ln_g_ref[...] + ln_b_ref[...]                          # (T, D) f32

    # --- 2. decoupled K/V: base proj on text tokens, adapter proj on IQA tokens ---
    text = enc_ref[0]                                                  # (S_TEXT, D) f32
    kv_t = jnp.dot(text.astype(bf16), w_kv_ref[...],
                   preferred_element_type=f32)                         # (8, 64)
    kv_i = jnp.dot(tok.astype(bf16), w_kv_ip_ref[...],
                   preferred_element_type=f32)                         # (4, 64)
    kv = jnp.concatenate([kv_t, kv_i], axis=0)                         # (12, 64)
    k_all = kv[:, :C_MODEL].astype(bf16)                               # (12, 32)
    v_all = kv[:, C_MODEL:].astype(bf16)                               # (12, 32)

    # --- 3. time-embedding MLP fused with the added-condition projection (f32) ---
    t1 = jnp.dot(ts_ref[0], t_w1_ref[...],
                 preferred_element_type=f32) + t_b1_ref[...]           # (1, 32)
    t1 = t1 * jax.nn.sigmoid(t1)                                       # SiLU
    z = jnp.concatenate([t1, aug_ref[0]], axis=-1)                     # (1, 70)
    temb = jnp.dot(z, w2a_ref[...],
                   preferred_element_type=f32) + b2a_ref[...]          # (1, 32)

    bias_h = cin_b_ref[...] + temb                                     # (1, 32)
    bias_q = jnp.dot(bias_h, wq_ref[...], preferred_element_type=f32)  # (1, 32)

    # --- 4. conv_in (im2col'ed on host) fused with the Q projection -------------
    hq = jnp.dot(pm_ref[...], w_in_ref[...],
                 preferred_element_type=f32)                           # (256, 64) f32
    h = hq[:, :C_MODEL] + bias_h                                       # (256, 32)
    q = hq[:, C_MODEL:] + bias_q                                       # (256, 32)

    # --- 5. decoupled cross-attention: one score dot, split softmax, one PV dot ---
    scale = 1.0 / (float(C_MODEL) ** 0.5)
    s = jax.lax.dot_general(q.astype(bf16), k_all, (((1,), (1,)), ((), ())),
                            preferred_element_type=f32) * scale        # (256, 12)
    s_t = s[:, :S_TEXT]                                                # (256, 8)
    s_i = s[:, S_TEXT:]                                                # (256, 4)
    p_t = jnp.exp(s_t - jnp.max(s_t, axis=-1, keepdims=True))
    p_t = p_t * pl.reciprocal(jnp.sum(p_t, axis=-1, keepdims=True), approx=True)
    p_i = jnp.exp(s_i - jnp.max(s_i, axis=-1, keepdims=True))
    p_i = p_i * pl.reciprocal(jnp.sum(p_i, axis=-1, keepdims=True), approx=True)
    p_all = jnp.concatenate([p_t, IP_SCALE * p_i], axis=-1).astype(bf16)  # (256, 12)
    attn = jnp.dot(p_all, v_all, preferred_element_type=f32)           # (256, 32)
    h = h + jnp.dot(attn.astype(bf16), wo_ref[...],
                    preferred_element_type=f32)                        # residual

    # --- 6. conv_out: 9 shifted-tap matmuls, accumulated channel-major (4, 256) ---
    h16 = h.astype(bf16)                                               # (256, 32)
    x_ids = jax.lax.broadcasted_iota(jnp.int32, (HW, 1), 0) % W
    x_ok = {-1: x_ids >= 1, 1: x_ids <= W - 2}

    def shift_rows(a, s_):
        # shifted[p, :] = a[p + s_, :]  (zero-filled outside [0, HW))
        if s_ == 0:
            return a
        z_ = jnp.zeros((abs(s_), a.shape[1]), a.dtype)
        if s_ > 0:
            return jnp.concatenate([a[s_:, :], z_], axis=0)
        return jnp.concatenate([z_, a[:s_, :]], axis=0)

    acc = jnp.zeros((C_LAT, HW), f32)
    for ky in range(3):
        for kx in range(3):
            dy, dx = ky - 1, kx - 1
            hs = shift_rows(h16, dy * W + dx)
            if dx != 0:
                hs = jnp.where(x_ok[dx], hs, 0.0)
            acc = acc + jax.lax.dot_general(
                cout_w_ref[ky * 3 + kx], hs, (((1,), (1,)), ((), ())),
                preferred_element_type=f32)                            # (4, 256)
    o_ref[0] = acc + cout_b_ref[...]                                   # lane-dense store


# ------------------------------ host-side helpers ------------------------------
def timestep_embedding(timesteps, dim):
    # sinusoidal embedding computed in plain JAX (sin/cos on 2 scalars, outside kernel)
    half = dim // 2
    freqs = jnp.exp(-jnp.log(10000.0) * jnp.arange(half, dtype=jnp.float32) / half)
    args = timesteps.astype(jnp.float32)[:, None] * freqs[None, :]
    return jnp.concatenate([jnp.cos(args), jnp.sin(args)], axis=-1)


def _im2col_3x3_host(x):
    """x: (B, H, W, C) -> (B*H*W, 9*C), rows ordered (b, y, x); SAME zero padding."""
    Bn, Hh, Ww, Cc = x.shape
    xp = jnp.pad(x, ((0, 0), (1, 1), (1, 1), (0, 0)))
    cols = [xp[:, ky:ky + Hh, kx:kx + Ww, :] for ky in range(3) for kx in range(3)]
    pm = jnp.concatenate(cols, axis=-1)                    # (B, H, W, 9*C)
    return pm.reshape(Bn * Hh * Ww, 9 * Cc)


def _full_spec(shape):
    zeros = (0,) * len(shape)
    return pl.BlockSpec(shape, lambda b, _z=zeros: _z)


def _per_batch_spec(shape):
    zeros = (0,) * len(shape)
    return pl.BlockSpec((1,) + shape, lambda b, _z=zeros: (b,) + _z)


# ------------------------------ host-side wrapper ------------------------------
def iqa_adapter_forward(params, noisy_latents, timesteps, encoder_hidden_states,
                        unet_added_cond_kwargs, image_embeds):
    p = params
    bf16 = jnp.bfloat16
    row = lambda b: b.reshape(1, -1)

    # Tiny host-side prep (all << 100 KB): layout, sinusoid, im2col, weight packing.
    x_nhwc = jnp.transpose(noisy_latents, (0, 2, 3, 1))               # NCHW -> NHWC
    pm_in = _im2col_3x3_host(x_nhwc).astype(bf16)                     # (B*HW, 36)
    ts = timestep_embedding(timesteps, C_MODEL).reshape(B, 1, C_MODEL)
    aug = jnp.concatenate([unet_added_cond_kwargs["text_embeds"],
                           unet_added_cond_kwargs["time_ids"]],
                          axis=-1).reshape(B, 1, D_AUG)
    img = image_embeds.reshape(B, 1, D_IMG)

    cin_w = p["conv_in_w"].reshape(9 * C_LAT, C_MODEL)                # (36, 32)
    w_in = jnp.concatenate([cin_w, cin_w @ p["wq"]], axis=1).astype(bf16)   # (36, 64)
    w_kv = jnp.concatenate([p["wk"], p["wv"]], axis=1).astype(bf16)         # (32, 64)
    w_kv_ip = jnp.concatenate([p["wk_ip"], p["wv_ip"]], axis=1).astype(bf16)
    w2a = jnp.concatenate([p["t_w2"], p["add_w"]], axis=0)            # (70, 32) f32
    b2a = row(p["t_b2"] + p["add_b"])                                 # (1, 32)
    cout_w = jnp.transpose(p["conv_out_w"], (0, 1, 3, 2)).reshape(
        9, C_LAT, C_MODEL).astype(bf16)                               # (9, 4, 32)
    cout_b = p["conv_out_b"].reshape(C_LAT, 1)                        # (4, 1)

    args = (
        pm_in, ts, aug, encoder_hidden_states, img,
        p["proj_w"].astype(bf16), row(p["proj_b"]), row(p["ln_g"]), row(p["ln_b"]),
        p["t_w1"], row(p["t_b1"]), w2a, b2a,
        row(p["conv_in_b"]), p["wq"],
        w_in, w_kv, w_kv_ip, p["wo"].astype(bf16),
        cout_w, cout_b,
    )

    in_specs = [
        pl.BlockSpec((HW, 9 * C_LAT), lambda b: (b, 0)),              # pm_in (per batch)
        _per_batch_spec((1, C_MODEL)),                                # ts
        _per_batch_spec((1, D_AUG)),                                  # aug
        _per_batch_spec((S_TEXT, D_CTX)),                             # encoder_hidden_states
        _per_batch_spec((1, D_IMG)),                                  # image_embeds
        _full_spec((D_IMG, N_TOKENS * D_CTX)),                        # proj_w
        _full_spec((1, N_TOKENS * D_CTX)),                            # proj_b
        _full_spec((1, D_CTX)), _full_spec((1, D_CTX)),               # ln_g, ln_b
        _full_spec((C_MODEL, C_MODEL)), _full_spec((1, C_MODEL)),     # t_w1, t_b1
        _full_spec((C_MODEL + D_AUG, C_MODEL)), _full_spec((1, C_MODEL)),  # w2a, b2a
        _full_spec((1, C_MODEL)),                                     # conv_in bias
        _full_spec((C_MODEL, C_MODEL)),                               # wq (bias correction)
        _full_spec((9 * C_LAT, 2 * C_MODEL)),                         # fused conv_in|q
        _full_spec((D_CTX, 2 * C_MODEL)), _full_spec((D_CTX, 2 * C_MODEL)),  # kv, kv_ip
        _full_spec((C_MODEL, C_MODEL)),                               # wo
        _full_spec((9, C_LAT, C_MODEL)),                              # conv_out taps
        _full_spec((C_LAT, 1)),                                       # conv_out bias
    ]

    n_keys = S_TEXT + N_TOKENS
    flops = 2 * B * (
        HW * (9 * C_LAT) * (2 * C_MODEL)        # fused conv_in + Q projection
        + n_keys * D_CTX * (2 * C_MODEL)        # fused K/V projections
        + HW * C_MODEL * n_keys                 # attention scores
        + HW * n_keys * C_MODEL                 # attention PV
        + HW * C_MODEL * C_MODEL                # to_out projection
        + 9 * HW * C_MODEL * C_LAT              # conv_out taps
        + D_IMG * N_TOKENS * D_CTX              # qual projection
        + 2 * C_MODEL * C_MODEL + (C_MODEL + D_AUG) * C_MODEL)  # time MLP
    transcendentals = B * (HW * n_keys + 2 * C_MODEL)
    bytes_accessed = (sum(int(a.size) * a.dtype.itemsize for a in args)
                      + B * C_LAT * HW * 4)

    out = pl.pallas_call(
        _iqa_unet_kernel,
        out_shape=jax.ShapeDtypeStruct((B, C_LAT, HW), jnp.float32),
        grid=(B,),
        in_specs=in_specs,
        out_specs=pl.BlockSpec((1, C_LAT, HW), lambda b: (b, 0, 0)),
        compiler_params=pltpu.CompilerParams(
            dimension_semantics=("parallel",),
            vmem_limit_bytes=4 * 1024 * 1024),
        cost_estimate=pl.CostEstimate(flops=flops,
                                      transcendentals=transcendentals,
                                      bytes_accessed=bytes_accessed),
    )(*args)
    # (B, C_LAT, H*W) -> (B, C_LAT, H, W) — free reshape outside the kernel.
    return out.reshape(B, C_LAT, H, W)


# --------------------------- pure-JAX reference (f32) ---------------------------
def reference_forward(params, noisy_latents, timesteps, encoder_hidden_states,
                      unet_added_cond_kwargs, image_embeds):
    p = params
    tok = image_embeds @ p["proj_w"] + p["proj_b"]
    tok = tok.reshape(B, N_TOKENS, D_CTX)
    mu = tok.mean(-1, keepdims=True)
    var = ((tok - mu) ** 2).mean(-1, keepdims=True)
    tok = (tok - mu) / jnp.sqrt(var + 1e-5) * p["ln_g"] + p["ln_b"]

    ts = timestep_embedding(timesteps, C_MODEL)
    t1 = jax.nn.silu(ts @ p["t_w1"] + p["t_b1"])
    aug = jnp.concatenate([unet_added_cond_kwargs["text_embeds"],
                           unet_added_cond_kwargs["time_ids"]], axis=-1)
    temb = t1 @ p["t_w2"] + p["t_b2"] + aug @ p["add_w"] + p["add_b"]

    x = jnp.transpose(noisy_latents, (0, 2, 3, 1))
    h = jax.lax.conv_general_dilated(
        x, p["conv_in_w"], (1, 1), "SAME",
        dimension_numbers=("NHWC", "HWIO", "NHWC")) + p["conv_in_b"]
    h = (h + temb[:, None, None, :]).reshape(B, HW, C_MODEL)

    q = h @ p["wq"]
    k_t = encoder_hidden_states @ p["wk"]
    v_t = encoder_hidden_states @ p["wv"]
    k_i = tok @ p["wk_ip"]
    v_i = tok @ p["wv_ip"]
    scale = 1.0 / (C_MODEL ** 0.5)
    a_t = jax.nn.softmax(jnp.einsum("bpc,bkc->bpk", q, k_t) * scale, axis=-1)
    a_i = jax.nn.softmax(jnp.einsum("bpc,bkc->bpk", q, k_i) * scale, axis=-1)
    attn = (jnp.einsum("bpk,bkc->bpc", a_t, v_t)
            + IP_SCALE * jnp.einsum("bpk,bkc->bpc", a_i, v_i))
    h = h + attn @ p["wo"]

    h = h.reshape(B, H, W, C_MODEL)
    y = jax.lax.conv_general_dilated(
        h, p["conv_out_w"], (1, 1), "SAME",
        dimension_numbers=("NHWC", "HWIO", "NHWC")) + p["conv_out_b"]
    return jnp.transpose(y, (0, 3, 1, 2))


# ------------------------------- parameter init --------------------------------
def init_params(key):
    ks = list(jax.random.split(key, 24))

    def w(shape, scale=0.05):
        return (scale * jax.random.normal(ks.pop(), shape)).astype(jnp.float32)

    return {
        # qual_proj_model (IP-Adapter ImageProjModel style)
        "proj_w": w((D_IMG, N_TOKENS * D_CTX)),
        "proj_b": jnp.zeros((N_TOKENS * D_CTX,), jnp.float32),
        "ln_g": jnp.ones((D_CTX,), jnp.float32),
        "ln_b": jnp.zeros((D_CTX,), jnp.float32),
        # time / added-cond embedding
        "t_w1": w((C_MODEL, C_MODEL)), "t_b1": jnp.zeros((C_MODEL,), jnp.float32),
        "t_w2": w((C_MODEL, C_MODEL)), "t_b2": jnp.zeros((C_MODEL,), jnp.float32),
        "add_w": w((D_AUG, C_MODEL)),
        "add_b": jnp.zeros((C_MODEL,), jnp.float32),
        # convs (HWIO)
        "conv_in_w": w((3, 3, C_LAT, C_MODEL)),
        "conv_in_b": jnp.zeros((C_MODEL,), jnp.float32),
        "conv_out_w": w((3, 3, C_MODEL, C_LAT)),
        "conv_out_b": jnp.zeros((C_LAT,), jnp.float32),
        # attention (base) + adapter_modules (decoupled K/V for IQA tokens)
        "wq": w((C_MODEL, C_MODEL)),
        "wk": w((D_CTX, C_MODEL)),
        "wv": w((D_CTX, C_MODEL)),
        "wk_ip": w((D_CTX, C_MODEL)),
        "wv_ip": w((D_CTX, C_MODEL)),
        "wo": w((C_MODEL, C_MODEL)),
    }


# ------------------------------------ main --------------------------------------
if __name__ == "__main__":
    key = jax.random.PRNGKey(0)
    k1, k2, k3, k4, k5 = jax.random.split(key, 5)

    noisy_latents = jax.random.normal(k1, (B, C_LAT, H, W), jnp.float32)   # NCHW
    timesteps = jnp.array([10, 500], dtype=jnp.int32)
    encoder_hidden_states = jax.random.normal(k2, (B, S_TEXT, D_CTX), jnp.float32)
    image_embeds = jax.random.normal(k3, (B, D_IMG), jnp.float32)
    unet_added_cond_kwargs = {
        "text_embeds": jax.random.normal(k4, (B, D_ADD), jnp.float32),
        "time_ids": jax.random.normal(k5, (B, N_TIME_IDS), jnp.float32),
    }

    params = init_params(jax.random.PRNGKey(42))

    fwd = jax.jit(iqa_adapter_forward)
    noise_pred = fwd(params, noisy_latents, timesteps, encoder_hidden_states,
                     unet_added_cond_kwargs, image_embeds)
    noise_pred = jax.block_until_ready(noise_pred)

    assert noise_pred.shape == noisy_latents.shape, noise_pred.shape
    assert bool(jnp.all(jnp.isfinite(noise_pred)))

    # Correctness check against a pure-JAX f32 reference (bf16 MXU operands +
    # approx softmax reciprocal give a few-1e-3 absolute deviation at these scales).
    ref = reference_forward(params, noisy_latents, timesteps, encoder_hidden_states,
                            unet_added_cond_kwargs, image_embeds)
    max_err = float(jnp.max(jnp.abs(noise_pred - ref)))
    assert max_err < 5e-2, f"kernel/reference mismatch: max abs err = {max_err}"

    print("KERNEL_OK")
</pallas_src>

<mosaic_0001>
module attributes {stable_mosaic.version = 11 : i64} {
  func.func @_iqa_unet_kernel(%arg0: i32, %arg1: memref<256x36xbf16, #tpu.memory_space<vmem>>, %arg2: memref<1x1x32xf32, #tpu.memory_space<vmem>>, %arg3: memref<1x1x38xf32, #tpu.memory_space<vmem>>, %arg4: memref<1x8x32xf32, #tpu.memory_space<vmem>>, %arg5: memref<1x1x32xf32, #tpu.memory_space<vmem>>, %arg6: memref<32x128xbf16, #tpu.memory_space<vmem>>, %arg7: memref<1x128xf32, #tpu.memory_space<vmem>>, %arg8: memref<1x32xf32, #tpu.memory_space<vmem>>, %arg9: memref<1x32xf32, #tpu.memory_space<vmem>>, %arg10: memref<32x32xf32, #tpu.memory_space<vmem>>, %arg11: memref<1x32xf32, #tpu.memory_space<vmem>>, %arg12: memref<70x32xf32, #tpu.memory_space<vmem>>, %arg13: memref<1x32xf32, #tpu.memory_space<vmem>>, %arg14: memref<1x32xf32, #tpu.memory_space<vmem>>, %arg15: memref<32x32xf32, #tpu.memory_space<vmem>>, %arg16: memref<36x64xbf16, #tpu.memory_space<vmem>>, %arg17: memref<32x64xbf16, #tpu.memory_space<vmem>>, %arg18: memref<32x64xbf16, #tpu.memory_space<vmem>>, %arg19: memref<32x32xbf16, #tpu.memory_space<vmem>>, %arg20: memref<9x4x32xbf16, #tpu.memory_space<vmem>>, %arg21: memref<4x1xf32, #tpu.memory_space<vmem>>, %arg22: memref<1x4x256xf32, #tpu.memory_space<vmem>>) attributes {dimension_semantics = [#tpu.dimension_semantics<parallel>], iteration_bounds = array<i64: 2>, scalar_prefetch = 0 : i64, scratch_operands = 0 : i64, tpu.core_type = #tpu.core_type<tc>, window_params = [{transform_indices = @transform_0, window_bounds = array<i64: 256, 36>}, {transform_indices = @transform_1, window_bounds = array<i64: 1, 1, 32>}, {transform_indices = @transform_2, window_bounds = array<i64: 1, 1, 38>}, {transform_indices = @transform_3, window_bounds = array<i64: 1, 8, 32>}, {transform_indices = @transform_4, window_bounds = array<i64: 1, 1, 32>}, {pipeline_mode = #tpu.pipeline_mode<synchronous>, transform_indices = @transform_5, window_bounds = array<i64: 32, 128>}, {pipeline_mode = #tpu.pipeline_mode<synchronous>, transform_indices = @transform_6, window_bounds = array<i64: 1, 128>}, {pipeline_mode = #tpu.pipeline_mode<synchronous>, transform_indices = @transform_7, window_bounds = array<i64: 1, 32>}, {pipeline_mode = #tpu.pipeline_mode<synchronous>, transform_indices = @transform_8, window_bounds = array<i64: 1, 32>}, {pipeline_mode = #tpu.pipeline_mode<synchronous>, transform_indices = @transform_9, window_bounds = array<i64: 32, 32>}, {pipeline_mode = #tpu.pipeline_mode<synchronous>, transform_indices = @transform_10, window_bounds = array<i64: 1, 32>}, {pipeline_mode = #tpu.pipeline_mode<synchronous>, transform_indices = @transform_11, window_bounds = array<i64: 70, 32>}, {pipeline_mode = #tpu.pipeline_mode<synchronous>, transform_indices = @transform_12, window_bounds = array<i64: 1, 32>}, {pipeline_mode = #tpu.pipeline_mode<synchronous>, transform_indices = @transform_13, window_bounds = array<i64: 1, 32>}, {pipeline_mode = #tpu.pipeline_mode<synchronous>, transform_indices = @transform_14, window_bounds = array<i64: 32, 32>}, {pipeline_mode = #tpu.pipeline_mode<synchronous>, transform_indices = @transform_15, window_bounds = array<i64: 36, 64>}, {pipeline_mode = #tpu.pipeline_mode<synchronous>, transform_indices = @transform_16, window_bounds = array<i64: 32, 64>}, {pipeline_mode = #tpu.pipeline_mode<synchronous>, transform_indices = @transform_17, window_bounds = array<i64: 32, 64>}, {pipeline_mode = #tpu.pipeline_mode<synchronous>, transform_indices = @transform_18, window_bounds = array<i64: 32, 32>}, {pipeline_mode = #tpu.pipeline_mode<synchronous>, transform_indices = @transform_19, window_bounds = array<i64: 9, 4, 32>}, {pipeline_mode = #tpu.pipeline_mode<synchronous>, transform_indices = @transform_20, window_bounds = array<i64: 4, 1>}, {transform_indices = @transform_21, window_bounds = array<i64: 1, 4, 256>}]} {
    %c0 = arith.constant 0 : index
    %c0_0 = arith.constant 0 : index
    %c0_1 = arith.constant 0 : index
    %0 = vector.load %arg5[%c0, %c0_0, %c0_1] : memref<1x1x32xf32, #tpu.memory_space<vmem>>, vector<1x1x32xf32>
    %1 = vector.shape_cast %0 : vector<1x1x32xf32> to vector<1x32xf32>
    %2 = arith.truncf %1 : vector<1x32xf32> to vector<1x32xbf16>
    %c0_2 = arith.constant 0 : index
    %c0_3 = arith.constant 0 : index
    %3 = vector.load %arg6[%c0_2, %c0_3] : memref<32x128xbf16, #tpu.memory_space<vmem>>, vector<32x128xbf16>
    %cst = arith.constant dense<0.000000e+00> : vector<1x128xf32>
    %4 = tpu.matmul %2, %3, %cst {dimension_numbers = #tpu.dot_dimension_numbers<[1], [0], [0], [1], [0, 0, 1, 1], [], []>} : vector<1x32xbf16>, vector<32x128xbf16>, vector<1x128xf32> -> vector<1x128xf32>
    %c0_4 = arith.constant 0 : index
    %c0_5 = arith.constant 0 : index
    %5 = vector.load %arg7[%c0_4, %c0_5] : memref<1x128xf32, #tpu.memory_space<vmem>>, vector<1x128xf32>
    %6 = arith.addf %4, %5 : vector<1x128xf32>
    %7 = vector.extract_strided_slice %6 {offsets = [0, 0], sizes = [1, 32], strides = [1, 1]} : vector<1x128xf32> to vector<1x32xf32>
    %8 = vector.extract_strided_slice %6 {offsets = [0, 32], sizes = [1, 32], strides = [1, 1]} : vector<1x128xf32> to vector<1x32xf32>
    %9 = vector.extract_strided_slice %6 {offsets = [0, 64], sizes = [1, 32], strides = [1, 1]} : vector<1x128xf32> to vector<1x32xf32>
    %10 = vector.extract_strided_slice %6 {offsets = [0, 96], sizes = [1, 32], strides = [1, 1]} : vector<1x128xf32> to vector<1x32xf32>
    %11 = tpu.concatenate %7, %8, %9, %10 in 0 : vector<1x32xf32>, vector<1x32xf32>, vector<1x32xf32>, vector<1x32xf32> -> vector<4x32xf32>
    %cst_6 = arith.constant dense<0.000000e+00> : vector<4xf32>
    %12 = vector.multi_reduction <add>, %11, %cst_6 [1] : vector<4x32xf32> to vector<4xf32>
    %13 = vector.shape_cast %12 : vector<4xf32> to vector<4x1xf32>
    %cst_7 = arith.constant 3.200000e+01 : f32
    %14 = vector.broadcast %cst_7 : f32 to vector<4x1xf32>
    %15 = arith.divf %13, %14 : vector<4x1xf32>
    %16 = vector.broadcast %15 : vector<4x1xf32> to vector<4x32xf32>
    %17 = arith.subf %11, %16 : vector<4x32xf32>
    %18 = arith.mulf %17, %17 : vector<4x32xf32>
    %cst_8 = arith.constant dense<0.000000e+00> : vector<4xf32>
    %19 = vector.multi_reduction <add>, %18, %cst_8 [1] : vector<4x32xf32> to vector<4xf32>
    %20 = vector.shape_cast %19 : vector<4xf32> to vector<4x1xf32>
    %cst_9 = arith.constant 3.200000e+01 : f32
    %21 = vector.broadcast %cst_9 : f32 to vector<4x1xf32>
    %22 = arith.divf %20, %21 : vector<4x1xf32>
    %23 = vector.broadcast %15 : vector<4x1xf32> to vector<4x32xf32>
    %24 = arith.subf %11, %23 : vector<4x32xf32>
    %cst_10 = arith.constant 9.99999974E-6 : f32
    %25 = vector.broadcast %cst_10 : f32 to vector<4x1xf32>
    %26 = arith.addf %22, %25 : vector<4x1xf32>
    %27 = math.rsqrt %26 : vector<4x1xf32>
    %28 = vector.broadcast %27 : vector<4x1xf32> to vector<4x32xf32>
    %29 = arith.mulf %24, %28 : vector<4x32xf32>
    %c0_11 = arith.constant 0 : index
    %c0_12 = arith.constant 0 : index
    %30 = vector.load %arg8[%c0_11, %c0_12] : memref<1x32xf32, #tpu.memory_space<vmem>>, vector<1x32xf32>
    %31 = vector.broadcast %30 : vector<1x32xf32> to vector<4x32xf32>
    %32 = arith.mulf %29, %31 : vector<4x32xf32>
    %c0_13 = arith.constant 0 : index
    %c0_14 = arith.constant 0 : index
    %33 = vector.load %arg9[%c0_13, %c0_14] : memref<1x32xf32, #tpu.memory_space<vmem>>, vector<1x32xf32>
    %34 = vector.broadcast %33 : vector<1x32xf32> to vector<4x32xf32>
    %35 = arith.addf %32, %34 : vector<4x32xf32>
    %c0_15 = arith.constant 0 : index
    %c0_16 = arith.constant 0 : index
    %c0_17 = arith.constant 0 : index
    %36 = vector.load %arg4[%c0_15, %c0_16, %c0_17] : memref<1x8x32xf32, #tpu.memory_space<vmem>>, vector<1x8x32xf32>
    %37 = vector.shape_cast %36 : vector<1x8x32xf32> to vector<8x32xf32>
    %38 = arith.truncf %37 : vector<8x32xf32> to vector<8x32xbf16>
    %c0_18 = arith.constant 0 : index
    %c0_19 = arith.constant 0 : index
    %39 = vector.load %arg17[%c0_18, %c0_19] : memref<32x64xbf16, #tpu.memory_space<vmem>>, vector<32x64xbf16>
    %cst_20 = arith.constant dense<0.000000e+00> : vector<8x64xf32>
    %40 = tpu.matmul %38, %39, %cst_20 {dimension_numbers = #tpu.dot_dimension_numbers<[1], [0], [0], [1], [0, 0, 1, 1], [], []>} : vector<8x32xbf16>, vector<32x64xbf16>, vector<8x64xf32> -> vector<8x64xf32>
    %41 = arith.truncf %35 : vector<4x32xf32> to vector<4x32xbf16>
    %c0_21 = arith.constant 0 : index
    %c0_22 = arith.constant 0 : index
    %42 = vector.load %arg18[%c0_21, %c0_22] : memref<32x64xbf16, #tpu.memory_space<vmem>>, vector<32x64xbf16>
    %cst_23 = arith.constant dense<0.000000e+00> : vector<4x64xf32>
    %43 = tpu.matmul %41, %42, %cst_23 {dimension_numbers = #tpu.dot_dimension_numbers<[1], [0], [0], [1], [0, 0, 1, 1], [], []>} : vector<4x32xbf16>, vector<32x64xbf16>, vector<4x64xf32> -> vector<4x64xf32>
    %44 = tpu.concatenate %40, %43 in 0 : vector<8x64xf32>, vector<4x64xf32> -> vector<12x64xf32>
    %45 = vector.extract_strided_slice %44 {offsets = [0, 0], sizes = [12, 32], strides = [1, 1]} : vector<12x64xf32> to vector<12x32xf32>
    %46 = arith.truncf %45 : vector<12x32xf32> to vector<12x32xbf16>
    %47 = vector.extract_strided_slice %44 {offsets = [0, 32], sizes = [12, 32], strides = [1, 1]} : vector<12x64xf32> to vector<12x32xf32>
    %48 = arith.truncf %47 : vector<12x32xf32> to vector<12x32xbf16>
    %c0_24 = arith.constant 0 : index
    %c0_25 = arith.constant 0 : index
    %c0_26 = arith.constant 0 : index
    %49 = vector.load %arg2[%c0_24, %c0_25, %c0_26] : memref<1x1x32xf32, #tpu.memory_space<vmem>>, vector<1x1x32xf32>
    %50 = vector.shape_cast %49 : vector<1x1x32xf32> to vector<1x32xf32>
    %c0_27 = arith.constant 0 : index
    %c0_28 = arith.constant 0 : index
    %51 = vector.load %arg10[%c0_27, %c0_28] : memref<32x32xf32, #tpu.memory_space<vmem>>, vector<32x32xf32>
    %cst_29 = arith.constant dense<0.000000e+00> : vector<1x32xf32>
    %52 = tpu.matmul %50, %51, %cst_29 {dimension_numbers = #tpu.dot_dimension_numbers<[1], [0], [0], [1], [0, 0, 1, 1], [], []>} : vector<1x32xf32>, vector<32x32xf32>, vector<1x32xf32> -> vector<1x32xf32>
    %c0_30 = arith.constant 0 : index
    %c0_31 = arith.constant 0 : index
    %53 = vector.load %arg11[%c0_30, %c0_31] : memref<1x32xf32, #tpu.memory_space<vmem>>, vector<1x32xf32>
    %54 = arith.addf %52, %53 : vector<1x32xf32>
    %55 = arith.negf %54 : vector<1x32xf32>
    %56 = math.exp %55 : vector<1x32xf32>
    %cst_32 = arith.constant 1.000000e+00 : f32
    %57 = vector.broadcast %cst_32 : f32 to vector<1x32xf32>
    %58 = arith.addf %57, %56 : vector<1x32xf32>
    %59 = arith.divf %57, %58 : vector<1x32xf32>
    %60 = arith.mulf %54, %59 : vector<1x32xf32>
    %c0_33 = arith.constant 0 : index
    %c0_34 = arith.constant 0 : index
    %c0_35 = arith.constant 0 : index
    %61 = vector.load %arg3[%c0_33, %c0_34, %c0_35] : memref<1x1x38xf32, #tpu.memory_space<vmem>>, vector<1x1x38xf32>
    %62 = vector.shape_cast %61 : vector<1x1x38xf32> to vector<1x38xf32>
    %63 = tpu.concatenate %60, %62 in 1 : vector<1x32xf32>, vector<1x38xf32> -> vector<1x70xf32>
    %c0_36 = arith.constant 0 : index
    %c0_37 = arith.constant 0 : index
    %64 = vector.load %arg12[%c0_36, %c0_37] : memref<70x32xf32, #tpu.memory_space<vmem>>, vector<70x32xf32>
    %cst_38 = arith.constant dense<0.000000e+00> : vector<1x32xf32>
    %65 = tpu.matmul %63, %64, %cst_38 {dimension_numbers = #tpu.dot_dimension_numbers<[1], [0], [0], [1], [0, 0, 1, 1], [], []>} : vector<1x70xf32>, vector<70x32xf32>, vector<1x32xf32> -> vector<1x32xf32>
    %c0_39 = arith.constant 0 : index
    %c0_40 = arith.constant 0 : index
    %66 = vector.load %arg13[%c0_39, %c0_40] : memref<1x32xf32, #tpu.memory_space<vmem>>, vector<1x32xf32>
    %67 = arith.addf %65, %66 : vector<1x32xf32>
    %c0_41 = arith.constant 0 : index
    %c0_42 = arith.constant 0 : index
    %68 = vector.load %arg14[%c0_41, %c0_42] : memref<1x32xf32, #tpu.memory_space<vmem>>, vector<1x32xf32>
    %69 = arith.addf %68, %67 : vector<1x32xf32>
    %c0_43 = arith.constant 0 : index
    %c0_44 = arith.constant 0 : index
    %70 = vector.load %arg15[%c0_43, %c0_44] : memref<32x32xf32, #tpu.memory_space<vmem>>, vector<32x32xf32>
    %cst_45 = arith.constant dense<0.000000e+00> : vector<1x32xf32>
    %71 = tpu.matmul %69, %70, %cst_45 {dimension_numbers = #tpu.dot_dimension_numbers<[1], [0], [0], [1], [0, 0, 1, 1], [], []>} : vector<1x32xf32>, vector<32x32xf32>, vector<1x32xf32> -> vector<1x32xf32>
    %c0_46 = arith.constant 0 : index
    %c0_47 = arith.constant 0 : index
    %72 = vector.load %arg1[%c0_46, %c0_47] : memref<256x36xbf16, #tpu.memory_space<vmem>>, vector<256x36xbf16>
    %c0_48 = arith.constant 0 : index
    %c0_49 = arith.constant 0 : index
    %73 = vector.load %arg16[%c0_48, %c0_49] : memref<36x64xbf16, #tpu.memory_space<vmem>>, vector<36x64xbf16>
    %cst_50 = arith.constant dense<0.000000e+00> : vector<256x64xf32>
    %74 = tpu.matmul %72, %73, %cst_50 {dimension_numbers = #tpu.dot_dimension_numbers<[1], [0], [0], [1], [0, 0, 1, 1], [], []>} : vector<256x36xbf16>, vector<36x64xbf16>, vector<256x64xf32> -> vector<256x64xf32>
    %75 = vector.extract_strided_slice %74 {offsets = [0, 0], sizes = [256, 32], strides = [1, 1]} : vector<256x64xf32> to vector<256x32xf32>
    %76 = vector.broadcast %69 : vector<1x32xf32> to vector<256x32xf32>
    %77 = arith.addf %75, %76 : vector<256x32xf32>
    %78 = vector.extract_strided_slice %74 {offsets = [0, 32], sizes = [256, 32], strides = [1, 1]} : vector<256x64xf32> to vector<256x32xf32>
    %79 = vector.broadcast %71 : vector<1x32xf32> to vector<256x32xf32>
    %80 = arith.addf %78, %79 : vector<256x32xf32>
    %81 = arith.truncf %80 : vector<256x32xf32> to vector<256x32xbf16>
    %cst_51 = arith.constant dense<0.000000e+00> : vector<256x12xf32>
    %82 = tpu.matmul %81, %46, %cst_51 {dimension_numbers = #tpu.dot_dimension_numbers<[1], [1], [0], [0], [0, 0, 1, 0], [], []>} : vector<256x32xbf16>, vector<12x32xbf16>, vector<256x12xf32> -> vector<256x12xf32>
    %cst_52 = arith.constant 0.176776692 : f32
    %83 = vector.broadcast %cst_52 : f32 to vector<256x12xf32>
    %84 = arith.mulf %82, %83 : vector<256x12xf32>
    %85 = vector.extract_strided_slice %84 {offsets = [0, 0], sizes = [256, 8], strides = [1, 1]} : vector<256x12xf32> to vector<256x8xf32>
    %86 = vector.extract_strided_slice %84 {offsets = [0, 8], sizes = [256, 4], strides = [1, 1]} : vector<256x12xf32> to vector<256x4xf32>
    %cst_53 = arith.constant dense<0xFF800000> : vector<256xf32>
    %87 = vector.multi_reduction <maximumf>, %85, %cst_53 [1] : vector<256x8xf32> to vector<256xf32>
    %88 = vector.shape_cast %87 : vector<256xf32> to vector<256x1xf32>
    %89 = vector.broadcast %88 : vector<256x1xf32> to vector<256x8xf32>
    %90 = arith.subf %85, %89 : vector<256x8xf32>
    %91 = math.exp %90 : vector<256x8xf32>
    %cst_54 = arith.constant dense<0.000000e+00> : vector<256xf32>
    %92 = vector.multi_reduction <add>, %91, %cst_54 [1] : vector<256x8xf32> to vector<256xf32>
    %93 = vector.shape_cast %92 : vector<256xf32> to vector<256x1xf32>
    %94 = tpu.reciprocal %93 {approx = true} : vector<256x1xf32> -> vector<256x1xf32>
    %95 = vector.broadcast %94 : vector<256x1xf32> to vector<256x8xf32>
    %96 = arith.mulf %91, %95 : vector<256x8xf32>
    %cst_55 = arith.constant dense<0xFF800000> : vector<256xf32>
    %97 = vector.multi_reduction <maximumf>, %86, %cst_55 [1] : vector<256x4xf32> to vector<256xf32>
    %98 = vector.shape_cast %97 : vector<256xf32> to vector<256x1xf32>
    %99 = vector.broadcast %98 : vector<256x1xf32> to vector<256x4xf32>
    %100 = arith.subf %86, %99 : vector<256x4xf32>
    %101 = math.exp %100 : vector<256x4xf32>
    %cst_56 = arith.constant dense<0.000000e+00> : vector<256xf32>
    %102 = vector.multi_reduction <add>, %101, %cst_56 [1] : vector<256x4xf32> to vector<256xf32>
    %103 = vector.shape_cast %102 : vector<256xf32> to vector<256x1xf32>
    %104 = tpu.reciprocal %103 {approx = true} : vector<256x1xf32> -> vector<256x1xf32>
    %105 = vector.broadcast %104 : vector<256x1xf32> to vector<256x4xf32>
    %106 = arith.mulf %101, %105 : vector<256x4xf32>
    %cst_57 = arith.constant 1.000000e+00 : f32
    %107 = vector.broadcast %cst_57 : f32 to vector<256x4xf32>
    %108 = arith.mulf %107, %106 : vector<256x4xf32>
    %109 = tpu.concatenate %96, %108 in 1 : vector<256x8xf32>, vector<256x4xf32> -> vector<256x12xf32>
    %110 = arith.truncf %109 : vector<256x12xf32> to vector<256x12xbf16>
    %cst_58 = arith.constant dense<0.000000e+00> : vector<256x32xf32>
    %111 = tpu.matmul %110, %48, %cst_58 {dimension_numbers = #tpu.dot_dimension_numbers<[1], [0], [0], [1], [0, 0, 1, 1], [], []>} : vector<256x12xbf16>, vector<12x32xbf16>, vector<256x32xf32> -> vector<256x32xf32>
    %112 = arith.truncf %111 : vector<256x32xf32> to vector<256x32xbf16>
    %c0_59 = arith.constant 0 : index
    %c0_60 = arith.constant 0 : index
    %113 = vector.load %arg19[%c0_59, %c0_60] : memref<32x32xbf16, #tpu.memory_space<vmem>>, vector<32x32xbf16>
    %cst_61 = arith.constant dense<0.000000e+00> : vector<256x32xf32>
    %114 = tpu.matmul %112, %113, %cst_61 {dimension_numbers = #tpu.dot_dimension_numbers<[1], [0], [0], [1], [0, 0, 1, 1], [], []>} : vector<256x32xbf16>, vector<32x32xbf16>, vector<256x32xf32> -> vector<256x32xf32>
    %115 = arith.addf %77, %114 : vector<256x32xf32>
    %116 = arith.truncf %115 : vector<256x32xf32> to vector<256x32xbf16>
    %117 = tpu.iota {dimensions = array<i32: 0>} : vector<256x1xi32>
    %c16_i32 = arith.constant 16 : i32
    %c0_i32 = arith.constant 0 : i32
    %118 = arith.cmpi eq, %c16_i32, %c0_i32 : i32
    %c1_i32 = arith.constant 1 : i32
    %119 = arith.select %118, %c1_i32, %c16_i32 : i32
    %120 = vector.broadcast %119 : i32 to vector<256x1xi32>
    %121 = arith.remsi %117, %120 : vector<256x1xi32>
    %c0_i32_62 = arith.constant 0 : i32
    %122 = vector.broadcast %c0_i32_62 : i32 to vector<256x1xi32>
    %123 = arith.cmpi ne, %121, %122 : vector<256x1xi32>
    %c0_i32_63 = arith.constant 0 : i32
    %124 = vector.broadcast %c0_i32_63 : i32 to vector<256x1xi32>
    %125 = arith.cmpi slt, %121, %124 : vector<256x1xi32>
    %c0_i32_64 = arith.constant 0 : i32
    %126 = arith.cmpi slt, %119, %c0_i32_64 : i32
    %127 = vector.broadcast %126 : i1 to vector<256x1xi1>
    %128 = vector.broadcast %127 : vector<256x1xi1> to vector<256x1xi1>
    %129 = arith.xori %125, %128 : vector<256x1xi1>
    %130 = arith.andi %129, %123 : vector<256x1xi1>
    %131 = vector.broadcast %119 : i32 to vector<256x1xi32>
    %132 = arith.addi %121, %131 : vector<256x1xi32>
    %133 = arith.select %130, %132, %121 : vector<256x1xi1>, vector<256x1xi32>
    %c1_i32_65 = arith.constant 1 : i32
    %134 = vector.broadcast %c1_i32_65 : i32 to vector<256x1xi32>
    %135 = arith.cmpi sge, %133, %134 : vector<256x1xi32>
    %c14_i32 = arith.constant 14 : i32
    %136 = vector.broadcast %c14_i32 : i32 to vector<256x1xi32>
    %137 = arith.cmpi sle, %133, %136 : vector<256x1xi32>
    %cst_66 = arith.constant 0.000000e+00 : f32
    %138 = vector.broadcast %cst_66 : f32 to vector<4x256xf32>
    %cst_67 = arith.constant 0.000000e+00 : bf16
    %139 = vector.broadcast %cst_67 : bf16 to vector<17x32xbf16>
    %140 = vector.extract_strided_slice %116 {offsets = [0, 0], sizes = [239, 32], strides = [1, 1]} : vector<256x32xbf16> to vector<239x32xbf16>
    %141 = tpu.concatenate %139, %140 in 0 : vector<17x32xbf16>, vector<239x32xbf16> -> vector<256x32xbf16>
    %cst_68 = arith.constant 0.000000e+00 : f32
    %142 = arith.truncf %cst_68 : f32 to bf16
    %143 = vector.shape_cast %135 : vector<256x1xi1> to vector<256x1xi1>
    %144 = vector.broadcast %143 : vector<256x1xi1> to vector<256x32xi1>
    %145 = vector.broadcast %142 : bf16 to vector<256x32xbf16>
    %146 = arith.select %144, %141, %145 : vector<256x32xi1>, vector<256x32xbf16>
    %c0_69 = arith.constant 0 : index
    %c0_70 = arith.constant 0 : index
    %c0_71 = arith.constant 0 : index
    %147 = vector.load %arg20[%c0_69, %c0_70, %c0_71] : memref<9x4x32xbf16, #tpu.memory_space<vmem>>, vector<1x4x32xbf16>
    %148 = vector.shape_cast %147 : vector<1x4x32xbf16> to vector<4x32xbf16>
    %cst_72 = arith.constant dense<0.000000e+00> : vector<4x256xf32>
    %149 = tpu.matmul %148, %146, %cst_72 {dimension_numbers = #tpu.dot_dimension_numbers<[1], [1], [0], [0], [0, 0, 1, 0], [], []>} : vector<4x32xbf16>, vector<256x32xbf16>, vector<4x256xf32> -> vector<4x256xf32>
    %150 = arith.addf %138, %149 : vector<4x256xf32>
    %cst_73 = arith.constant 0.000000e+00 : bf16
    %151 = vector.broadcast %cst_73 : bf16 to vector<16x32xbf16>
    %152 = vector.extract_strided_slice %116 {offsets = [0, 0], sizes = [240, 32], strides = [1, 1]} : vector<256x32xbf16> to vector<240x32xbf16>
    %153 = tpu.concatenate %151, %152 in 0 : vector<16x32xbf16>, vector<240x32xbf16> -> vector<256x32xbf16>
    %c1 = arith.constant 1 : index
    %c0_74 = arith.constant 0 : index
    %c0_75 = arith.constant 0 : index
    %154 = vector.load %arg20[%c1, %c0_74, %c0_75] : memref<9x4x32xbf16, #tpu.memory_space<vmem>>, vector<1x4x32xbf16>
    %155 = vector.shape_cast %154 : vector<1x4x32xbf16> to vector<4x32xbf16>
    %cst_76 = arith.constant dense<0.000000e+00> : vector<4x256xf32>
    %156 = tpu.matmul %155, %153, %cst_76 {dimension_numbers = #tpu.dot_dimension_numbers<[1], [1], [0], [0], [0, 0, 1, 0], [], []>} : vector<4x32xbf16>, vector<256x32xbf16>, vector<4x256xf32> -> vector<4x256xf32>
    %157 = arith.addf %150, %156 : vector<4x256xf32>
    %cst_77 = arith.constant 0.000000e+00 : bf16
    %158 = vector.broadcast %cst_77 : bf16 to vector<15x32xbf16>
    %159 = vector.extract_strided_slice %116 {offsets = [0, 0], sizes = [241, 32], strides = [1, 1]} : vector<256x32xbf16> to vector<241x32xbf16>
    %160 = tpu.concatenate %158, %159 in 0 : vector<15x32xbf16>, vector<241x32xbf16> -> vector<256x32xbf16>
    %cst_78 = arith.constant 0.000000e+00 : f32
    %161 = arith.truncf %cst_78 : f32 to bf16
    %162 = vector.shape_cast %137 : vector<256x1xi1> to vector<256x1xi1>
    %163 = vector.broadcast %162 : vector<256x1xi1> to vector<256x32xi1>
    %164 = vector.broadcast %161 : bf16 to vector<256x32xbf16>
    %165 = arith.select %163, %160, %164 : vector<256x32xi1>, vector<256x32xbf16>
    %c2 = arith.constant 2 : index
    %c0_79 = arith.constant 0 : index
    %c0_80 = arith.constant 0 : index
    %166 = vector.load %arg20[%c2, %c0_79, %c0_80] : memref<9x4x32xbf16, #tpu.memory_space<vmem>>, vector<1x4x32xbf16>
    %167 = vector.shape_cast %166 : vector<1x4x32xbf16> to vector<4x32xbf16>
    %cst_81 = arith.constant dense<0.000000e+00> : vector<4x256xf32>
    %168 = tpu.matmul %167, %165, %cst_81 {dimension_numbers = #tpu.dot_dimension_numbers<[1], [1], [0], [0], [0, 0, 1, 0], [], []>} : vector<4x32xbf16>, vector<256x32xbf16>, vector<4x256xf32> -> vector<4x256xf32>
    %169 = arith.addf %157, %168 : vector<4x256xf32>
    %cst_82 = arith.constant 0.000000e+00 : bf16
    %170 = vector.broadcast %cst_82 : bf16 to vector<1x32xbf16>
    %171 = vector.extract_strided_slice %116 {offsets = [0, 0], sizes = [255, 32], strides = [1, 1]} : vector<256x32xbf16> to vector<255x32xbf16>
    %172 = tpu.concatenate %170, %171 in 0 : vector<1x32xbf16>, vector<255x32xbf16> -> vector<256x32xbf16>
    %cst_83 = arith.constant 0.000000e+00 : f32
    %173 = arith.truncf %cst_83 : f32 to bf16
    %174 = vector.shape_cast %135 : vector<256x1xi1> to vector<256x1xi1>
    %175 = vector.broadcast %174 : vector<256x1xi1> to vector<256x32xi1>
    %176 = vector.broadcast %173 : bf16 to vector<256x32xbf16>
    %177 = arith.select %175, %172, %176 : vector<256x32xi1>, vector<256x32xbf16>
    %c3 = arith.constant 3 : index
    %c0_84 = arith.constant 0 : index
    %c0_85 = arith.constant 0 : index
    %178 = vector.load %arg20[%c3, %c0_84, %c0_85] : memref<9x4x32xbf16, #tpu.memory_space<vmem>>, vector<1x4x32xbf16>
    %179 = vector.shape_cast %178 : vector<1x4x32xbf16> to vector<4x32xbf16>
    %cst_86 = arith.constant dense<0.000000e+00> : vector<4x256xf32>
    %180 = tpu.matmul %179, %177, %cst_86 {dimension_numbers = #tpu.dot_dimension_numbers<[1], [1], [0], [0], [0, 0, 1, 0], [], []>} : vector<4x32xbf16>, vector<256x32xbf16>, vector<4x256xf32> -> vector<4x256xf32>
    %181 = arith.addf %169, %180 : vector<4x256xf32>
    %c4 = arith.constant 4 : index
    %c0_87 = arith.constant 0 : index
    %c0_88 = arith.constant 0 : index
    %182 = vector.load %arg20[%c4, %c0_87, %c0_88] : memref<9x4x32xbf16, #tpu.memory_space<vmem>>, vector<1x4x32xbf16>
    %183 = vector.shape_cast %182 : vector<1x4x32xbf16> to vector<4x32xbf16>
    %cst_89 = arith.constant dense<0.000000e+00> : vector<4x256xf32>
    %184 = tpu.matmul %183, %116, %cst_89 {dimension_numbers = #tpu.dot_dimension_numbers<[1], [1], [0], [0], [0, 0, 1, 0], [], []>} : vector<4x32xbf16>, vector<256x32xbf16>, vector<4x256xf32> -> vector<4x256xf32>
    %185 = arith.addf %181, %184 : vector<4x256xf32>
    %cst_90 = arith.constant 0.000000e+00 : bf16
    %186 = vector.broadcast %cst_90 : bf16 to vector<1x32xbf16>
    %187 = vector.extract_strided_slice %116 {offsets = [1, 0], sizes = [255, 32], strides = [1, 1]} : vector<256x32xbf16> to vector<255x32xbf16>
    %188 = tpu.concatenate %187, %186 in 0 : vector<255x32xbf16>, vector<1x32xbf16> -> vector<256x32xbf16>
    %cst_91 = arith.constant 0.000000e+00 : f32
    %189 = arith.truncf %cst_91 : f32 to bf16
    %190 = vector.shape_cast %137 : vector<256x1xi1> to vector<256x1xi1>
    %191 = vector.broadcast %190 : vector<256x1xi1> to vector<256x32xi1>
    %192 = vector.broadcast %189 : bf16 to vector<256x32xbf16>
    %193 = arith.select %191, %188, %192 : vector<256x32xi1>, vector<256x32xbf16>
    %c5 = arith.constant 5 : index
    %c0_92 = arith.constant 0 : index
    %c0_93 = arith.constant 0 : index
    %194 = vector.load %arg20[%c5, %c0_92, %c0_93] : memref<9x4x32xbf16, #tpu.memory_space<vmem>>, vector<1x4x32xbf16>
    %195 = vector.shape_cast %194 : vector<1x4x32xbf16> to vector<4x32xbf16>
    %cst_94 = arith.constant dense<0.000000e+00> : vector<4x256xf32>
    %196 = tpu.matmul %195, %193, %cst_94 {dimension_numbers = #tpu.dot_dimension_numbers<[1], [1], [0], [0], [0, 0, 1, 0], [], []>} : vector<4x32xbf16>, vector<256x32xbf16>, vector<4x256xf32> -> vector<4x256xf32>
    %197 = arith.addf %185, %196 : vector<4x256xf32>
    %cst_95 = arith.constant 0.000000e+00 : bf16
    %198 = vector.broadcast %cst_95 : bf16 to vector<15x32xbf16>
    %199 = vector.extract_strided_slice %116 {offsets = [15, 0], sizes = [241, 32], strides = [1, 1]} : vector<256x32xbf16> to vector<241x32xbf16>
    %200 = tpu.concatenate %199, %198 in 0 : vector<241x32xbf16>, vector<15x32xbf16> -> vector<256x32xbf16>
    %cst_96 = arith.constant 0.000000e+00 : f32
    %201 = arith.truncf %cst_96 : f32 to bf16
    %202 = vector.shape_cast %135 : vector<256x1xi1> to vector<256x1xi1>
    %203 = vector.broadcast %202 : vector<256x1xi1> to vector<256x32xi1>
    %204 = vector.broadcast %201 : bf16 to vector<256x32xbf16>
    %205 = arith.select %203, %200, %204 : vector<256x32xi1>, vector<256x32xbf16>
    %c6 = arith.constant 6 : index
    %c0_97 = arith.constant 0 : index
    %c0_98 = arith.constant 0 : index
    %206 = vector.load %arg20[%c6, %c0_97, %c0_98] : memref<9x4x32xbf16, #tpu.memory_space<vmem>>, vector<1x4x32xbf16>
    %207 = vector.shape_cast %206 : vector<1x4x32xbf16> to vector<4x32xbf16>
    %cst_99 = arith.constant dense<0.000000e+00> : vector<4x256xf32>
    %208 = tpu.matmul %207, %205, %cst_99 {dimension_numbers = #tpu.dot_dimension_numbers<[1], [1], [0], [0], [0, 0, 1, 0], [], []>} : vector<4x32xbf16>, vector<256x32xbf16>, vector<4x256xf32> -> vector<4x256xf32>
    %209 = arith.addf %197, %208 : vector<4x256xf32>
    %cst_100 = arith.constant 0.000000e+00 : bf16
    %210 = vector.broadcast %cst_100 : bf16 to vector<16x32xbf16>
    %211 = vector.extract_strided_slice %116 {offsets = [16, 0], sizes = [240, 32], strides = [1, 1]} : vector<256x32xbf16> to vector<240x32xbf16>
    %212 = tpu.concatenate %211, %210 in 0 : vector<240x32xbf16>, vector<16x32xbf16> -> vector<256x32xbf16>
    %c7 = arith.constant 7 : index
    %c0_101 = arith.constant 0 : index
    %c0_102 = arith.constant 0 : index
    %213 = vector.load %arg20[%c7, %c0_101, %c0_102] : memref<9x4x32xbf16, #tpu.memory_space<vmem>>, vector<1x4x32xbf16>
    %214 = vector.shape_cast %213 : vector<1x4x32xbf16> to vector<4x32xbf16>
    %cst_103 = arith.constant dense<0.000000e+00> : vector<4x256xf32>
    %215 = tpu.matmul %214, %212, %cst_103 {dimension_numbers = #tpu.dot_dimension_numbers<[1], [1], [0], [0], [0, 0, 1, 0], [], []>} : vector<4x32xbf16>, vector<256x32xbf16>, vector<4x256xf32> -> vector<4x256xf32>
    %216 = arith.addf %209, %215 : vector<4x256xf32>
    %cst_104 = arith.constant 0.000000e+00 : bf16
    %217 = vector.broadcast %cst_104 : bf16 to vector<17x32xbf16>
    %218 = vector.extract_strided_slice %116 {offsets = [17, 0], sizes = [239, 32], strides = [1, 1]} : vector<256x32xbf16> to vector<239x32xbf16>
    %219 = tpu.concatenate %218, %217 in 0 : vector<239x32xbf16>, vector<17x32xbf16> -> vector<256x32xbf16>
    %cst_105 = arith.constant 0.000000e+00 : f32
    %220 = arith.truncf %cst_105 : f32 to bf16
    %221 = vector.shape_cast %137 : vector<256x1xi1> to vector<256x1xi1>
    %222 = vector.broadcast %221 : vector<256x1xi1> to vector<256x32xi1>
    %223 = vector.broadcast %220 : bf16 to vector<256x32xbf16>
    %224 = arith.select %222, %219, %223 : vector<256x32xi1>, vector<256x32xbf16>
    %c8 = arith.constant 8 : index
    %c0_106 = arith.constant 0 : index
    %c0_107 = arith.constant 0 : index
    %225 = vector.load %arg20[%c8, %c0_106, %c0_107] : memref<9x4x32xbf16, #tpu.memory_space<vmem>>, vector<1x4x32xbf16>
    %226 = vector.shape_cast %225 : vector<1x4x32xbf16> to vector<4x32xbf16>
    %cst_108 = arith.constant dense<0.000000e+00> : vector<4x256xf32>
    %227 = tpu.matmul %226, %224, %cst_108 {dimension_numbers = #tpu.dot_dimension_numbers<[1], [1], [0], [0], [0, 0, 1, 0], [], []>} : vector<4x32xbf16>, vector<256x32xbf16>, vector<4x256xf32> -> vector<4x256xf32>
    %228 = arith.addf %216, %227 : vector<4x256xf32>
    %c0_109 = arith.constant 0 : index
    %c0_110 = arith.constant 0 : index
    %229 = vector.load %arg21[%c0_109, %c0_110] : memref<4x1xf32, #tpu.memory_space<vmem>>, vector<4x1xf32>
    %230 = vector.broadcast %229 : vector<4x1xf32> to vector<4x256xf32>
    %231 = arith.addf %228, %230 : vector<4x256xf32>
    %c0_111 = arith.constant 0 : index
    %c0_112 = arith.constant 0 : index
    %c0_113 = arith.constant 0 : index
    %232 = vector.load %arg22[%c0_111, %c0_112, %c0_113] : memref<1x4x256xf32, #tpu.memory_space<vmem>>, vector<1x4x256xf32>
    %233 = vector.shape_cast %232 : vector<1x4x256xf32> to vector<4x256xf32>
    %234 = vector.shape_cast %231 : vector<4x256xf32> to vector<1x4x256xf32>
    tpu.vector_store %arg22[%c0_111, %c0_112, %c0_113], %234 {strides = array<i32>} : memref<1x4x256xf32, #tpu.memory_space<vmem>>, vector<1x4x256xf32>,
    return
  }
  func.func @transform_0(%arg0: i32) -> (i32, i32) {
    %c0_i32 = arith.constant 0 : i32
    %c0_i32_0 = arith.constant 0 : i32
    return %arg0, %c0_i32 : i32, i32
  }
  func.func @transform_1(%arg0: i32) -> (i32, i32, i32) {
    %c0_i32 = arith.constant 0 : i32
    %c0_i32_0 = arith.constant 0 : i32
    %c0_i32_1 = arith.constant 0 : i32
    return %arg0, %c0_i32, %c0_i32_0 : i32, i32, i32
  }
  func.func @transform_2(%arg0: i32) -> (i32, i32, i32) {
    %c0_i32 = arith.constant 0 : i32
    %c0_i32_0 = arith.constant 0 : i32
    %c0_i32_1 = arith.constant 0 : i32
    return %arg0, %c0_i32, %c0_i32_0 : i32, i32, i32
  }
  func.func @transform_3(%arg0: i32) -> (i32, i32, i32) {
    %c0_i32 = arith.constant 0 : i32
    %c0_i32_0 = arith.constant 0 : i32
    %c0_i32_1 = arith.constant 0 : i32
    return %arg0, %c0_i32, %c0_i32_0 : i32, i32, i32
  }
  func.func @transform_4(%arg0: i32) -> (i32, i32, i32) {
    %c0_i32 = arith.constant 0 : i32
    %c0_i32_0 = arith.constant 0 : i32
    %c0_i32_1 = arith.constant 0 : i32
    return %arg0, %c0_i32, %c0_i32_0 : i32, i32, i32
  }
  func.func @transform_5(%arg0: i32) -> (i32, i32) {
    %c0_i32 = arith.constant 0 : i32
    %c0_i32_0 = arith.constant 0 : i32
    %c0_i32_1 = arith.constant 0 : i32
    return %c0_i32, %c0_i32_0 : i32, i32
  }
  func.func @transform_6(%arg0: i32) -> (i32, i32) {
    %c0_i32 = arith.constant 0 : i32
    %c0_i32_0 = arith.constant 0 : i32
    %c0_i32_1 = arith.constant 0 : i32
    return %c0_i32, %c0_i32_0 : i32, i32
  }
  func.func @transform_7(%arg0: i32) -> (i32, i32) {
    %c0_i32 = arith.constant 0 : i32
    %c0_i32_0 = arith.constant 0 : i32
    %c0_i32_1 = arith.constant 0 : i32
    return %c0_i32, %c0_i32_0 : i32, i32
  }
  func.func @transform_8(%arg0: i32) -> (i32, i32) {
    %c0_i32 = arith.constant 0 : i32
    %c0_i32_0 = arith.constant 0 : i32
    %c0_i32_1 = arith.constant 0 : i32
    return %c0_i32, %c0_i32_0 : i32, i32
  }
  func.func @transform_9(%arg0: i32) -> (i32, i32) {
    %c0_i32 = arith.constant 0 : i32
    %c0_i32_0 = arith.constant 0 : i32
    %c0_i32_1 = arith.constant 0 : i32
    return %c0_i32, %c0_i32_0 : i32, i32
  }
  func.func @transform_10(%arg0: i32) -> (i32, i32) {
    %c0_i32 = arith.constant 0 : i32
    %c0_i32_0 = arith.constant 0 : i32
    %c0_i32_1 = arith.constant 0 : i32
    return %c0_i32, %c0_i32_0 : i32, i32
  }
  func.func @transform_11(%arg0: i32) -> (i32, i32) {
    %c0_i32 = arith.constant 0 : i32
    %c0_i32_0 = arith.constant 0 : i32
    %c0_i32_1 = arith.constant 0 : i32
    return %c0_i32, %c0_i32_0 : i32, i32
  }
  func.func @transform_12(%arg0: i32) -> (i32, i32) {
    %c0_i32 = arith.constant 0 : i32
    %c0_i32_0 = arith.constant 0 : i32
    %c0_i32_1 = arith.constant 0 : i32
    return %c0_i32, %c0_i32_0 : i32, i32
  }
  func.func @transform_13(%arg0: i32) -> (i32, i32) {
    %c0_i32 = arith.constant 0 : i32
    %c0_i32_0 = arith.constant 0 : i32
    %c0_i32_1 = arith.constant 0 : i32
    return %c0_i32, %c0_i32_0 : i32, i32
  }
  func.func @transform_14(%arg0: i32) -> (i32, i32) {
    %c0_i32 = arith.constant 0 : i32
    %c0_i32_0 = arith.constant 0 : i32
    %c0_i32_1 = arith.constant 0 : i32
    return %c0_i32, %c0_i32_0 : i32, i32
  }
  func.func @transform_15(%arg0: i32) -> (i32, i32) {
    %c0_i32 = arith.constant 0 : i32
    %c0_i32_0 = arith.constant 0 : i32
    %c0_i32_1 = arith.constant 0 : i32
    return %c0_i32, %c0_i32_0 : i32, i32
  }
  func.func @transform_16(%arg0: i32) -> (i32, i32) {
    %c0_i32 = arith.constant 0 : i32
    %c0_i32_0 = arith.constant 0 : i32
    %c0_i32_1 = arith.constant 0 : i32
    return %c0_i32, %c0_i32_0 : i32, i32
  }
  func.func @transform_17(%arg0: i32) -> (i32, i32) {
    %c0_i32 = arith.constant 0 : i32
    %c0_i32_0 = arith.constant 0 : i32
    %c0_i32_1 = arith.constant 0 : i32
    return %c0_i32, %c0_i32_0 : i32, i32
  }
  func.func @transform_18(%arg0: i32) -> (i32, i32) {
    %c0_i32 = arith.constant 0 : i32
    %c0_i32_0 = arith.constant 0 : i32
    %c0_i32_1 = arith.constant 0 : i32
    return %c0_i32, %c0_i32_0 : i32, i32
  }
  func.func @transform_19(%arg0: i32) -> (i32, i32, i32) {
    %c0_i32 = arith.constant 0 : i32
    %c0_i32_0 = arith.constant 0 : i32
    %c0_i32_1 = arith.constant 0 : i32
    %c0_i32_2 = arith.constant 0 : i32
    return %c0_i32, %c0_i32_0, %c0_i32_1 : i32, i32, i32
  }
  func.func @transform_20(%arg0: i32) -> (i32, i32) {
    %c0_i32 = arith.constant 0 : i32
    %c0_i32_0 = arith.constant 0 : i32
    %c0_i32_1 = arith.constant 0 : i32
    return %c0_i32, %c0_i32_0 : i32, i32
  }
  func.func @transform_21(%arg0: i32) -> (i32, i32, i32) {
    %c0_i32 = arith.constant 0 : i32
    %c0_i32_0 = arith.constant 0 : i32
    %c0_i32_1 = arith.constant 0 : i32
    return %arg0, %c0_i32, %c0_i32_0 : i32, i32, i32
  }
}

</mosaic_0001>

<llo_original>
// kernel: iqa_adapter_forward.1
$region0: #{iqa_adapter_forward.1}
  #allocation0 [shape = 'u32[]', space=smem, size = 0x4, offset = 0x4, fixed_abs, tag = 'smem constant byte address 0x4 - core index']
  #allocation1 [shape = 'u32[144,128]{1,0:T(1,128)}', space=vmem, size = 0x12000, scoped, tag = 'internal scratch']
  %s0 = inlined_call_operand.vmem [shape: bf16[512,36], index: 0, kind: input, shape index: {}]
  %s1 = inlined_call_operand.vmem [shape: f32[2,1,32], index: 1, kind: input, shape index: {}]
  %s2 = inlined_call_operand.vmem [shape: f32[2,1,38], index: 2, kind: input, shape index: {}]
  %s3 = inlined_call_operand.vmem [shape: f32[2,8,32], index: 3, kind: input, shape index: {}]
  %s4 = inlined_call_operand.vmem [shape: f32[2,1,32], index: 4, kind: input, shape index: {}]
  %s5 = inlined_call_operand.vmem [shape: bf16[32,128], index: 5, kind: input, shape index: {}]
  %s6 = inlined_call_operand.vmem [shape: f32[1,128], index: 6, kind: input, shape index: {}]
  %s7 = inlined_call_operand.vmem [shape: f32[1,32], index: 7, kind: input, shape index: {}]
  %s8 = inlined_call_operand.vmem [shape: f32[1,32], index: 8, kind: input, shape index: {}]
  %s9 = inlined_call_operand.vmem [shape: f32[32,32], index: 9, kind: input, shape index: {}]
  %s10 = inlined_call_operand.vmem [shape: f32[1,32], index: 10, kind: input, shape index: {}]
  %s11 = inlined_call_operand.vmem [shape: f32[70,32], index: 11, kind: input, shape index: {}]
  %s12 = inlined_call_operand.vmem [shape: f32[1,32], index: 12, kind: input, shape index: {}]
  %s13 = inlined_call_operand.vmem [shape: f32[1,32], index: 13, kind: input, shape index: {}]
  %s14 = inlined_call_operand.vmem [shape: f32[32,32], index: 14, kind: input, shape index: {}]
  %s15 = inlined_call_operand.vmem [shape: bf16[36,64], index: 15, kind: input, shape index: {}]
  %s16 = inlined_call_operand.vmem [shape: bf16[32,64], index: 16, kind: input, shape index: {}]
  %s17 = inlined_call_operand.vmem [shape: bf16[32,64], index: 17, kind: input, shape index: {}]
  %s18 = inlined_call_operand.vmem [shape: bf16[32,32], index: 18, kind: input, shape index: {}]
  %s19 = inlined_call_operand.vmem [shape: bf16[9,4,32], index: 19, kind: input, shape index: {}]
  %s20 = inlined_call_operand.vmem [shape: f32[4,1], index: 20, kind: input, shape index: {}]
  %s21 = inlined_call_operand.vmem [shape: f32[2,4,256], index: 21, kind: output, shape index: {}]
  %s22 = sld [smem:[#allocation0]]
  $region117: #{iqa_adapter_forward.1} parent=0
    _
  %s24 = ssub.s32 1, %s22
  %s25 = scalar_select 0, %s24, %s22
  loop: start=0, step=1, limit=4
  $region2: #{iqa_adapter_forward.1} parent=0 // loop_pre_header
    _
  $region3: #{iqa_adapter_forward.1} parent=0 // loop_header
    %s27 = sphi 0, %s31
    %p28 = scmp.ge.s32.totalorder %s27, 4
    %s37 = sphi 0, %s39
    %s40 = sphi 0, %s37
    %s41 = sphi 0, %s40
    %s57 = sphi 0, %s41
    %s63 = sphi 0, %s65
    %s66 = sphi 0, %s63
    %s67 = sphi 0, %s66
    %s83 = sphi 0, %s67
    %s89 = sphi 0, %s91
    %s92 = sphi 0, %s89
    %s93 = sphi 0, %s92
    %s109 = sphi 0, %s93
    %s115 = sphi 0, %s117
    %s118 = sphi 0, %s115
    %s119 = sphi 0, %s118
    %s135 = sphi 0, %s119
    %s141 = sphi 0, %s143
    %s144 = sphi 0, %s141
    %s145 = sphi 0, %s144
    %s161 = sphi 0, %s145
    %s165 = sphi 0, %s165
    %s167 = sphi 0, %s165
    %s168 = sphi 0, %s167
    %s182 = sphi 0, %s168
    %s186 = sphi 0, %s186
    %s188 = sphi 0, %s186
    %s189 = sphi 0, %s188
    %s203 = sphi 0, %s189
    %s207 = sphi 0, %s207
    %s209 = sphi 0, %s207
    %s210 = sphi 0, %s209
    %s224 = sphi 0, %s210
    %s228 = sphi 0, %s228
    %s230 = sphi 0, %s228
    %s231 = sphi 0, %s230
    %s245 = sphi 0, %s231
    %s249 = sphi 0, %s249
    %s251 = sphi 0, %s249
    %s252 = sphi 0, %s251
    %s266 = sphi 0, %s252
    %s270 = sphi 0, %s270
    %s272 = sphi 0, %s270
    %s273 = sphi 0, %s272
    %s287 = sphi 0, %s273
    %s291 = sphi 0, %s291
    %s293 = sphi 0, %s291
    %s294 = sphi 0, %s293
    %s308 = sphi 0, %s294
    %s312 = sphi 0, %s312
    %s314 = sphi 0, %s312
    %s315 = sphi 0, %s314
    %s329 = sphi 0, %s315
    %s333 = sphi 0, %s333
    %s335 = sphi 0, %s333
    %s336 = sphi 0, %s335
    %s350 = sphi 0, %s336
    %s354 = sphi 0, %s354
    %s356 = sphi 0, %s354
    %s357 = sphi 0, %s356
    %s371 = sphi 0, %s357
    %s375 = sphi 0, %s375
    %s377 = sphi 0, %s375
    %s378 = sphi 0, %s377
    %s392 = sphi 0, %s378
    %s396 = sphi 0, %s396
    %s398 = sphi 0, %s396
    %s399 = sphi 0, %s398
    %s413 = sphi 0, %s399
    %s417 = sphi 0, %s417
    %s419 = sphi 0, %s417
    %s420 = sphi 0, %s419
    %s434 = sphi 0, %s420
    %s438 = sphi 0, %s438
    %s440 = sphi 0, %s438
    %s441 = sphi 0, %s440
    %s455 = sphi 0, %s441
    %s459 = sphi 0, %s459
    %s461 = sphi 0, %s459
    %s462 = sphi 0, %s461
    %s476 = sphi 0, %s462
    %s480 = sphi 0, %s480
    %s482 = sphi 0, %s480
    %s483 = sphi 0, %s482
    %s497 = sphi 0, %s483
    %s503 = sphi 0, %s505
    %s506 = sphi 0, %s503
    %s507 = sphi 0, %s506
    %s523 = sphi 0, %s507
  $region4: #{iqa_adapter_forward.1} parent=0 // loop_header_branch
    %30 = sbr.rel (%p28) target = $region8
  $region5: #{iqa_adapter_forward.1} parent=0 // loop_body
    %s32 = ssub.s32 %s27, 1
    %s33 = ssub.s32 %s27, 2
    %s34 = sadd.s32 %s27, 1
    %s35 = ssub.s32 %s27, %s34
    %p36 = scmp.eq.s32.totalorder %s35, 0
    %s38 = sadd.s32 %s37, 1
    %s39 = scalar_select %p36, %s37, %s38
    %p42 = pneg %p36
    %p43 = scmp.eq.s32.totalorder %s27, 1
    %p44 = por %p42, %p43
    %p45 = scmp.ne.s32.totalorder %s37, %s40
    %p46 = scmp.eq.s32.totalorder %s27, 0
    %p47 = por %p45, %p46
    %p48 = scmp.ne.s32.totalorder %s37, %s40
    %p49 = scmp.eq.s32.totalorder %s32, 1
    %p50 = por %p48, %p49
    %p51 = scmp.ne.s32.totalorder %s40, %s41
    %p52 = scmp.eq.s32.totalorder %s32, 0
    %p53 = por %p51, %p52
    %p54 = scmp.ne.s32.totalorder %s40, %s41
    %p55 = scmp.eq.s32.totalorder %s33, 1
    %p56 = por %p54, %p55
    %p58 = scmp.ne.s32.totalorder %s41, %s57
    %p59 = scmp.eq.s32.totalorder %s33, 0
    %p60 = por %p58, %p59
    %s61 = ssub.s32 %s27, %s34
    %p62 = scmp.eq.s32.totalorder %s61, 0
    %s64 = sadd.s32 %s63, 1
    %s65 = scalar_select %p62, %s63, %s64
    %p68 = pneg %p62
    %p69 = scmp.eq.s32.totalorder %s27, 1
    %p70 = por %p68, %p69
    %p71 = scmp.ne.s32.totalorder %s63, %s66
    %p72 = scmp.eq.s32.totalorder %s27, 0
    %p73 = por %p71, %p72
    %p74 = scmp.ne.s32.totalorder %s63, %s66
    %p75 = scmp.eq.s32.totalorder %s32, 1
    %p76 = por %p74, %p75
    %p77 = scmp.ne.s32.totalorder %s66, %s67
    %p78 = scmp.eq.s32.totalorder %s32, 0
    %p79 = por %p77, %p78
    %p80 = scmp.ne.s32.totalorder %s66, %s67
    %p81 = scmp.eq.s32.totalorder %s33, 1
    %p82 = por %p80, %p81
    %p84 = scmp.ne.s32.totalorder %s67, %s83
    %p85 = scmp.eq.s32.totalorder %s33, 0
    %p86 = por %p84, %p85
    %s87 = ssub.s32 %s27, %s34
    %p88 = scmp.eq.s32.totalorder %s87, 0
    %s90 = sadd.s32 %s89, 1
    %s91 = scalar_select %p88, %s89, %s90
    %p94 = pneg %p88
    %p95 = scmp.eq.s32.totalorder %s27, 1
    %p96 = por %p94, %p95
    %p97 = scmp.ne.s32.totalorder %s89, %s92
    %p98 = scmp.eq.s32.totalorder %s27, 0
    %p99 = por %p97, %p98
    %p100 = scmp.ne.s32.totalorder %s89, %s92
    %p101 = scmp.eq.s32.totalorder %s32, 1
    %p102 = por %p100, %p101
    %p103 = scmp.ne.s32.totalorder %s92, %s93
    %p104 = scmp.eq.s32.totalorder %s32, 0
    %p105 = por %p103, %p104
    %p106 = scmp.ne.s32.totalorder %s92, %s93
    %p107 = scmp.eq.s32.totalorder %s33, 1
    %p108 = por %p106, %p107
    %p110 = scmp.ne.s32.totalorder %s93, %s109
    %p111 = scmp.eq.s32.totalorder %s33, 0
    %p112 = por %p110, %p111
    %s113 = ssub.s32 %s27, %s34
    %p114 = scmp.eq.s32.totalorder %s113, 0
    %s116 = sadd.s32 %s115, 1
    %s117 = scalar_select %p114, %s115, %s116
    %p120 = pneg %p114
    %p121 = scmp.eq.s32.totalorder %s27, 1
    %p122 = por %p120, %p121
    %p123 = scmp.ne.s32.totalorder %s115, %s118
    %p124 = scmp.eq.s32.totalorder %s27, 0
    %p125 = por %p123, %p124
    %p126 = scmp.ne.s32.totalorder %s115, %s118
    %p127 = scmp.eq.s32.totalorder %s32, 1
    %p128 = por %p126, %p127
    %p129 = scmp.ne.s32.totalorder %s118, %s119
    %p130 = scmp.eq.s32.totalorder %s32, 0
    %p131 = por %p129, %p130
    %p132 = scmp.ne.s32.totalorder %s118, %s119
    %p133 = scmp.eq.s32.totalorder %s33, 1
    %p134 = por %p132, %p133
    %p136 = scmp.ne.s32.totalorder %s119, %s135
    %p137 = scmp.eq.s32.totalorder %s33, 0
    %p138 = por %p136, %p137
    %s139 = ssub.s32 %s27, %s34
    %p140 = scmp.eq.s32.totalorder %s139, 0
    %s142 = sadd.s32 %s141, 1
    %s143 = scalar_select %p140, %s141, %s142
    %p146 = pneg %p140
    %p147 = scmp.eq.s32.totalorder %s27, 1
    %p148 = por %p146, %p147
    %p149 = scmp.ne.s32.totalorder %s141, %s144
    %p150 = scmp.eq.s32.totalorder %s27, 0
    %p151 = por %p149, %p150
    %p152 = scmp.ne.s32.totalorder %s141, %s144
    %p153 = scmp.eq.s32.totalorder %s32, 1
    %p154 = por %p152, %p153
    %p155 = scmp.ne.s32.totalorder %s144, %s145
    %p156 = scmp.eq.s32.totalorder %s32, 0
    %p157 = por %p155, %p156
    %p158 = scmp.ne.s32.totalorder %s144, %s145
    %p159 = scmp.eq.s32.totalorder %s33, 1
    %p160 = por %p158, %p159
    %p162 = scmp.ne.s32.totalorder %s145, %s161
    %p163 = scmp.eq.s32.totalorder %s33, 0
    %p164 = por %p162, %p163
    %s166 = sadd.s32 %s165, 1
    %p169 = scmp.eq.s32.totalorder %s27, 1
    %p170 = scmp.ne.s32.totalorder %s165, %s167
    %p171 = scmp.eq.s32.totalorder %s27, 0
    %p172 = por %p170, %p171
    %p173 = scmp.ne.s32.totalorder %s165, %s167
    %p174 = scmp.eq.s32.totalorder %s32, 1
    %p175 = por %p173, %p174
    %p176 = scmp.ne.s32.totalorder %s167, %s168
    %p177 = scmp.eq.s32.totalorder %s32, 0
    %p178 = por %p176, %p177
    %p179 = scmp.ne.s32.totalorder %s167, %s168
    %p180 = scmp.eq.s32.totalorder %s33, 1
    %p181 = por %p179, %p180
    %p183 = scmp.ne.s32.totalorder %s168, %s182
    %p184 = scmp.eq.s32.totalorder %s33, 0
    %p185 = por %p183, %p184
    %s187 = sadd.s32 %s186, 1
    %p190 = scmp.eq.s32.totalorder %s27, 1
    %p191 = scmp.ne.s32.totalorder %s186, %s188
    %p192 = scmp.eq.s32.totalorder %s27, 0
    %p193 = por %p191, %p192
    %p194 = scmp.ne.s32.totalorder %s186, %s188
    %p195 = scmp.eq.s32.totalorder %s32, 1
    %p196 = por %p194, %p195
    %p197 = scmp.ne.s32.totalorder %s188, %s189
    %p198 = scmp.eq.s32.totalorder %s32, 0
    %p199 = por %p197, %p198
    %p200 = scmp.ne.s32.totalorder %s188, %s189
    %p201 = scmp.eq.s32.totalorder %s33, 1
    %p202 = por %p200, %p201
    %p204 = scmp.ne.s32.totalorder %s189, %s203
    %p205 = scmp.eq.s32.totalorder %s33, 0
    %p206 = por %p204, %p205
    %s208 = sadd.s32 %s207, 1
    %p211 = scmp.eq.s32.totalorder %s27, 1
    %p212 = scmp.ne.s32.totalorder %s207, %s209
    %p213 = scmp.eq.s32.totalorder %s27, 0
    %p214 = por %p212, %p213
    %p215 = scmp.ne.s32.totalorder %s207, %s209
    %p216 = scmp.eq.s32.totalorder %s32, 1
    %p217 = por %p215, %p216
    %p218 = scmp.ne.s32.totalorder %s209, %s210
    %p219 = scmp.eq.s32.totalorder %s32, 0
    %p220 = por %p218, %p219
    %p221 = scmp.ne.s32.totalorder %s209, %s210
    %p222 = scmp.eq.s32.totalorder %s33, 1
    %p223 = por %p221, %p222
    %p225 = scmp.ne.s32.totalorder %s210, %s224
    %p226 = scmp.eq.s32.totalorder %s33, 0
    %p227 = por %p225, %p226
    %s229 = sadd.s32 %s228, 1
    %p232 = scmp.eq.s32.totalorder %s27, 1
    %p233 = scmp.ne.s32.totalorder %s228, %s230
    %p234 = scmp.eq.s32.totalorder %s27, 0
    %p235 = por %p233, %p234
    %p236 = scmp.ne.s32.totalorder %s228, %s230
    %p237 = scmp.eq.s32.totalorder %s32, 1
    %p238 = por %p236, %p237
    %p239 = scmp.ne.s32.totalorder %s230, %s231
    %p240 = scmp.eq.s32.totalorder %s32, 0
    %p241 = por %p239, %p240
    %p242 = scmp.ne.s32.totalorder %s230, %s231
    %p243 = scmp.eq.s32.totalorder %s33, 1
    %p244 = por %p242, %p243
    %p246 = scmp.ne.s32.totalorder %s231, %s245
    %p247 = scmp.eq.s32.totalorder %s33, 0
    %p248 = por %p246, %p247
    %s250 = sadd.s32 %s249, 1
    %p253 = scmp.eq.s32.totalorder %s27, 1
    %p254 = scmp.ne.s32.totalorder %s249, %s251
    %p255 = scmp.eq.s32.totalorder %s27, 0
    %p256 = por %p254, %p255
    %p257 = scmp.ne.s32.totalorder %s249, %s251
    %p258 = scmp.eq.s32.totalorder %s32, 1
    %p259 = por %p257, %p258
    %p260 = scmp.ne.s32.totalorder %s251, %s252
    %p261 = scmp.eq.s32.totalorder %s32, 0
    %p262 = por %p260, %p261
    %p263 = scmp.ne.s32.totalorder %s251, %s252
    %p264 = scmp.eq.s32.totalorder %s33, 1
    %p265 = por %p263, %p264
    %p267 = scmp.ne.s32.totalorder %s252, %s266
    %p268 = scmp.eq.s32.totalorder %s33, 0
    %p269 = por %p267, %p268
    %s271 = sadd.s32 %s270, 1
    %p274 = scmp.eq.s32.totalorder %s27, 1
    %p275 = scmp.ne.s32.totalorder %s270, %s272
    %p276 = scmp.eq.s32.totalorder %s27, 0
    %p277 = por %p275, %p276
    %p278 = scmp.ne.s32.totalorder %s270, %s272
    %p279 = scmp.eq.s32.totalorder %s32, 1
    %p280 = por %p278, %p279
    %p281 = scmp.ne.s32.totalorder %s272, %s273
    %p282 = scmp.eq.s32.totalorder %s32, 0
    %p283 = por %p281, %p282
    %p284 = scmp.ne.s32.totalorder %s272, %s273
    %p285 = scmp.eq.s32.totalorder %s33, 1
    %p286 = por %p284, %p285
    %p288 = scmp.ne.s32.totalorder %s273, %s287
    %p289 = scmp.eq.s32.totalorder %s33, 0
    %p290 = por %p288, %p289
    %s292 = sadd.s32 %s291, 1
    %p295 = scmp.eq.s32.totalorder %s27, 1
    %p296 = scmp.ne.s32.totalorder %s291, %s293
    %p297 = scmp.eq.s32.totalorder %s27, 0
    %p298 = por %p296, %p297
    %p299 = scmp.ne.s32.totalorder %s291, %s293
    %p300 = scmp.eq.s32.totalorder %s32, 1
    %p301 = por %p299, %p300
    %p302 = scmp.ne.s32.totalorder %s293, %s294
    %p303 = scmp.eq.s32.totalorder %s32, 0
    %p304 = por %p302, %p303
    %p305 = scmp.ne.s32.totalorder %s293, %s294
    %p306 = scmp.eq.s32.totalorder %s33, 1
    %p307 = por %p305, %p306
    %p309 = scmp.ne.s32.totalorder %s294, %s308
    %p310 = scmp.eq.s32.totalorder %s33, 0
    %p311 = por %p309, %p310
    %s313 = sadd.s32 %s312, 1
    %p316 = scmp.eq.s32.totalorder %s27, 1
    %p317 = scmp.ne.s32.totalorder %s312, %s314
    %p318 = scmp.eq.s32.totalorder %s27, 0
    %p319 = por %p317, %p318
    %p320 = scmp.ne.s32.totalorder %s312, %s314
    %p321 = scmp.eq.s32.totalorder %s32, 1
    %p322 = por %p320, %p321
    %p323 = scmp.ne.s32.totalorder %s314, %s315
    %p324 = scmp.eq.s32.totalorder %s32, 0
    %p325 = por %p323, %p324
    %p326 = scmp.ne.s32.totalorder %s314, %s315
    %p327 = scmp.eq.s32.totalorder %s33, 1
    %p328 = por %p326, %p327
    %p330 = scmp.ne.s32.totalorder %s315, %s329
    %p331 = scmp.eq.s32.totalorder %s33, 0
    %p332 = por %p330, %p331
    %s334 = sadd.s32 %s333, 1
    %p337 = scmp.eq.s32.totalorder %s27, 1
    %p338 = scmp.ne.s32.totalorder %s333, %s335
    %p339 = scmp.eq.s32.totalorder %s27, 0
    %p340 = por %p338, %p339
    %p341 = scmp.ne.s32.totalorder %s333, %s335
    %p342 = scmp.eq.s32.totalorder %s32, 1
    %p343 = por %p341, %p342
    %p344 = scmp.ne.s32.totalorder %s335, %s336
    %p345 = scmp.eq.s32.totalorder %s32, 0
    %p346 = por %p344, %p345
    %p347 = scmp.ne.s32.totalorder %s335, %s336
    %p348 = scmp.eq.s32.totalorder %s33, 1
    %p349 = por %p347, %p348
    %p351 = scmp.ne.s32.totalorder %s336, %s350
    %p352 = scmp.eq.s32.totalorder %s33, 0
    %p353 = por %p351, %p352
    %s355 = sadd.s32 %s354, 1
    %p358 = scmp.eq.s32.totalorder %s27, 1
    %p359 = scmp.ne.s32.totalorder %s354, %s356
    %p360 = scmp.eq.s32.totalorder %s27, 0
    %p361 = por %p359, %p360
    %p362 = scmp.ne.s32.totalorder %s354, %s356
    %p363 = scmp.eq.s32.totalorder %s32, 1
    %p364 = por %p362, %p363
    %p365 = scmp.ne.s32.totalorder %s356, %s357
    %p366 = scmp.eq.s32.totalorder %s32, 0
    %p367 = por %p365, %p366
    %p368 = scmp.ne.s32.totalorder %s356, %s357
    %p369 = scmp.eq.s32.totalorder %s33, 1
    %p370 = por %p368, %p369
    %p372 = scmp.ne.s32.totalorder %s357, %s371
    %p373 = scmp.eq.s32.totalorder %s33, 0
    %p374 = por %p372, %p373
    %s376 = sadd.s32 %s375, 1
    %p379 = scmp.eq.s32.totalorder %s27, 1
    %p380 = scmp.ne.s32.totalorder %s375, %s377
    %p381 = scmp.eq.s32.totalorder %s27, 0
    %p382 = por %p380, %p381
    %p383 = scmp.ne.s32.totalorder %s375, %s377
    %p384 = scmp.eq.s32.totalorder %s32, 1
    %p385 = por %p383, %p384
    %p386 = scmp.ne.s32.totalorder %s377, %s378
    %p387 = scmp.eq.s32.totalorder %s32, 0
    %p388 = por %p386, %p387
    %p389 = scmp.ne.s32.totalorder %s377, %s378
    %p390 = scmp.eq.s32.totalorder %s33, 1
    %p391 = por %p389, %p390
    %p393 = scmp.ne.s32.totalorder %s378, %s392
    %p394 = scmp.eq.s32.totalorder %s33, 0
    %p395 = por %p393, %p394
    %s397 = sadd.s32 %s396, 1
    %p400 = scmp.eq.s32.totalorder %s27, 1
    %p401 = scmp.ne.s32.totalorder %s396, %s398
    %p402 = scmp.eq.s32.totalorder %s27, 0
    %p403 = por %p401, %p402
    %p404 = scmp.ne.s32.totalorder %s396, %s398
    %p405 = scmp.eq.s32.totalorder %s32, 1
    %p406 = por %p404, %p405
    %p407 = scmp.ne.s32.totalorder %s398, %s399
    %p408 = scmp.eq.s32.totalorder %s32, 0
    %p409 = por %p407, %p408
    %p410 = scmp.ne.s32.totalorder %s398, %s399
    %p411 = scmp.eq.s32.totalorder %s33, 1
    %p412 = por %p410, %p411
    %p414 = scmp.ne.s32.totalorder %s399, %s413
    %p415 = scmp.eq.s32.totalorder %s33, 0
    %p416 = por %p414, %p415
    %s418 = sadd.s32 %s417, 1
    %p421 = scmp.eq.s32.totalorder %s27, 1
    %p422 = scmp.ne.s32.totalorder %s417, %s419
    %p423 = scmp.eq.s32.totalorder %s27, 0
    %p424 = por %p422, %p423
    %p425 = scmp.ne.s32.totalorder %s417, %s419
    %p426 = scmp.eq.s32.totalorder %s32, 1
    %p427 = por %p425, %p426
    %p428 = scmp.ne.s32.totalorder %s419, %s420
    %p429 = scmp.eq.s32.totalorder %s32, 0
    %p430 = por %p428, %p429
    %p431 = scmp.ne.s32.totalorder %s419, %s420
    %p432 = scmp.eq.s32.totalorder %s33, 1
    %p433 = por %p431, %p432
    %p435 = scmp.ne.s32.totalorder %s420, %s434
    %p436 = scmp.eq.s32.totalorder %s33, 0
    %p437 = por %p435, %p436
    %s439 = sadd.s32 %s438, 1
    %p442 = scmp.eq.s32.totalorder %s27, 1
    %p443 = scmp.ne.s32.totalorder %s438, %s440
    %p444 = scmp.eq.s32.totalorder %s27, 0
    %p445 = por %p443, %p444
    %p446 = scmp.ne.s32.totalorder %s438, %s440
    %p447 = scmp.eq.s32.totalorder %s32, 1
    %p448 = por %p446, %p447
    %p449 = scmp.ne.s32.totalorder %s440, %s441
    %p450 = scmp.eq.s32.totalorder %s32, 0
    %p451 = por %p449, %p450
    %p452 = scmp.ne.s32.totalorder %s440, %s441
    %p453 = scmp.eq.s32.totalorder %s33, 1
    %p454 = por %p452, %p453
    %p456 = scmp.ne.s32.totalorder %s441, %s455
    %p457 = scmp.eq.s32.totalorder %s33, 0
    %p458 = por %p456, %p457
    %s460 = sadd.s32 %s459, 1
    %p463 = scmp.eq.s32.totalorder %s27, 1
    %p464 = scmp.ne.s32.totalorder %s459, %s461
    %p465 = scmp.eq.s32.totalorder %s27, 0
    %p466 = por %p464, %p465
    %p467 = scmp.ne.s32.totalorder %s459, %s461
    %p468 = scmp.eq.s32.totalorder %s32, 1
    %p469 = por %p467, %p468
    %p470 = scmp.ne.s32.totalorder %s461, %s462
    %p471 = scmp.eq.s32.totalorder %s32, 0
    %p472 = por %p470, %p471
    %p473 = scmp.ne.s32.totalorder %s461, %s462
    %p474 = scmp.eq.s32.totalorder %s33, 1
    %p475 = por %p473, %p474
    %p477 = scmp.ne.s32.totalorder %s462, %s476
    %p478 = scmp.eq.s32.totalorder %s33, 0
    %p479 = por %p477, %p478
    %s481 = sadd.s32 %s480, 1
    %p484 = scmp.eq.s32.totalorder %s27, 1
    %p485 = scmp.ne.s32.totalorder %s480, %s482
    %p486 = scmp.eq.s32.totalorder %s27, 0
    %p487 = por %p485, %p486
    %p488 = scmp.ne.s32.totalorder %s480, %s482
    %p489 = scmp.eq.s32.totalorder %s32, 1
    %p490 = por %p488, %p489
    %p491 = scmp.ne.s32.totalorder %s482, %s483
    %p492 = scmp.eq.s32.totalorder %s32, 0
    %p493 = por %p491, %p492
    %p494 = scmp.ne.s32.totalorder %s482, %s483
    %p495 = scmp.eq.s32.totalorder %s33, 1
    %p496 = por %p494, %p495
    %p498 = scmp.ne.s32.totalorder %s483, %s497
    %p499 = scmp.eq.s32.totalorder %s33, 0
    %p500 = por %p498, %p499
    %s501 = ssub.s32 %s27, %s34
    %p502 = scmp.eq.s32.totalorder %s501, 0
    %s504 = sadd.s32 %s503, 1
    %s505 = scalar_select %p502, %s503, %s504
    %p508 = pneg %p502
    %p509 = scmp.eq.s32.totalorder %s27, 1
    %p510 = por %p508, %p509
    %p511 = scmp.ne.s32.totalorder %s503, %s506
    %p512 = scmp.eq.s32.totalorder %s27, 0
    %p513 = por %p511, %p512
    %p514 = scmp.ne.s32.totalorder %s503, %s506
    %p515 = scmp.eq.s32.totalorder %s32, 1
    %p516 = por %p514, %p515
    %p517 = scmp.ne.s32.totalorder %s506, %s507
    %p518 = scmp.eq.s32.totalorder %s32, 0
    %p519 = por %p517, %p518
    %p520 = scmp.ne.s32.totalorder %s506, %s507
    %p521 = scmp.eq.s32.totalorder %s33, 1
    %p522 = por %p520, %p521
    %p524 = scmp.ne.s32.totalorder %s507, %s523
    %p525 = scmp.eq.s32.totalorder %s33, 0
    %p526 = por %p524, %p525
    %p527 = scmp.le.s32.totalorder 1, %s27
    %p528 = scmp.lt.s32.totalorder %s27, 3
    %p529 = pnand %p527, %p528
    %p530 = pneg %p529
    // Predicated region
    $region9: #{iqa_adapter_forward.1} parent=5 // pred_check
      _
    $region10: #{iqa_adapter_forward.1} parent=5 // pred_check_branch
      %532 = sbr.rel (%p529) target = $region12
    $region11: #{iqa_adapter_forward.1} parent=5 // pred_region
      %s533 = ssub.s32 %s27, 1
      // Predicated region
      $region13: #{iqa_adapter_forward.1} parent=11 // pred_check
        %p534 = pneg %p178
      $region14: #{iqa_adapter_forward.1} parent=11 // pred_check_branch
        %536 = sbr.rel (%p534) target = $region16
      $region15: #{iqa_adapter_forward.1} parent=11 // pred_region
        _
      $region16: #{iqa_adapter_forward.1} parent=11 // pred_fallthru
        _
      // Predicated region
      $region17: #{iqa_adapter_forward.1} parent=11 // pred_check
        %p537 = pneg %p199
      $region18: #{iqa_adapter_forward.1} parent=11 // pred_check_branch
        %539 = sbr.rel (%p537) target = $region20
      $region19: #{iqa_adapter_forward.1} parent=11 // pred_region
        _
      $region20: #{iqa_adapter_forward.1} parent=11 // pred_fallthru
        _
      // Predicated region
      $region21: #{iqa_adapter_forward.1} parent=11 // pred_check
        %p540 = pneg %p220
      $region22: #{iqa_adapter_forward.1} parent=11 // pred_check_branch
        %542 = sbr.rel (%p540) target = $region24
      $region23: #{iqa_adapter_forward.1} parent=11 // pred_region
        _
      $region24: #{iqa_adapter_forward.1} parent=11 // pred_fallthru
        _
      // Predicated region
      $region25: #{iqa_adapter_forward.1} parent=11 // pred_check
        %p543 = pneg %p241
      $region26: #{iqa_adapter_forward.1} parent=11 // pred_check_branch
        %545 = sbr.rel (%p543) target = $region28
      $region27: #{iqa_adapter_forward.1} parent=11 // pred_region
        _
      $region28: #{iqa_adapter_forward.1} parent=11 // pred_fallthru
        _
      // Predicated region
      $region29: #{iqa_adapter_forward.1} parent=11 // pred_check
        %p546 = pneg %p262
      $region30: #{iqa_adapter_forward.1} parent=11 // pred_check_branch
        %548 = sbr.rel (%p546) target = $region32
      $region31: #{iqa_adapter_forward.1} parent=11 // pred_region
        _
      $region32: #{iqa_adapter_forward.1} parent=11 // pred_fallthru
        _
      // Predicated region
      $region33: #{iqa_adapter_forward.1} parent=11 // pred_check
        %p549 = pneg %p283
      $region34: #{iqa_adapter_forward.1} parent=11 // pred_check_branch
        %551 = sbr.rel (%p549) target = $region36
      $region35: #{iqa_adapter_forward.1} parent=11 // pred_region
        _
      $region36: #{iqa_adapter_forward.1} parent=11 // pred_fallthru
        _
      // Predicated region
      $region37: #{iqa_adapter_forward.1} parent=11 // pred_check
        %p552 = pneg %p304
      $region38: #{iqa_adapter_forward.1} parent=11 // pred_check_branch
        %554 = sbr.rel (%p552) target = $region40
      $region39: #{iqa_adapter_forward.1} parent=11 // pred_region
        _
      $region40: #{iqa_adapter_forward.1} parent=11 // pred_fallthru
        _
      // Predicated region
      $region41: #{iqa_adapter_forward.1} parent=11 // pred_check
        %p555 = pneg %p325
      $region42: #{iqa_adapter_forward.1} parent=11 // pred_check_branch
        %557 = sbr.rel (%p555) target = $region44
      $region43: #{iqa_adapter_forward.1} parent=11 // pred_region
        _
      $region44: #{iqa_adapter_forward.1} parent=11 // pred_fallthru
        _
      // Predicated region
      $region45: #{iqa_adapter_forward.1} parent=11 // pred_check
        %p558 = pneg %p346
      $region46: #{iqa_adapter_forward.1} parent=11 // pred_check_branch
        %560 = sbr.rel (%p558) target = $region48
      $region47: #{iqa_adapter_forward.1} parent=11 // pred_region
        _
      $region48: #{iqa_adapter_forward.1} parent=11 // pred_fallthru
        _
      // Predicated region
      $region49: #{iqa_adapter_forward.1} parent=11 // pred_check
        %p561 = pneg %p367
      $region50: #{iqa_adapter_forward.1} parent=11 // pred_check_branch
        %563 = sbr.rel (%p561) target = $region52
      $region51: #{iqa_adapter_forward.1} parent=11 // pred_region
        _
      $region52: #{iqa_adapter_forward.1} parent=11 // pred_fallthru
        _
      // Predicated region
      $region53: #{iqa_adapter_forward.1} parent=11 // pred_check
        %p564 = pneg %p388
      $region54: #{iqa_adapter_forward.1} parent=11 // pred_check_branch
        %566 = sbr.rel (%p564) target = $region56
      $region55: #{iqa_adapter_forward.1} parent=11 // pred_region
        _
      $region56: #{iqa_adapter_forward.1} parent=11 // pred_fallthru
        _
      // Predicated region
      $region57: #{iqa_adapter_forward.1} parent=11 // pred_check
        %p567 = pneg %p409
      $region58: #{iqa_adapter_forward.1} parent=11 // pred_check_branch
        %569 = sbr.rel (%p567) target = $region60
      $region59: #{iqa_adapter_forward.1} parent=11 // pred_region
        _
      $region60: #{iqa_adapter_forward.1} parent=11 // pred_fallthru
        _
      // Predicated region
      $region61: #{iqa_adapter_forward.1} parent=11 // pred_check
        %p570 = pneg %p430
      $region62: #{iqa_adapter_forward.1} parent=11 // pred_check_branch
        %572 = sbr.rel (%p570) target = $region64
      $region63: #{iqa_adapter_forward.1} parent=11 // pred_region
        _
      $region64: #{iqa_adapter_forward.1} parent=11 // pred_fallthru
        _
      // Predicated region
      $region65: #{iqa_adapter_forward.1} parent=11 // pred_check
        %p573 = pneg %p451
      $region66: #{iqa_adapter_forward.1} parent=11 // pred_check_branch
        %575 = sbr.rel (%p573) target = $region68
      $region67: #{iqa_adapter_forward.1} parent=11 // pred_region
        _
      $region68: #{iqa_adapter_forward.1} parent=11 // pred_fallthru
        _
      // Predicated region
      $region69: #{iqa_adapter_forward.1} parent=11 // pred_check
        %p576 = pneg %p472
      $region70: #{iqa_adapter_forward.1} parent=11 // pred_check_branch
        %578 = sbr.rel (%p576) target = $region72
      $region71: #{iqa_adapter_forward.1} parent=11 // pred_region
        _
      $region72: #{iqa_adapter_forward.1} parent=11 // pred_fallthru
        _
      // Predicated region
      $region73: #{iqa_adapter_forward.1} parent=11 // pred_check
        %p579 = pneg %p493
      $region74: #{iqa_adapter_forward.1} parent=11 // pred_check_branch
        %581 = sbr.rel (%p579) target = $region76
      $region75: #{iqa_adapter_forward.1} parent=11 // pred_region
        _
      $region76: #{iqa_adapter_forward.1} parent=11 // pred_fallthru
        _
    $region12: #{iqa_adapter_forward.1} parent=5 // pred_fallthru
      _
    %p582 = scmp.lt.s32.totalorder %s27, 2
    // Predicated region
    $region77: #{iqa_adapter_forward.1} parent=5 // pred_check
      %p583 = pneg %p582
    $region78: #{iqa_adapter_forward.1} parent=5 // pred_check_branch
      %585 = sbr.rel (%p583) target = $region80
    $region79: #{iqa_adapter_forward.1} parent=5 // pred_region
      // Predicated region
      $region81: #{iqa_adapter_forward.1} parent=79 // pred_check
        %p586 = pneg %p47
      $region82: #{iqa_adapter_forward.1} parent=79 // pred_check_branch
        %588 = sbr.rel (%p586) target = $region84
      $region83: #{iqa_adapter_forward.1} parent=79 // pred_region
        %s589 = smul.u32 32, %s27
        %p590 = scmp.lt.s32.totalorder %s589, 63
        %s591 = scalar_select %p590, %s589, 63
        %s592 = smul.addr %s591, 4
        %s593 = scalar_lea.vmem %s0, %s592
        %s594 = smul.u32 32, %s27
      $region84: #{iqa_adapter_forward.1} parent=79 // pred_fallthru
        _
      // Predicated region
      $region85: #{iqa_adapter_forward.1} parent=79 // pred_check
        %p595 = pneg %p73
      $region86: #{iqa_adapter_forward.1} parent=79 // pred_check_branch
        %597 = sbr.rel (%p595) target = $region88
      $region87: #{iqa_adapter_forward.1} parent=79 // pred_region
        %p598 = scmp.lt.s32.totalorder %s27, 1
        %s599 = scalar_select %p598, %s27, 1
        %s600 = scalar_lea.vmem %s1, %s599
      $region88: #{iqa_adapter_forward.1} parent=79 // pred_fallthru
        _
      // Predicated region
      $region89: #{iqa_adapter_forward.1} parent=79 // pred_check
        %p601 = pneg %p99
      $region90: #{iqa_adapter_forward.1} parent=79 // pred_check_branch
        %603 = sbr.rel (%p601) target = $region92
      $region91: #{iqa_adapter_forward.1} parent=79 // pred_region
        %p604 = scmp.lt.s32.totalorder %s27, 1
        %s605 = scalar_select %p604, %s27, 1
        %s606 = scalar_lea.vmem %s2, %s605
      $region92: #{iqa_adapter_forward.1} parent=79 // pred_fallthru
        _
      // Predicated region
      $region93: #{iqa_adapter_forward.1} parent=79 // pred_check
        %p607 = pneg %p125
      $region94: #{iqa_adapter_forward.1} parent=79 // pred_check_branch
        %609 = sbr.rel (%p607) target = $region96
      $region95: #{iqa_adapter_forward.1} parent=79 // pred_region
        %p610 = scmp.lt.s32.totalorder %s27, 1
        %s611 = scalar_select %p610, %s27, 1
        %s612 = smul.addr %s611, 8
        %s613 = scalar_lea.vmem %s3, %s612
      $region96: #{iqa_adapter_forward.1} parent=79 // pred_fallthru
        _
      // Predicated region
      $region97: #{iqa_adapter_forward.1} parent=79 // pred_check
        %p614 = pneg %p151
      $region98: #{iqa_adapter_forward.1} parent=79 // pred_check_branch
        %616 = sbr.rel (%p614) target = $region100
      $region99: #{iqa_adapter_forward.1} parent=79 // pred_region
        %p617 = scmp.lt.s32.totalorder %s27, 1
        %s618 = scalar_select %p617, %s27, 1
        %s619 = scalar_lea.vmem %s4, %s618
      $region100: #{iqa_adapter_forward.1} parent=79 // pred_fallthru
        _
    $region80: #{iqa_adapter_forward.1} parent=5 // pred_fallthru
      _
    %p620 = scmp.le.s32.totalorder 1, %s27
    %p621 = scmp.lt.s32.totalorder %s27, 3
    %p622 = pnand %p620, %p621
    %p623 = pneg %p622
    // Predicated region
    $region101: #{iqa_adapter_forward.1} parent=5 // pred_check
      _
    $region102: #{iqa_adapter_forward.1} parent=5 // pred_check_branch
      %625 = sbr.rel (%p622) target = $region104
    $region103: #{iqa_adapter_forward.1} parent=5 // pred_region
      %s626 = ssub.s32 %s27, 1
      %s627 = smul.u32 32, %s32
      %p628 = scmp.lt.s32.totalorder %s627, 63
      %s629 = scalar_select %p628, %s627, 63
      %s630 = smul.addr %s629, 4
      %s631 = scalar_lea.vmem %s0, %s630
      %p632 = pneg %p53
      %p633 = pneg %p50
      %p634 = scmp.lt.s32.totalorder %s32, 1
      %s635 = scalar_select %p634, %s32, 1
      %s636 = scalar_lea.vmem %s1, %s635
      %p637 = pneg %p79
      %p638 = pneg %p76
      %p639 = scmp.lt.s32.totalorder %s32, 1
      %s640 = scalar_select %p639, %s32, 1
      %s641 = scalar_lea.vmem %s2, %s640
      %p642 = pneg %p105
      %p643 = pneg %p102
      %p644 = scmp.lt.s32.totalorder %s32, 1
      %s645 = scalar_select %p644, %s32, 1
      %s646 = smul.addr %s645, 8
      %s647 = scalar_lea.vmem %s3, %s646
      %p648 = pneg %p131
      %p649 = pneg %p128
      %p650 = scmp.lt.s32.totalorder %s32, 1
      %s651 = scalar_select %p650, %s32, 1
      %s652 = scalar_lea.vmem %s4, %s651
      %p653 = pneg %p157
      %p654 = pneg %p154
      %p655 = pneg %p178
      %p656 = pneg %p175
      %p657 = pneg %p199
      %p658 = pneg %p196
      %p659 = pneg %p220
      %p660 = pneg %p217
      %p661 = pneg %p241
      %p662 = pneg %p238
      %p663 = pneg %p262
      %p664 = pneg %p259
      %p665 = pneg %p283
      %p666 = pneg %p280
      %p667 = pneg %p304
      %p668 = pneg %p301
      %p669 = pneg %p325
      %p670 = pneg %p322
      %p671 = pneg %p346
      %p672 = pneg %p343
      %p673 = pneg %p367
      %p674 = pneg %p364
      %p675 = pneg %p388
      %p676 = pneg %p385
      %p677 = pneg %p409
      %p678 = pneg %p406
      %p679 = pneg %p430
      %p680 = pneg %p427
      %p681 = pneg %p451
      %p682 = pneg %p448
      %p683 = pneg %p472
      %p684 = pneg %p469
      %p685 = pneg %p493
      %p686 = pneg %p490
      %p687 = pneg %p519
      %p688 = pneg %p516
      %p689 = scmp.lt.s32.totalorder %s32, 1
      %s690 = scalar_select %p689, %s32, 1
      %s691 = smul.addr %s690, 2
      %s692 = smul.addr %s691, 4
      %s693 = scalar_lea.vmem %s21, %s692
      %s694 = smul.u32 32, %s32
      %p695 = scmp.lt.s32.totalorder %s694, 63
      %s696 = scalar_select %p695, %s694, 63
      %s697 = smul.addr %s696, 4
      %s698 = scalar_lea.vmem %s0, %s697
      %s699 = smul.u32 32, %s32
      %p700 = scmp.lt.s32.totalorder %s32, 1
      %s701 = scalar_select %p700, %s32, 1
      %s702 = scalar_lea.vmem %s1, %s701
      %p703 = scmp.lt.s32.totalorder %s32, 1
      %s704 = scalar_select %p703, %s32, 1
      %s705 = scalar_lea.vmem %s2, %s704
      %p706 = scmp.lt.s32.totalorder %s32, 1
      %s707 = scalar_select %p706, %s32, 1
      %s708 = smul.addr %s707, 8
      %s709 = scalar_lea.vmem %s3, %s708
      %p710 = scmp.lt.s32.totalorder %s32, 1
      %s711 = scalar_select %p710, %s32, 1
      %s712 = scalar_lea.vmem %s4, %s711
      %p713 = scmp.lt.s32.totalorder %s32, 1
      %s714 = scalar_select %p713, %s32, 1
      %s715 = smul.addr %s714, 2
      %s716 = smul.addr %s715, 4
      %s717 = scalar_lea.vmem %s21, %s716
      %v721 = vld [vmem:[%s712] sm:$0x1]
      %v722 = vpack.c.bf16 %v721, %v721
      %v723 = vld [vmem:[%s5] sm:$0xf]
      %v724 = vld [vmem:[%s5 + $0x4] sm:$0xf]
      %v725 = vld [vmem:[%s5 + $0x8] sm:$0xf]
      %v726 = vld [vmem:[%s5 + $0xc] sm:$0xf]
      %v727 = vld [vmem:[%s6] sm:$0x1]
      %v732 = vunpack.c.l.b16 %v723
      %v733 = vunpack.c.l.b16 %v724
      %v734 = vunpack.c.l.b16 %v725
      %v735 = vunpack.c.l.b16 %v726
      %v736 = vpack.c.b16 %v733, %v732
      %v737 = vpack.c.b16 %v735, %v734
      %vm740 = vcmask 261120
      %v742 = vsel %vm740, %v722, 0
      %744 = vmatprep.subr.bf16.mxu0 0
      %745 = vmatpush1.bf16.msra.mxu0 0
      %746 = vmatprep.subr.bf16.mxu0 0
      %747 = vmatpush1.bf16.msra.mxu0 0
      %748 = vmatprep.subr.bf16.mxu0 0
      %749 = vmatpush1.bf16.msra.mxu0 0
      %750 = vmatprep.subr.bf16.mxu0 0
      %751 = vmatpush1.bf16.msra.mxu0 0
      %752 = vmatprep.subr.bf16.mxu0 0
      %753 = vmatpush1.bf16.msra.mxu0 0
      %754 = vmatprep.subr.bf16.mxu0 0
      %755 = vmatpush1.bf16.msra.mxu0 0
      %756 = vmatprep.subr.bf16.mxu0 0
      %757 = vmatpush1.bf16.msra.mxu0 %v737
      %758 = vmatprep.subr.bf16.mxu0 0
      %759 = vmatpush1.bf16.msra.mxu0 %v736
      %760 = vmatprep.subr.bf16.mxu0 0
      %761 = vmatpush2.bf16.msra.mxu0 0
      %762 = vmatprep.subr.bf16.mxu0 0
      %763 = vmatpush2.bf16.msra.mxu0 0
      %764 = vmatprep.subr.bf16.mxu0 0
      %765 = vmatpush2.bf16.msra.mxu0 0
      %766 = vmatprep.subr.bf16.mxu0 0
      %767 = vmatpush2.bf16.msra.mxu0 0
      %768 = vmatprep.subr.bf16.mxu0 0
      %769 = vmatpush2.bf16.msra.mxu0 0
      %770 = vmatprep.subr.bf16.mxu0 0
      %771 = vmatpush2.bf16.msra.mxu0 0
      %772 = vmatprep.subr.bf16.mxu0 0
      %773 = vmatpush2.bf16.msra.mxu0 0
      %774 = vmatprep.subr.bf16.mxu0 0
      %775 = vmatpush2.bf16.msra.mxu0 0
      %776 = vmatprep.mubr.bf16.mxu0 0
      %777 = vmatmul.mubr.bf16.gmra.mxu0 %v742
      %v778 = vpop.f32.mrf.mxu0
      %v779 = vadd.f32 %v727, %v778
      %v780 = vpop.f32.mrf.mxu0
      %v781 = vpop.f32.mrf.mxu0
      %v782 = vpop.f32.mrf.mxu0
      %783 = vdwg.mxu0
      %v785 = vrot.slane %v779, 7
      %786 = vrot.lane.b32.xlu0 %v785, 96
      %v787 = vpop.permute.xlu0 %786
      %v789 = vrot.slane %v779, 6
      %790 = vrot.lane.b32.xlu0 %v789, 64
      %v791 = vpop.permute.xlu0 %790
      %v793 = vrot.slane %v779, 5
      %794 = vrot.lane.b32.xlu0 %v793, 32
      %v795 = vpop.permute.xlu0 %794
      %vm797 = vcmask 1040384
      %v798 = vsel %vm797, %v779, %v787
      %vm799 = vcmask 1041408
      %v800 = vsel %vm799, %v798, %v791
      %vm801 = vcmask 1042432
      %v802 = vsel %vm801, %v800, %v795
      %vm803 = vcmask 257024
      %v804 = vsel %vm803, %v802, 0.0
      %805 = vadd.xlane.f32.xlu0 %v804
      %v806 = vpop.xlane.xlu0 %805
      %v807 = vrcp.pop 32.0
      %v808 = vmul.f32 %v806, %v807
      %v809 = vsub.f32 %v802, %v808
      %v810 = vmul.f32 %v809, %v809
      %v811 = vsel %vm803, %v810, 0.0
      %812 = vadd.xlane.f32.xlu0 %v811
      %v813 = vpop.xlane.xlu0 %812
      %v814 = vmul.f32 %v813, %v807
      %v815 = vadd.f32 %v814, 1e-05
      %v816 = vrsqrt.pop %v815
      %v817 = vmul.f32 %v809, %v816
      %v818 = vld [vmem:[%s7] sm:$0x1]
      %v820 = vlaneseq
      %v821 = vshrl.u32 %v820, 7
      %v822 = vsub.s32 0, %v821
      %v823 = vrot.slane %v818, %v822
      %v825 = vmul.f32 %v817, %v823
      %v826 = vld [vmem:[%s8] sm:$0x1]
      %v828 = vlaneseq
      %v829 = vshrl.u32 %v828, 7
      %v830 = vsub.s32 0, %v829
      %v831 = vrot.slane %v826, %v830
      %v833 = vadd.f32 %v825, %v831
      %v834 = vld [vmem:[%s709] sm:$0xff]
      %v835 = vpack.c.bf16 %v834, %v834
      %v836 = vld [vmem:[%s16] sm:$0xf]
      %v837 = vld [vmem:[%s16 + $0x4] sm:$0xf]
      %v838 = vld [vmem:[%s16 + $0x8] sm:$0xf]
      %v839 = vld [vmem:[%s16 + $0xc] sm:$0xf]
      %v844 = vunpack.c.l.b16 %v836
      %v845 = vunpack.c.l.b16 %v837
      %v846 = vunpack.c.l.b16 %v838
      %v847 = vunpack.c.l.b16 %v839
      %v848 = vpack.c.b16 %v845, %v844
      %v849 = vpack.c.b16 %v847, %v846
      %v853 = vsel %vm740, %v835, 0
      %855 = vmatprep.subr.bf16.mxu0 0
      %856 = vmatpush1.bf16.msra.mxu0 0
      %857 = vmatprep.subr.bf16.mxu0 0
      %858 = vmatpush1.bf16.msra.mxu0 0
      %859 = vmatprep.subr.bf16.mxu0 0
      %860 = vmatpush1.bf16.msra.mxu0 0
      %861 = vmatprep.subr.bf16.mxu0 0
      %862 = vmatpush1.bf16.msra.mxu0 0
      %863 = vmatprep.subr.bf16.mxu0 0
      %864 = vmatpush1.bf16.msra.mxu0 0
      %865 = vmatprep.subr.bf16.mxu0 0
      %866 = vmatpush1.bf16.msra.mxu0 0
      %867 = vmatprep.subr.bf16.mxu0 0
      %868 = vmatpush1.bf16.msra.mxu0 %v849
      %869 = vmatprep.subr.bf16.mxu0 0
      %870 = vmatpush1.bf16.msra.mxu0 %v848
      %871 = vmatprep.subr.bf16.mxu0 0
      %872 = vmatpush2.bf16.msra.mxu0 0
      %873 = vmatprep.subr.bf16.mxu0 0
      %874 = vmatpush2.bf16.msra.mxu0 0
      %875 = vmatprep.subr.bf16.mxu0 0
      %876 = vmatpush2.bf16.msra.mxu0 0
      %877 = vmatprep.subr.bf16.mxu0 0
      %878 = vmatpush2.bf16.msra.mxu0 0
      %879 = vmatprep.subr.bf16.mxu0 0
      %880 = vmatpush2.bf16.msra.mxu0 0
      %881 = vmatprep.subr.bf16.mxu0 0
      %882 = vmatpush2.bf16.msra.mxu0 0
      %883 = vmatprep.subr.bf16.mxu0 0
      %884 = vmatpush2.bf16.msra.mxu0 0
      %885 = vmatprep.subr.bf16.mxu0 0
      %886 = vmatpush2.bf16.msra.mxu0 0
      %887 = vmatprep.mubr.bf16.mxu0 0
      %888 = vmatmul.mubr.bf16.gmra.mxu0 %v853
      %v889 = vpop.f32.mrf.mxu0
      %v890 = vadd.f32 0.0, %v889
      %v891 = vpop.f32.mrf.mxu0
      %v892 = vpop.f32.mrf.mxu0
      %v893 = vpop.f32.mrf.mxu0
      %894 = vdwg.mxu0
      %v895 = vpack.c.bf16 %v833, %v833
      %v896 = vld [vmem:[%s17] sm:$0xf]
      %v897 = vld [vmem:[%s17 + $0x4] sm:$0xf]
      %v898 = vld [vmem:[%s17 + $0x8] sm:$0xf]
      %v899 = vld [vmem:[%s17 + $0xc] sm:$0xf]
      %v904 = vunpack.c.l.b16 %v896
      %v905 = vunpack.c.l.b16 %v897
      %v906 = vunpack.c.l.b16 %v898
      %v907 = vunpack.c.l.b16 %v899
      %v908 = vpack.c.b16 %v905, %v904
      %v909 = vpack.c.b16 %v907, %v906
      %v913 = vsel %vm740, %v895, 0
      %915 = vmatprep.subr.bf16.mxu0 0
      %916 = vmatpush1.bf16.msra.mxu0 0
      %917 = vmatprep.subr.bf16.mxu0 0
      %918 = vmatpush1.bf16.msra.mxu0 0
      %919 = vmatprep.subr.bf16.mxu0 0
      %920 = vmatpush1.bf16.msra.mxu0 0
      %921 = vmatprep.subr.bf16.mxu0 0
      %922 = vmatpush1.bf16.msra.mxu0 0
      %923 = vmatprep.subr.bf16.mxu0 0
      %924 = vmatpush1.bf16.msra.mxu0 0
      %925 = vmatprep.subr.bf16.mxu0 0
      %926 = vmatpush1.bf16.msra.mxu0 0
      %927 = vmatprep.subr.bf16.mxu0 0
      %928 = vmatpush1.bf16.msra.mxu0 %v909
      %929 = vmatprep.subr.bf16.mxu0 0
      %930 = vmatpush1.bf16.msra.mxu0 %v908
      %931 = vmatprep.subr.bf16.mxu0 0
      %932 = vmatpush2.bf16.msra.mxu0 0
      %933 = vmatprep.subr.bf16.mxu0 0
      %934 = vmatpush2.bf16.msra.mxu0 0
      %935 = vmatprep.subr.bf16.mxu0 0
      %936 = vmatpush2.bf16.msra.mxu0 0
      %937 = vmatprep.subr.bf16.mxu0 0
      %938 = vmatpush2.bf16.msra.mxu0 0
      %939 = vmatprep.subr.bf16.mxu0 0
      %940 = vmatpush2.bf16.msra.mxu0 0
      %941 = vmatprep.subr.bf16.mxu0 0
      %942 = vmatpush2.bf16.msra.mxu0 0
      %943 = vmatprep.subr.bf16.mxu0 0
      %944 = vmatpush2.bf16.msra.mxu0 0
      %945 = vmatprep.subr.bf16.mxu0 0
      %946 = vmatpush2.bf16.msra.mxu0 0
      %947 = vmatprep.mubr.bf16.mxu0 0
      %948 = vmatmul.mubr.bf16.gmra.mxu0 %v913
      %v949 = vpop.f32.mrf.mxu0
      %v950 = vadd.f32 0.0, %v949
      %v951 = vpop.f32.mrf.mxu0
      %v952 = vpop.f32.mrf.mxu0
      %v953 = vpop.f32.mrf.mxu0
      %954 = vdwg.mxu0
      %v955 = vpack.c.bf16 %v950, %v890
      %v956 = vld [vmem:[%s702] sm:$0x1]
      %v957 = vld [vmem:[%s9] sm:$0xff]
      %v958 = vld [vmem:[%s9 + $0x8] sm:$0xff]
      %v959 = vld [vmem:[%s9 + $0x10] sm:$0xff]
      %v960 = vld [vmem:[%s9 + $0x18] sm:$0xff]
      %v961 = vld [vmem:[%s10] sm:$0x1]
      %v963 = vsel %vm740, %v956, 0
      %965 = vmatprep.subr.mxu0 0.0
      %966 = vmatpush1.msra.mxu0 0.0
      %967 = vmatprep.subr.mxu0 0.0
      %968 = vmatpush1.msra.mxu0 0.0
      %969 = vmatprep.subr.mxu0 0.0
      %970 = vmatpush1.msra.mxu0 0.0
      %971 = vmatprep.subr.mxu0 0.0
      %972 = vmatpush1.msra.mxu0 0.0
      %973 = vmatprep.subr.mxu0 0.0
      %974 = vmatpush1.msra.mxu0 0.0
      %975 = vmatprep.subr.mxu0 0.0
      %976 = vmatpush1.msra.mxu0 0.0
      %977 = vmatprep.subr.mxu0 0.0
      %978 = vmatpush1.msra.mxu0 0.0
      %979 = vmatprep.subr.mxu0 0.0
      %980 = vmatpush1.msra.mxu0 0.0
      %981 = vmatprep.subr.mxu0 0.0
      %982 = vmatpush1.msra.mxu0 0.0
      %983 = vmatprep.subr.mxu0 0.0
      %984 = vmatpush1.msra.mxu0 0.0
      %985 = vmatprep.subr.mxu0 0.0
      %986 = vmatpush1.msra.mxu0 0.0
      %987 = vmatprep.subr.mxu0 0.0
      %988 = vmatpush1.msra.mxu0 0.0
      %989 = vmatprep.subr.mxu0 0.0
      %990 = vmatpush1.msra.mxu0 %v960
      %991 = vmatprep.subr.mxu0 0.0
      %992 = vmatpush1.msra.mxu0 %v959
      %993 = vmatprep.subr.mxu0 0.0
      %994 = vmatpush1.msra.mxu0 %v958
      %995 = vmatprep.subr.mxu0 0.0
      %996 = vmatpush1.msra.mxu0 %v957
      %997 = vmatprep.subr.mxu0 0.0
      %998 = vmatpush2.msra.mxu0 0.0
      %999 = vmatprep.subr.mxu0 0.0
      %1000 = vmatpush2.msra.mxu0 0.0
      %1001 = vmatprep.subr.mxu0 0.0
      %1002 = vmatpush2.msra.mxu0 0.0
      %1003 = vmatprep.subr.mxu0 0.0
      %1004 = vmatpush2.msra.mxu0 0.0
      %1005 = vmatprep.subr.mxu0 0.0
      %1006 = vmatpush2.msra.mxu0 0.0
      %1007 = vmatprep.subr.mxu0 0.0
      %1008 = vmatpush2.msra.mxu0 0.0
      %1009 = vmatprep.subr.mxu0 0.0
      %1010 = vmatpush2.msra.mxu0 0.0
      %1011 = vmatprep.subr.mxu0 0.0
      %1012 = vmatpush2.msra.mxu0 0.0
      %1013 = vmatprep.subr.mxu0 0.0
      %1014 = vmatpush2.msra.mxu0 0.0
      %1015 = vmatprep.subr.mxu0 0.0
      %1016 = vmatpush2.msra.mxu0 0.0
      %1017 = vmatprep.subr.mxu0 0.0
      %1018 = vmatpush2.msra.mxu0 0.0
      %1019 = vmatprep.subr.mxu0 0.0
      %1020 = vmatpush2.msra.mxu0 0.0
      %1021 = vmatprep.subr.mxu0 0.0
      %1022 = vmatpush2.msra.mxu0 0.0
      %1023 = vmatprep.subr.mxu0 0.0
      %1024 = vmatpush2.msra.mxu0 0.0
      %1025 = vmatprep.subr.mxu0 0.0
      %1026 = vmatpush2.msra.mxu0 0.0
      %1027 = vmatprep.subr.mxu0 0.0
      %1028 = vmatpush2.msra.mxu0 0.0
      %1029 = vmatprep.mubr.f32.mxu0 0.0
      %1030 = vmatmul.mubr.f32.gmra.mxu0 %v963
      %v1031 = vpop.f32.mrf.mxu0
      %v1032 = vadd.f32 %v961, %v1031
      %v1033 = vpop.f32.mrf.mxu0
      %1034 = vdwg.mxu0
      %v1035 = vxor.u32 %v1032, 2147483648
      %v1036 = vmul.f32 %v1035, 1.442695
      %v1037 = vpow.pop %v1036
      %v1038 = vadd.f32 %v1037, 1.0
      %v1039 = vrcp.pop %v1038
      %v1040 = vmul.f32 1.0, %v1039
      %v1041 = vmul.f32 %v1032, %v1040
      %v1042 = vld [vmem:[%s705] sm:$0x1]
      %v1044 = vlaneseq
      %v1045 = vshrl.u32 %v1044, 7
      %v1046 = vsub.s32 0, %v1045
      %v1047 = vrot.slane %v1042, %v1046
      %1048 = vrot.lane.b32.xlu0 %v1047, 32
      %v1049 = vpop.permute.xlu0 %1048
      %v1051 = vsel %vm740, %v1041, %v1049
      %v1052 = vld [vmem:[%s11] sm:$0xff]
      %v1053 = vld [vmem:[%s11 + $0x8] sm:$0xff]
      %v1054 = vld [vmem:[%s11 + $0x10] sm:$0xff]
      %v1055 = vld [vmem:[%s11 + $0x18] sm:$0xff]
      %v1056 = vld [vmem:[%s11 + $0x20] sm:$0xff]
      %v1057 = vld [vmem:[%s11 + $0x28] sm:$0xff]
      %v1058 = vld [vmem:[%s11 + $0x30] sm:$0xff]
      %v1059 = vld [vmem:[%s11 + $0x38] sm:$0xff]
      %v1060 = vld [vmem:[%s11 + $0x40] sm:$0x3f]
      %v1061 = vld [vmem:[%s12] sm:$0x1]
      %vm1062 = vcmask 572416
      %v1064 = vsel %vm1062, %v1051, 0
      %vm1066 = vcmask 1045504
      %v1068 = vsel %vm1066, %v1060, 0
      %1070 = vmatprep.subr.mxu0 0.0
      %1071 = vmatpush1.msra.mxu0 0.0
      %1072 = vmatprep.subr.mxu0 0.0
      %1073 = vmatpush1.msra.mxu0 0.0
      %1074 = vmatprep.subr.mxu0 0.0
      %1075 = vmatpush1.msra.mxu0 0.0
      %1076 = vmatprep.subr.mxu0 0.0
      %1077 = vmatpush1.msra.mxu0 0.0
      %1078 = vmatprep.subr.mxu0 0.0
      %1079 = vmatpush1.msra.mxu0 0.0
      %1080 = vmatprep.subr.mxu0 0.0
      %1081 = vmatpush1.msra.mxu0 0.0
      %1082 = vmatprep.subr.mxu0 0.0
      %1083 = vmatpush1.msra.mxu0 0.0
      %1084 = vmatprep.subr.mxu0 0.0
      %1085 = vmatpush1.msra.mxu0 %v1068
      %1086 = vmatprep.subr.mxu0 0.0
      %1087 = vmatpush1.msra.mxu0 %v1059
      %1088 = vmatprep.subr.mxu0 0.0
      %1089 = vmatpush1.msra.mxu0 %v1058
      %1090 = vmatprep.subr.mxu0 0.0
      %1091 = vmatpush1.msra.mxu0 %v1057
      %1092 = vmatprep.subr.mxu0 0.0
      %1093 = vmatpush1.msra.mxu0 %v1056
      %1094 = vmatprep.subr.mxu0 0.0
      %1095 = vmatpush1.msra.mxu0 %v1055
      %1096 = vmatprep.subr.mxu0 0.0
      %1097 = vmatpush1.msra.mxu0 %v1054
      %1098 = vmatprep.subr.mxu0 0.0
      %1099 = vmatpush1.msra.mxu0 %v1053
      %1100 = vmatprep.subr.mxu0 0.0
      %1101 = vmatpush1.msra.mxu0 %v1052
      %1102 = vmatprep.subr.mxu0 0.0
      %1103 = vmatpush2.msra.mxu0 0.0
      %1104 = vmatprep.subr.mxu0 0.0
      %1105 = vmatpush2.msra.mxu0 0.0
      %1106 = vmatprep.subr.mxu0 0.0
      %1107 = vmatpush2.msra.mxu0 0.0
      %1108 = vmatprep.subr.mxu0 0.0
      %1109 = vmatpush2.msra.mxu0 0.0
      %1110 = vmatprep.subr.mxu0 0.0
      %1111 = vmatpush2.msra.mxu0 0.0
      %1112 = vmatprep.subr.mxu0 0.0
      %1113 = vmatpush2.msra.mxu0 0.0
      %1114 = vmatprep.subr.mxu0 0.0
      %1115 = vmatpush2.msra.mxu0 0.0
      %1116 = vmatprep.subr.mxu0 0.0
      %1117 = vmatpush2.msra.mxu0 0.0
      %1118 = vmatprep.subr.mxu0 0.0
      %1119 = vmatpush2.msra.mxu0 0.0
      %1120 = vmatprep.subr.mxu0 0.0
      %1121 = vmatpush2.msra.mxu0 0.0
      %1122 = vmatprep.subr.mxu0 0.0
      %1123 = vmatpush2.msra.mxu0 0.0
      %1124 = vmatprep.subr.mxu0 0.0
      %1125 = vmatpush2.msra.mxu0 0.0
      %1126 = vmatprep.subr.mxu0 0.0
      %1127 = vmatpush2.msra.mxu0 0.0
      %1128 = vmatprep.subr.mxu0 0.0
      %1129 = vmatpush2.msra.mxu0 0.0
      %1130 = vmatprep.subr.mxu0 0.0
      %1131 = vmatpush2.msra.mxu0 0.0
      %1132 = vmatprep.subr.mxu0 0.0
      %1133 = vmatpush2.msra.mxu0 0.0
      %1134 = vmatprep.mubr.f32.mxu0 0.0
      %1135 = vmatmul.mubr.f32.gmra.mxu0 %v1064
      %v1136 = vpop.f32.mrf.mxu0
      %v1137 = vadd.f32 %v1061, %v1136
      %v1138 = vpop.f32.mrf.mxu0
      %1139 = vdwg.mxu0
      %v1140 = vld [vmem:[%s13] sm:$0x1]
      %v1141 = vadd.f32 %v1140, %v1137
      %v1142 = vld [vmem:[%s14] sm:$0xff]
      %v1143 = vld [vmem:[%s14 + $0x8] sm:$0xff]
      %v1144 = vld [vmem:[%s14 + $0x10] sm:$0xff]
      %v1145 = vld [vmem:[%s14 + $0x18] sm:$0xff]
      %v1147 = vsel %vm740, %v1141, 0
      %1149 = vmatprep.subr.mxu0 0.0
      %1150 = vmatpush1.msra.mxu0 0.0
      %1151 = vmatprep.subr.mxu0 0.0
      %1152 = vmatpush1.msra.mxu0 0.0
      %1153 = vmatprep.subr.mxu0 0.0
      %1154 = vmatpush1.msra.mxu0 0.0
      %1155 = vmatprep.subr.mxu0 0.0
      %1156 = vmatpush1.msra.mxu0 0.0
      %1157 = vmatprep.subr.mxu0 0.0
      %1158 = vmatpush1.msra.mxu0 0.0
      %1159 = vmatprep.subr.mxu0 0.0
      %1160 = vmatpush1.msra.mxu0 0.0
      %1161 = vmatprep.subr.mxu0 0.0
      %1162 = vmatpush1.msra.mxu0 0.0
      %1163 = vmatprep.subr.mxu0 0.0
      %1164 = vmatpush1.msra.mxu0 0.0
      %1165 = vmatprep.subr.mxu0 0.0
      %1166 = vmatpush1.msra.mxu0 0.0
      %1167 = vmatprep.subr.mxu0 0.0
      %1168 = vmatpush1.msra.mxu0 0.0
      %1169 = vmatprep.subr.mxu0 0.0
      %1170 = vmatpush1.msra.mxu0 0.0
      %1171 = vmatprep.subr.mxu0 0.0
      %1172 = vmatpush1.msra.mxu0 0.0
      %1173 = vmatprep.subr.mxu0 0.0
      %1174 = vmatpush1.msra.mxu0 %v1145
      %1175 = vmatprep.subr.mxu0 0.0
      %1176 = vmatpush1.msra.mxu0 %v1144
      %1177 = vmatprep.subr.mxu0 0.0
      %1178 = vmatpush1.msra.mxu0 %v1143
      %1179 = vmatprep.subr.mxu0 0.0
      %1180 = vmatpush1.msra.mxu0 %v1142
      %1181 = vmatprep.subr.mxu0 0.0
      %1182 = vmatpush2.msra.mxu0 0.0
      %1183 = vmatprep.subr.mxu0 0.0
      %1184 = vmatpush2.msra.mxu0 0.0
      %1185 = vmatprep.subr.mxu0 0.0
      %1186 = vmatpush2.msra.mxu0 0.0
      %1187 = vmatprep.subr.mxu0 0.0
      %1188 = vmatpush2.msra.mxu0 0.0
      %1189 = vmatprep.subr.mxu0 0.0
      %1190 = vmatpush2.msra.mxu0 0.0
      %1191 = vmatprep.subr.mxu0 0.0
      %1192 = vmatpush2.msra.mxu0 0.0
      %1193 = vmatprep.subr.mxu0 0.0
      %1194 = vmatpush2.msra.mxu0 0.0
      %1195 = vmatprep.subr.mxu0 0.0
      %1196 = vmatpush2.msra.mxu0 0.0
      %1197 = vmatprep.subr.mxu0 0.0
      %1198 = vmatpush2.msra.mxu0 0.0
      %1199 = vmatprep.subr.mxu0 0.0
      %1200 = vmatpush2.msra.mxu0 0.0
      %1201 = vmatprep.subr.mxu0 0.0
      %1202 = vmatpush2.msra.mxu0 0.0
      %1203 = vmatprep.subr.mxu0 0.0
      %1204 = vmatpush2.msra.mxu0 0.0
      %1205 = vmatprep.subr.mxu0 0.0
      %1206 = vmatpush2.msra.mxu0 0.0
      %1207 = vmatprep.subr.mxu0 0.0
      %1208 = vmatpush2.msra.mxu0 0.0
      %1209 = vmatprep.subr.mxu0 0.0
      %1210 = vmatpush2.msra.mxu0 0.0
      %1211 = vmatprep.subr.mxu0 0.0
      %1212 = vmatpush2.msra.mxu0 0.0
      %1213 = vmatprep.mubr.f32.mxu0 0.0
      %1214 = vmatmul.mubr.f32.gmra.mxu0 %v1147
      %v1215 = vpop.f32.mrf.mxu0
      %v1216 = vadd.f32 0.0, %v1215
      %v1217 = vpop.f32.mrf.mxu0
      %1218 = vdwg.mxu0
      %v1219 = vld [vmem:[%s698] sm:$0xf]
      %v1220 = vld [vmem:[%s698 + $0x4] sm:$0xf]
      %v1221 = vld [vmem:[%s698 + $0x8] sm:$0xf]
      %v1222 = vld [vmem:[%s698 + $0xc] sm:$0xf]
      %v1223 = vld [vmem:[%s698 + $0x10] sm:$0xf]
      %v1224 = vld [vmem:[%s698 + $0x14] sm:$0xf]
      %v1225 = vld [vmem:[%s698 + $0x18] sm:$0xf]
      %v1226 = vld [vmem:[%s698 + $0x1c] sm:$0xf]
      %v1227 = vld [vmem:[%s698 + $0x20] sm:$0xf]
      %v1228 = vld [vmem:[%s698 + $0x24] sm:$0xf]
      %v1229 = vld [vmem:[%s698 + $0x28] sm:$0xf]
      %v1230 = vld [vmem:[%s698 + $0x2c] sm:$0xf]
      %v1231 = vld [vmem:[%s698 + $0x30] sm:$0xf]
      %v1232 = vld [vmem:[%s698 + $0x34] sm:$0xf]
      %v1233 = vld [vmem:[%s698 + $0x38] sm:$0xf]
      %v1234 = vld [vmem:[%s698 + $0x3c] sm:$0xf]
      %v1235 = vld [vmem:[%s698 + $0x40] sm:$0xf]
      %v1236 = vld [vmem:[%s698 + $0x44] sm:$0xf]
      %v1237 = vld [vmem:[%s698 + $0x48] sm:$0xf]
      %v1238 = vld [vmem:[%s698 + $0x4c] sm:$0xf]
      %v1239 = vld [vmem:[%s698 + $0x50] sm:$0xf]
      %v1240 = vld [vmem:[%s698 + $0x54] sm:$0xf]
      %v1241 = vld [vmem:[%s698 + $0x58] sm:$0xf]
      %v1242 = vld [vmem:[%s698 + $0x5c] sm:$0xf]
      %v1243 = vld [vmem:[%s698 + $0x60] sm:$0xf]
      %v1244 = vld [vmem:[%s698 + $0x64] sm:$0xf]
      %v1245 = vld [vmem:[%s698 + $0x68] sm:$0xf]
      %v1246 = vld [vmem:[%s698 + $0x6c] sm:$0xf]
      %v1247 = vld [vmem:[%s698 + $0x70] sm:$0xf]
      %v1248 = vld [vmem:[%s698 + $0x74] sm:$0xf]
      %v1249 = vld [vmem:[%s698 + $0x78] sm:$0xf]
      %v1250 = vld [vmem:[%s698 + $0x7c] sm:$0xf]
      %v1251 = vld [vmem:[%s15] sm:$0xf]
      %v1252 = vld [vmem:[%s15 + $0x4] sm:$0xf]
      %v1253 = vld [vmem:[%s15 + $0x8] sm:$0xf]
      %v1254 = vld [vmem:[%s15 + $0xc] sm:$0xf]
      %v1255 = vld [vmem:[%s15 + $0x10] sm:$0x3]
      %v1288 = vunpack.c.l.b16 %v1219
      %v1289 = vunpack.c.l.b16 %v1220
      %v1290 = vunpack.c.l.b16 %v1221
      %v1291 = vunpack.c.l.b16 %v1222
      %v1292 = vunpack.c.l.b16 %v1223
      %v1293 = vunpack.c.l.b16 %v1224
      %v1294 = vunpack.c.l.b16 %v1225
      %v1295 = vunpack.c.l.b16 %v1226
      %v1296 = vunpack.c.l.b16 %v1227
      %v1297 = vunpack.c.l.b16 %v1228
      %v1298 = vunpack.c.l.b16 %v1229
      %v1299 = vunpack.c.l.b16 %v1230
      %v1300 = vunpack.c.l.b16 %v1231
      %v1301 = vunpack.c.l.b16 %v1232
      %v1302 = vunpack.c.l.b16 %v1233
      %v1303 = vunpack.c.l.b16 %v1234
      %v1304 = vunpack.c.l.b16 %v1235
      %v1305 = vunpack.c.l.b16 %v1236
      %v1306 = vunpack.c.l.b16 %v1237
      %v1307 = vunpack.c.l.b16 %v1238
      %v1308 = vunpack.c.l.b16 %v1239
      %v1309 = vunpack.c.l.b16 %v1240
      %v1310 = vunpack.c.l.b16 %v1241
      %v1311 = vunpack.c.l.b16 %v1242
      %v1312 = vunpack.c.l.b16 %v1243
      %v1313 = vunpack.c.l.b16 %v1244
      %v1314 = vunpack.c.l.b16 %v1245
      %v1315 = vunpack.c.l.b16 %v1246
      %v1316 = vunpack.c.l.b16 %v1247
      %v1317 = vunpack.c.l.b16 %v1248
      %v1318 = vunpack.c.l.b16 %v1249
      %v1319 = vunpack.c.l.b16 %v1250
      %v1320 = vpack.c.b16 %v1289, %v1288
      %v1321 = vpack.c.b16 %v1291, %v1290
      %v1322 = vpack.c.b16 %v1293, %v1292
      %v1323 = vpack.c.b16 %v1295, %v1294
      %v1324 = vpack.c.b16 %v1297, %v1296
      %v1325 = vpack.c.b16 %v1299, %v1298
      %v1326 = vpack.c.b16 %v1301, %v1300
      %v1327 = vpack.c.b16 %v1303, %v1302
      %v1328 = vpack.c.b16 %v1305, %v1304
      %v1329 = vpack.c.b16 %v1307, %v1306
      %v1330 = vpack.c.b16 %v1309, %v1308
      %v1331 = vpack.c.b16 %v1311, %v1310
      %v1332 = vpack.c.b16 %v1313, %v1312
      %v1333 = vpack.c.b16 %v1315, %v1314
      %v1334 = vpack.c.b16 %v1317, %v1316
      %v1335 = vpack.c.b16 %v1319, %v1318
      %v1341 = vunpack.c.l.b16 %v1251
      %v1342 = vunpack.c.l.b16 %v1252
      %v1343 = vunpack.c.l.b16 %v1253
      %v1344 = vunpack.c.l.b16 %v1254
      %v1345 = vunpack.c.l.b16 %v1255
      %v1346 = vpack.c.b16 %v1342, %v1341
      %v1347 = vpack.c.b16 %v1344, %v1343
      %v1348 = vpack.c.b16 %v1345, %v1345
      %vm1351 = vcmask 293888
      %v1353 = vsel %vm1351, %v1320, 0
      %v1356 = vsel %vm1351, %v1321, 0
      %v1359 = vsel %vm1351, %v1322, 0
      %v1362 = vsel %vm1351, %v1323, 0
      %v1365 = vsel %vm1351, %v1324, 0
      %v1368 = vsel %vm1351, %v1325, 0
      %v1371 = vsel %vm1351, %v1326, 0
      %v1374 = vsel %vm1351, %v1327, 0
      %v1377 = vsel %vm1351, %v1328, 0
      %v1380 = vsel %vm1351, %v1329, 0
      %v1383 = vsel %vm1351, %v1330, 0
      %v1386 = vsel %vm1351, %v1331, 0
      %v1389 = vsel %vm1351, %v1332, 0
      %v1392 = vsel %vm1351, %v1333, 0
      %v1395 = vsel %vm1351, %v1334, 0
      %v1398 = vsel %vm1351, %v1335, 0
      %v1401 = vsel %vm799, %v1348, 0
      %1403 = vmatprep.subr.bf16.mxu0 0
      %1404 = vmatpush1.bf16.msra.mxu0 0
      %1405 = vmatprep.subr.bf16.mxu0 0
      %1406 = vmatpush1.bf16.msra.mxu0 0
      %1407 = vmatprep.subr.bf16.mxu0 0
      %1408 = vmatpush1.bf16.msra.mxu0 0
      %1409 = vmatprep.subr.bf16.mxu0 0
      %1410 = vmatpush1.bf16.msra.mxu0 0
      %1411 = vmatprep.subr.bf16.mxu0 0
      %1412 = vmatpush1.bf16.msra.mxu0 0
      %1413 = vmatprep.subr.bf16.mxu0 0
      %1414 = vmatpush1.bf16.msra.mxu0 %v1401
      %1415 = vmatprep.subr.bf16.mxu0 0
      %1416 = vmatpush1.bf16.msra.mxu0 %v1347
      %1417 = vmatprep.subr.bf16.mxu0 0
      %1418 = vmatpush1.bf16.msra.mxu0 %v1346
      %1419 = vmatprep.subr.bf16.mxu0 0
      %1420 = vmatpush2.bf16.msra.mxu0 0
      %1421 = vmatprep.subr.bf16.mxu0 0
      %1422 = vmatpush2.bf16.msra.mxu0 0
      %1423 = vmatprep.subr.bf16.mxu0 0
      %1424 = vmatpush2.bf16.msra.mxu0 0
      %1425 = vmatprep.subr.bf16.mxu0 0
      %1426 = vmatpush2.bf16.msra.mxu0 0
      %1427 = vmatprep.subr.bf16.mxu0 0
      %1428 = vmatpush2.bf16.msra.mxu0 0
      %1429 = vmatprep.subr.bf16.mxu0 0
      %1430 = vmatpush2.bf16.msra.mxu0 0
      %1431 = vmatprep.subr.bf16.mxu0 0
      %1432 = vmatpush2.bf16.msra.mxu0 0
      %1433 = vmatprep.subr.bf16.mxu0 0
      %1434 = vmatpush2.bf16.msra.mxu0 0
      %1435 = vmatprep.mubr.bf16.mxu0 0
      %1436 = vmatmul.mubr.bf16.gmra.mxu0 %v1353
      %v1437 = vpop.f32.mrf.mxu0
      %v1438 = vadd.f32 0.0, %v1437
      %v1439 = vpop.f32.mrf.mxu0
      %v1440 = vpop.f32.mrf.mxu0
      %v1441 = vadd.f32 0.0, %v1440
      %v1442 = vpop.f32.mrf.mxu0
      %1443 = vmatprep.mubr.bf16.mxu0 0
      %1444 = vmatmul.mubr.bf16.gmra.mxu0 %v1356
      %v1445 = vpop.f32.mrf.mxu0
      %v1446 = vadd.f32 0.0, %v1445
      %v1447 = vpop.f32.mrf.mxu0
      %v1448 = vpop.f32.mrf.mxu0
      %v1449 = vadd.f32 0.0, %v1448
      %v1450 = vpop.f32.mrf.mxu0
      %1451 = vmatprep.mubr.bf16.mxu0 0
      %1452 = vmatmul.mubr.bf16.gmra.mxu0 %v1359
      %v1453 = vpop.f32.mrf.mxu0
      %v1454 = vadd.f32 0.0, %v1453
      %v1455 = vpop.f32.mrf.mxu0
      %v1456 = vpop.f32.mrf.mxu0
      %v1457 = vadd.f32 0.0, %v1456
      %v1458 = vpop.f32.mrf.mxu0
      %1459 = vmatprep.mubr.bf16.mxu0 0
      %1460 = vmatmul.mubr.bf16.gmra.mxu0 %v1362
      %v1461 = vpop.f32.mrf.mxu0
      %v1462 = vadd.f32 0.0, %v1461
      %v1463 = vpop.f32.mrf.mxu0
      %v1464 = vpop.f32.mrf.mxu0
      %v1465 = vadd.f32 0.0, %v1464
      %v1466 = vpop.f32.mrf.mxu0
      %1467 = vmatprep.mubr.bf16.mxu0 0
      %1468 = vmatmul.mubr.bf16.gmra.mxu0 %v1365
      %v1469 = vpop.f32.mrf.mxu0
      %v1470 = vadd.f32 0.0, %v1469
      %v1471 = vpop.f32.mrf.mxu0
      %v1472 = vpop.f32.mrf.mxu0
      %v1473 = vadd.f32 0.0, %v1472
      %v1474 = vpop.f32.mrf.mxu0
      %1475 = vmatprep.mubr.bf16.mxu0 0
      %1476 = vmatmul.mubr.bf16.gmra.mxu0 %v1368
      %v1477 = vpop.f32.mrf.mxu0
      %v1478 = vadd.f32 0.0, %v1477
      %v1479 = vpop.f32.mrf.mxu0
      %v1480 = vpop.f32.mrf.mxu0
      %v1481 = vadd.f32 0.0, %v1480
      %v1482 = vpop.f32.mrf.mxu0
      %1483 = vmatprep.mubr.bf16.mxu0 0
      %1484 = vmatmul.mubr.bf16.gmra.mxu0 %v1371
      %v1485 = vpop.f32.mrf.mxu0
      %v1486 = vadd.f32 0.0, %v1485
      %v1487 = vpop.f32.mrf.mxu0
      %v1488 = vpop.f32.mrf.mxu0
      %v1489 = vadd.f32 0.0, %v1488
      %v1490 = vpop.f32.mrf.mxu0
      %1491 = vmatprep.mubr.bf16.mxu0 0
      %1492 = vmatmul.mubr.bf16.gmra.mxu0 %v1374
      %v1493 = vpop.f32.mrf.mxu0
      %v1494 = vadd.f32 0.0, %v1493
      %v1495 = vpop.f32.mrf.mxu0
      %v1496 = vpop.f32.mrf.mxu0
      %v1497 = vadd.f32 0.0, %v1496
      %v1498 = vpop.f32.mrf.mxu0
      %1499 = vmatprep.mubr.bf16.mxu0 0
      %1500 = vmatmul.mubr.bf16.gmra.mxu0 %v1377
      %v1501 = vpop.f32.mrf.mxu0
      %v1502 = vadd.f32 0.0, %v1501
      %v1503 = vpop.f32.mrf.mxu0
      %v1504 = vpop.f32.mrf.mxu0
      %v1505 = vadd.f32 0.0, %v1504
      %v1506 = vpop.f32.mrf.mxu0
      %1507 = vmatprep.mubr.bf16.mxu0 0
      %1508 = vmatmul.mubr.bf16.gmra.mxu0 %v1380
      %v1509 = vpop.f32.mrf.mxu0
      %v1510 = vadd.f32 0.0, %v1509
      %v1511 = vpop.f32.mrf.mxu0
      %v1512 = vpop.f32.mrf.mxu0
      %v1513 = vadd.f32 0.0, %v1512
      %v1514 = vpop.f32.mrf.mxu0
      %1515 = vmatprep.mubr.bf16.mxu0 0
      %1516 = vmatmul.mubr.bf16.gmra.mxu0 %v1383
      %v1517 = vpop.f32.mrf.mxu0
      %v1518 = vadd.f32 0.0, %v1517
      %v1519 = vpop.f32.mrf.mxu0
      %v1520 = vpop.f32.mrf.mxu0
      %v1521 = vadd.f32 0.0, %v1520
      %v1522 = vpop.f32.mrf.mxu0
      %1523 = vmatprep.mubr.bf16.mxu0 0
      %1524 = vmatmul.mubr.bf16.gmra.mxu0 %v1386
      %v1525 = vpop.f32.mrf.mxu0
      %v1526 = vadd.f32 0.0, %v1525
      %v1527 = vpop.f32.mrf.mxu0
      %v1528 = vpop.f32.mrf.mxu0
      %v1529 = vadd.f32 0.0, %v1528
      %v1530 = vpop.f32.mrf.mxu0
      %1531 = vmatprep.mubr.bf16.mxu0 0
      %1532 = vmatmul.mubr.bf16.gmra.mxu0 %v1389
      %v1533 = vpop.f32.mrf.mxu0
      %v1534 = vadd.f32 0.0, %v1533
      %v1535 = vpop.f32.mrf.mxu0
      %v1536 = vpop.f32.mrf.mxu0
      %v1537 = vadd.f32 0.0, %v1536
      %v1538 = vpop.f32.mrf.mxu0
      %1539 = vmatprep.mubr.bf16.mxu0 0
      %1540 = vmatmul.mubr.bf16.gmra.mxu0 %v1392
      %v1541 = vpop.f32.mrf.mxu0
      %v1542 = vadd.f32 0.0, %v1541
      %v1543 = vpop.f32.mrf.mxu0
      %v1544 = vpop.f32.mrf.mxu0
      %v1545 = vadd.f32 0.0, %v1544
      %v1546 = vpop.f32.mrf.mxu0
      %1547 = vmatprep.mubr.bf16.mxu0 0
      %1548 = vmatmul.mubr.bf16.gmra.mxu0 %v1395
      %v1549 = vpop.f32.mrf.mxu0
      %v1550 = vadd.f32 0.0, %v1549
      %v1551 = vpop.f32.mrf.mxu0
      %v1552 = vpop.f32.mrf.mxu0
      %v1553 = vadd.f32 0.0, %v1552
      %v1554 = vpop.f32.mrf.mxu0
      %1555 = vmatprep.mubr.bf16.mxu0 0
      %1556 = vmatmul.mubr.bf16.gmra.mxu0 %v1398
      %v1557 = vpop.f32.mrf.mxu0
      %v1558 = vadd.f32 0.0, %v1557
      %v1559 = vpop.f32.mrf.mxu0
      %v1560 = vpop.f32.mrf.mxu0
      %v1561 = vadd.f32 0.0, %v1560
      %v1562 = vpop.f32.mrf.mxu0
      %1563 = vdwg.mxu0
      %v1564 = vlaneseq
      %v1565 = vshrl.u32 %v1564, 7
      %v1566 = vsub.s32 0, %v1565
      %v1567 = vrot.slane %v1141, %v1566
      %v1569 = vadd.f32 %v1438, %v1567
      %v1570 = vadd.f32 %v1441, %v1567
      %v1571 = vadd.f32 %v1446, %v1567
      %v1572 = vadd.f32 %v1449, %v1567
      %v1573 = vadd.f32 %v1454, %v1567
      %v1574 = vadd.f32 %v1457, %v1567
      %v1575 = vadd.f32 %v1462, %v1567
      %v1576 = vadd.f32 %v1465, %v1567
      %v1577 = vadd.f32 %v1470, %v1567
      %v1578 = vadd.f32 %v1473, %v1567
      %v1579 = vadd.f32 %v1478, %v1567
      %v1580 = vadd.f32 %v1481, %v1567
      %v1581 = vadd.f32 %v1486, %v1567
      %v1582 = vadd.f32 %v1489, %v1567
      %v1583 = vadd.f32 %v1494, %v1567
      %v1584 = vadd.f32 %v1497, %v1567
      %v1585 = vadd.f32 %v1502, %v1567
      %v1586 = vadd.f32 %v1505, %v1567
      %v1587 = vadd.f32 %v1510, %v1567
      %v1588 = vadd.f32 %v1513, %v1567
      %v1589 = vadd.f32 %v1518, %v1567
      %v1590 = vadd.f32 %v1521, %v1567
      %v1591 = vadd.f32 %v1526, %v1567
      %v1592 = vadd.f32 %v1529, %v1567
      %v1593 = vadd.f32 %v1534, %v1567
      %v1594 = vadd.f32 %v1537, %v1567
      %v1595 = vadd.f32 %v1542, %v1567
      %v1596 = vadd.f32 %v1545, %v1567
      %v1597 = vadd.f32 %v1550, %v1567
      %v1598 = vadd.f32 %v1553, %v1567
      %v1599 = vadd.f32 %v1558, %v1567
      %v1600 = vadd.f32 %v1561, %v1567
      %v1601 = vlaneseq
      %v1602 = vshrl.u32 %v1601, 7
      %v1603 = vsub.s32 0, %v1602
      %v1604 = vrot.slane %v1216, %v1603
      %1606 = vrot.lane.b32.xlu0 %v1604, 32
      %v1607 = vpop.permute.xlu0 %1606
      %v1609 = vadd.f32 %v1438, %v1607
      %v1610 = vadd.f32 %v1441, %v1607
      %v1611 = vadd.f32 %v1446, %v1607
      %v1612 = vadd.f32 %v1449, %v1607
      %v1613 = vadd.f32 %v1454, %v1607
      %v1614 = vadd.f32 %v1457, %v1607
      %v1615 = vadd.f32 %v1462, %v1607
      %v1616 = vadd.f32 %v1465, %v1607
      %v1617 = vadd.f32 %v1470, %v1607
      %v1618 = vadd.f32 %v1473, %v1607
      %v1619 = vadd.f32 %v1478, %v1607
      %v1620 = vadd.f32 %v1481, %v1607
      %v1621 = vadd.f32 %v1486, %v1607
      %v1622 = vadd.f32 %v1489, %v1607
      %v1623 = vadd.f32 %v1494, %v1607
      %v1624 = vadd.f32 %v1497, %v1607
      %v1625 = vadd.f32 %v1502, %v1607
      %v1626 = vadd.f32 %v1505, %v1607
      %v1627 = vadd.f32 %v1510, %v1607
      %v1628 = vadd.f32 %v1513, %v1607
      %v1629 = vadd.f32 %v1518, %v1607
      %v1630 = vadd.f32 %v1521, %v1607
      %v1631 = vadd.f32 %v1526, %v1607
      %v1632 = vadd.f32 %v1529, %v1607
      %v1633 = vadd.f32 %v1534, %v1607
      %v1634 = vadd.f32 %v1537, %v1607
      %v1635 = vadd.f32 %v1542, %v1607
      %v1636 = vadd.f32 %v1545, %v1607
      %v1637 = vadd.f32 %v1550, %v1607
      %v1638 = vadd.f32 %v1553, %v1607
      %v1639 = vadd.f32 %v1558, %v1607
      %v1640 = vadd.f32 %v1561, %v1607
      %v1641 = vpack.c.bf16 %v1610, %v1609
      %v1642 = vpack.c.bf16 %v1612, %v1611
      %v1643 = vpack.c.bf16 %v1614, %v1613
      %v1644 = vpack.c.bf16 %v1616, %v1615
      %v1645 = vpack.c.bf16 %v1618, %v1617
      %v1646 = vpack.c.bf16 %v1620, %v1619
      %v1647 = vpack.c.bf16 %v1622, %v1621
      %v1648 = vpack.c.bf16 %v1624, %v1623
      %v1649 = vpack.c.bf16 %v1626, %v1625
      %v1650 = vpack.c.bf16 %v1628, %v1627
      %v1651 = vpack.c.bf16 %v1630, %v1629
      %v1652 = vpack.c.bf16 %v1632, %v1631
      %v1653 = vpack.c.bf16 %v1634, %v1633
      %v1654 = vpack.c.bf16 %v1636, %v1635
      %v1655 = vpack.c.bf16 %v1638, %v1637
      %v1656 = vpack.c.bf16 %v1640, %v1639
      %1673 = vrot.lane.b32.xlu0 %v1641, 96
      %v1674 = vpop.permute.xlu0 %1673
      %1675 = vrot.lane.b32.xlu0 %v1642, 96
      %v1676 = vpop.permute.xlu0 %1675
      %1677 = vrot.lane.b32.xlu0 %v1643, 96
      %v1678 = vpop.permute.xlu0 %1677
      %1679 = vrot.lane.b32.xlu0 %v1644, 96
      %v1680 = vpop.permute.xlu0 %1679
      %1681 = vrot.lane.b32.xlu0 %v1645, 96
      %v1682 = vpop.permute.xlu0 %1681
      %1683 = vrot.lane.b32.xlu0 %v1646, 96
      %v1684 = vpop.permute.xlu0 %1683
      %1685 = vrot.lane.b32.xlu0 %v1647, 96
      %v1686 = vpop.permute.xlu0 %1685
      %1687 = vrot.lane.b32.xlu0 %v1648, 96
      %v1688 = vpop.permute.xlu0 %1687
      %1689 = vrot.lane.b32.xlu0 %v1649, 96
      %v1690 = vpop.permute.xlu0 %1689
      %1691 = vrot.lane.b32.xlu0 %v1650, 96
      %v1692 = vpop.permute.xlu0 %1691
      %1693 = vrot.lane.b32.xlu0 %v1651, 96
      %v1694 = vpop.permute.xlu0 %1693
      %1695 = vrot.lane.b32.xlu0 %v1652, 96
      %v1696 = vpop.permute.xlu0 %1695
      %1697 = vrot.lane.b32.xlu0 %v1653, 96
      %v1698 = vpop.permute.xlu0 %1697
      %1699 = vrot.lane.b32.xlu0 %v1654, 96
      %v1700 = vpop.permute.xlu0 %1699
      %1701 = vrot.lane.b32.xlu0 %v1655, 96
      %v1702 = vpop.permute.xlu0 %1701
      %1703 = vrot.lane.b32.xlu0 %v1656, 96
      %v1704 = vpop.permute.xlu0 %1703
      %v1706 = vsel %vm740, %v1674, 0
      %v1709 = vsel %vm740, %v1676, 0
      %v1712 = vsel %vm740, %v1678, 0
      %v1715 = vsel %vm740, %v1680, 0
      %v1718 = vsel %vm740, %v1682, 0
      %v1721 = vsel %vm740, %v1684, 0
      %v1724 = vsel %vm740, %v1686, 0
      %v1727 = vsel %vm740, %v1688, 0
      %v1730 = vsel %vm740, %v1690, 0
      %v1733 = vsel %vm740, %v1692, 0
      %v1736 = vsel %vm740, %v1694, 0
      %v1739 = vsel %vm740, %v1696, 0
      %v1742 = vsel %vm740, %v1698, 0
      %v1745 = vsel %vm740, %v1700, 0
      %v1748 = vsel %vm740, %v1702, 0
      %v1751 = vsel %vm740, %v1704, 0
      %v1754 = vsel %vm740, %v955, 0
      %1756 = vmatprep.subr.bf16.mxu0 0
      %1757 = vmatpush1.bf16.xpose.msra.mxu0 0
      %1758 = vmatprep.subr.bf16.mxu0 0
      %1759 = vmatpush1.bf16.xpose.msra.mxu0 0
      %1760 = vmatprep.subr.bf16.mxu0 0
      %1761 = vmatpush1.bf16.xpose.msra.mxu0 0
      %1762 = vmatprep.subr.bf16.mxu0 0
      %1763 = vmatpush1.bf16.xpose.msra.mxu0 0
      %1764 = vmatprep.subr.bf16.mxu0 0
      %1765 = vmatpush1.bf16.xpose.msra.mxu0 0
      %1766 = vmatprep.subr.bf16.mxu0 0
      %1767 = vmatpush1.bf16.xpose.msra.mxu0 0
      %1768 = vmatprep.subr.bf16.mxu0 0
      %1769 = vmatpush1.bf16.xpose.msra.mxu0 0
      %1770 = vmatprep.subr.bf16.mxu0 0
      %1771 = vmatpush1.bf16.xpose.msra.mxu0 %v1754
      %1772 = vmatprep.subr.bf16.mxu0 0
      %1773 = vmatpush2.bf16.xpose.msra.mxu0 0
      %1774 = vmatprep.subr.bf16.mxu0 0
      %1775 = vmatpush2.bf16.xpose.msra.mxu0 0
      %1776 = vmatprep.subr.bf16.mxu0 0
      %1777 = vmatpush2.bf16.xpose.msra.mxu0 0
      %1778 = vmatprep.subr.bf16.mxu0 0
      %1779 = vmatpush2.bf16.xpose.msra.mxu0 0
      %1780 = vmatprep.subr.bf16.mxu0 0
      %1781 = vmatpush2.bf16.xpose.msra.mxu0 0
      %1782 = vmatprep.subr.bf16.mxu0 0
      %1783 = vmatpush2.bf16.xpose.msra.mxu0 0
      %1784 = vmatprep.subr.bf16.mxu0 0
      %1785 = vmatpush2.bf16.xpose.msra.mxu0 0
      %1786 = vmatprep.subr.bf16.mxu0 0
      %1787 = vmatpush2.bf16.xpose.msra.mxu0 0
      %1788 = vmatprep.mubr.bf16.mxu0 0
      %1789 = vmatmul.mubr.bf16.gmra.mxu0 %v1706
      %v1790 = vpop.f32.mrf.mxu0
      %v1791 = vadd.f32 0.0, %v1790
      %v1792 = vpop.f32.mrf.mxu0
      %v1793 = vpop.f32.mrf.mxu0
      %v1794 = vadd.f32 0.0, %v1793
      %v1795 = vpop.f32.mrf.mxu0
      %1796 = vmatprep.mubr.bf16.mxu0 0
      %1797 = vmatmul.mubr.bf16.gmra.mxu0 %v1709
      %v1798 = vpop.f32.mrf.mxu0
      %v1799 = vadd.f32 0.0, %v1798
      %v1800 = vpop.f32.mrf.mxu0
      %v1801 = vpop.f32.mrf.mxu0
      %v1802 = vadd.f32 0.0, %v1801
      %v1803 = vpop.f32.mrf.mxu0
      %1804 = vmatprep.mubr.bf16.mxu0 0
      %1805 = vmatmul.mubr.bf16.gmra.mxu0 %v1712
      %v1806 = vpop.f32.mrf.mxu0
      %v1807 = vadd.f32 0.0, %v1806
      %v1808 = vpop.f32.mrf.mxu0
      %v1809 = vpop.f32.mrf.mxu0
      %v1810 = vadd.f32 0.0, %v1809
      %v1811 = vpop.f32.mrf.mxu0
      %1812 = vmatprep.mubr.bf16.mxu0 0
      %1813 = vmatmul.mubr.bf16.gmra.mxu0 %v1715
      %v1814 = vpop.f32.mrf.mxu0
      %v1815 = vadd.f32 0.0, %v1814
      %v1816 = vpop.f32.mrf.mxu0
      %v1817 = vpop.f32.mrf.mxu0
      %v1818 = vadd.f32 0.0, %v1817
      %v1819 = vpop.f32.mrf.mxu0
      %1820 = vmatprep.mubr.bf16.mxu0 0
      %1821 = vmatmul.mubr.bf16.gmra.mxu0 %v1718
      %v1822 = vpop.f32.mrf.mxu0
      %v1823 = vadd.f32 0.0, %v1822
      %v1824 = vpop.f32.mrf.mxu0
      %v1825 = vpop.f32.mrf.mxu0
      %v1826 = vadd.f32 0.0, %v1825
      %v1827 = vpop.f32.mrf.mxu0
      %1828 = vmatprep.mubr.bf16.mxu0 0
      %1829 = vmatmul.mubr.bf16.gmra.mxu0 %v1721
      %v1830 = vpop.f32.mrf.mxu0
      %v1831 = vadd.f32 0.0, %v1830
      %v1832 = vpop.f32.mrf.mxu0
      %v1833 = vpop.f32.mrf.mxu0
      %v1834 = vadd.f32 0.0, %v1833
      %v1835 = vpop.f32.mrf.mxu0
      %1836 = vmatprep.mubr.bf16.mxu0 0
      %1837 = vmatmul.mubr.bf16.gmra.mxu0 %v1724
      %v1838 = vpop.f32.mrf.mxu0
      %v1839 = vadd.f32 0.0, %v1838
      %v1840 = vpop.f32.mrf.mxu0
      %v1841 = vpop.f32.mrf.mxu0
      %v1842 = vadd.f32 0.0, %v1841
      %v1843 = vpop.f32.mrf.mxu0
      %1844 = vmatprep.mubr.bf16.mxu0 0
      %1845 = vmatmul.mubr.bf16.gmra.mxu0 %v1727
      %v1846 = vpop.f32.mrf.mxu0
      %v1847 = vadd.f32 0.0, %v1846
      %v1848 = vpop.f32.mrf.mxu0
      %v1849 = vpop.f32.mrf.mxu0
      %v1850 = vadd.f32 0.0, %v1849
      %v1851 = vpop.f32.mrf.mxu0
      %1852 = vmatprep.mubr.bf16.mxu0 0
      %1853 = vmatmul.mubr.bf16.gmra.mxu0 %v1730
      %v1854 = vpop.f32.mrf.mxu0
      %v1855 = vadd.f32 0.0, %v1854
      %v1856 = vpop.f32.mrf.mxu0
      %v1857 = vpop.f32.mrf.mxu0
      %v1858 = vadd.f32 0.0, %v1857
      %v1859 = vpop.f32.mrf.mxu0
      %1860 = vmatprep.mubr.bf16.mxu0 0
      %1861 = vmatmul.mubr.bf16.gmra.mxu0 %v1733
      %v1862 = vpop.f32.mrf.mxu0
      %v1863 = vadd.f32 0.0, %v1862
      %v1864 = vpop.f32.mrf.mxu0
      %v1865 = vpop.f32.mrf.mxu0
      %v1866 = vadd.f32 0.0, %v1865
      %v1867 = vpop.f32.mrf.mxu0
      %1868 = vmatprep.mubr.bf16.mxu0 0
      %1869 = vmatmul.mubr.bf16.gmra.mxu0 %v1736
      %v1870 = vpop.f32.mrf.mxu0
      %v1871 = vadd.f32 0.0, %v1870
      %v1872 = vpop.f32.mrf.mxu0
      %v1873 = vpop.f32.mrf.mxu0
      %v1874 = vadd.f32 0.0, %v1873
      %v1875 = vpop.f32.mrf.mxu0
      %1876 = vmatprep.mubr.bf16.mxu0 0
      %1877 = vmatmul.mubr.bf16.gmra.mxu0 %v1739
      %v1878 = vpop.f32.mrf.mxu0
      %v1879 = vadd.f32 0.0, %v1878
      %v1880 = vpop.f32.mrf.mxu0
      %v1881 = vpop.f32.mrf.mxu0
      %v1882 = vadd.f32 0.0, %v1881
      %v1883 = vpop.f32.mrf.mxu0
      %1884 = vmatprep.mubr.bf16.mxu0 0
      %1885 = vmatmul.mubr.bf16.gmra.mxu0 %v1742
      %v1886 = vpop.f32.mrf.mxu0
      %v1887 = vadd.f32 0.0, %v1886
      %v1888 = vpop.f32.mrf.mxu0
      %v1889 = vpop.f32.mrf.mxu0
      %v1890 = vadd.f32 0.0, %v1889
      %v1891 = vpop.f32.mrf.mxu0
      %1892 = vmatprep.mubr.bf16.mxu0 0
      %1893 = vmatmul.mubr.bf16.gmra.mxu0 %v1745
      %v1894 = vpop.f32.mrf.mxu0
      %v1895 = vadd.f32 0.0, %v1894
      %v1896 = vpop.f32.mrf.mxu0
      %v1897 = vpop.f32.mrf.mxu0
      %v1898 = vadd.f32 0.0, %v1897
      %v1899 = vpop.f32.mrf.mxu0
      %1900 = vmatprep.mubr.bf16.mxu0 0
      %1901 = vmatmul.mubr.bf16.gmra.mxu0 %v1748
      %v1902 = vpop.f32.mrf.mxu0
      %v1903 = vadd.f32 0.0, %v1902
      %v1904 = vpop.f32.mrf.mxu0
      %v1905 = vpop.f32.mrf.mxu0
      %v1906 = vadd.f32 0.0, %v1905
      %v1907 = vpop.f32.mrf.mxu0
      %1908 = vmatprep.mubr.bf16.mxu0 0
      %1909 = vmatmul.mubr.bf16.gmra.mxu0 %v1751
      %v1910 = vpop.f32.mrf.mxu0
      %v1911 = vadd.f32 0.0, %v1910
      %v1912 = vpop.f32.mrf.mxu0
      %v1913 = vpop.f32.mrf.mxu0
      %v1914 = vadd.f32 0.0, %v1913
      %v1915 = vpop.f32.mrf.mxu0
      %1916 = vdwg.mxu0
      %v1917 = vmul.f32 %v1791, 0.17677669
      %v1918 = vmul.f32 %v1794, 0.17677669
      %v1919 = vmul.f32 %v1799, 0.17677669
      %v1920 = vmul.f32 %v1802, 0.17677669
      %v1921 = vmul.f32 %v1807, 0.17677669
      %v1922 = vmul.f32 %v1810, 0.17677669
      %v1923 = vmul.f32 %v1815, 0.17677669
      %v1924 = vmul.f32 %v1818, 0.17677669
      %v1925 = vmul.f32 %v1823, 0.17677669
      %v1926 = vmul.f32 %v1826, 0.17677669
      %v1927 = vmul.f32 %v1831, 0.17677669
      %v1928 = vmul.f32 %v1834, 0.17677669
      %v1929 = vmul.f32 %v1839, 0.17677669
      %v1930 = vmul.f32 %v1842, 0.17677669
      %v1931 = vmul.f32 %v1847, 0.17677669
      %v1932 = vmul.f32 %v1850, 0.17677669
      %v1933 = vmul.f32 %v1855, 0.17677669
      %v1934 = vmul.f32 %v1858, 0.17677669
      %v1935 = vmul.f32 %v1863, 0.17677669
      %v1936 = vmul.f32 %v1866, 0.17677669
      %v1937 = vmul.f32 %v1871, 0.17677669
      %v1938 = vmul.f32 %v1874, 0.17677669
      %v1939 = vmul.f32 %v1879, 0.17677669
      %v1940 = vmul.f32 %v1882, 0.17677669
      %v1941 = vmul.f32 %v1887, 0.17677669
      %v1942 = vmul.f32 %v1890, 0.17677669
      %v1943 = vmul.f32 %v1895, 0.17677669
      %v1944 = vmul.f32 %v1898, 0.17677669
      %v1945 = vmul.f32 %v1903, 0.17677669
      %v1946 = vmul.f32 %v1906, 0.17677669
      %v1947 = vmul.f32 %v1911, 0.17677669
      %v1948 = vmul.f32 %v1914, 0.17677669
      %vm1949 = vcmask 64512
      %v1950 = vsel %vm1949, %v1917, -inf
      %1951 = vmax.xlane.f32.xlu0 %v1950
      %v1952 = vpop.xlane.xlu0 %1951
      %v1953 = vsel %vm1949, %v1918, -inf
      %1954 = vmax.xlane.f32.xlu0 %v1953
      %v1955 = vpop.xlane.xlu0 %1954
      %v1956 = vsel %vm1949, %v1919, -inf
      %1957 = vmax.xlane.f32.xlu0 %v1956
      %v1958 = vpop.xlane.xlu0 %1957
      %v1959 = vsel %vm1949, %v1920, -inf
      %1960 = vmax.xlane.f32.xlu0 %v1959
      %v1961 = vpop.xlane.xlu0 %1960
      %v1962 = vsel %vm1949, %v1921, -inf
      %1963 = vmax.xlane.f32.xlu0 %v1962
      %v1964 = vpop.xlane.xlu0 %1963
      %v1965 = vsel %vm1949, %v1922, -inf
      %1966 = vmax.xlane.f32.xlu0 %v1965
      %v1967 = vpop.xlane.xlu0 %1966
      %v1968 = vsel %vm1949, %v1923, -inf
      %1969 = vmax.xlane.f32.xlu0 %v1968
      %v1970 = vpop.xlane.xlu0 %1969
      %v1971 = vsel %vm1949, %v1924, -inf
      %1972 = vmax.xlane.f32.xlu0 %v1971
      %v1973 = vpop.xlane.xlu0 %1972
      %v1974 = vsel %vm1949, %v1925, -inf
      %1975 = vmax.xlane.f32.xlu0 %v1974
      %v1976 = vpop.xlane.xlu0 %1975
      %v1977 = vsel %vm1949, %v1926, -inf
      %1978 = vmax.xlane.f32.xlu0 %v1977
      %v1979 = vpop.xlane.xlu0 %1978
      %v1980 = vsel %vm1949, %v1927, -inf
      %1981 = vmax.xlane.f32.xlu0 %v1980
      %v1982 = vpop.xlane.xlu0 %1981
      %v1983 = vsel %vm1949, %v1928, -inf
      %1984 = vmax.xlane.f32.xlu0 %v1983
      %v1985 = vpop.xlane.xlu0 %1984
      %v1986 = vsel %vm1949, %v1929, -inf
      %1987 = vmax.xlane.f32.xlu0 %v1986
      %v1988 = vpop.xlane.xlu0 %1987
      %v1989 = vsel %vm1949, %v1930, -inf
      %1990 = vmax.xlane.f32.xlu0 %v1989
      %v1991 = vpop.xlane.xlu0 %1990
      %v1992 = vsel %vm1949, %v1931, -inf
      %1993 = vmax.xlane.f32.xlu0 %v1992
      %v1994 = vpop.xlane.xlu0 %1993
      %v1995 = vsel %vm1949, %v1932, -inf
      %1996 = vmax.xlane.f32.xlu0 %v1995
      %v1997 = vpop.xlane.xlu0 %1996
      %v1998 = vsel %vm1949, %v1933, -inf
      %1999 = vmax.xlane.f32.xlu0 %v1998
      %v2000 = vpop.xlane.xlu0 %1999
      %v2001 = vsel %vm1949, %v1934, -inf
      %2002 = vmax.xlane.f32.xlu0 %v2001
      %v2003 = vpop.xlane.xlu0 %2002
      %v2004 = vsel %vm1949, %v1935, -inf
      %2005 = vmax.xlane.f32.xlu0 %v2004
      %v2006 = vpop.xlane.xlu0 %2005
      %v2007 = vsel %vm1949, %v1936, -inf
      %2008 = vmax.xlane.f32.xlu0 %v2007
      %v2009 = vpop.xlane.xlu0 %2008
      %v2010 = vsel %vm1949, %v1937, -inf
      %2011 = vmax.xlane.f32.xlu0 %v2010
      %v2012 = vpop.xlane.xlu0 %2011
      %v2013 = vsel %vm1949, %v1938, -inf
      %2014 = vmax.xlane.f32.xlu0 %v2013
      %v2015 = vpop.xlane.xlu0 %2014
      %v2016 = vsel %vm1949, %v1939, -inf
      %2017 = vmax.xlane.f32.xlu0 %v2016
      %v2018 = vpop.xlane.xlu0 %2017
      %v2019 = vsel %vm1949, %v1940, -inf
      %2020 = vmax.xlane.f32.xlu0 %v2019
      %v2021 = vpop.xlane.xlu0 %2020
      %v2022 = vsel %vm1949, %v1941, -inf
      %2023 = vmax.xlane.f32.xlu0 %v2022
      %v2024 = vpop.xlane.xlu0 %2023
      %v2025 = vsel %vm1949, %v1942, -inf
      %2026 = vmax.xlane.f32.xlu0 %v2025
      %v2027 = vpop.xlane.xlu0 %2026
      %v2028 = vsel %vm1949, %v1943, -inf
      %2029 = vmax.xlane.f32.xlu0 %v2028
      %v2030 = vpop.xlane.xlu0 %2029
      %v2031 = vsel %vm1949, %v1944, -inf
      %2032 = vmax.xlane.f32.xlu0 %v2031
      %v2033 = vpop.xlane.xlu0 %2032
      %v2034 = vsel %vm1949, %v1945, -inf
      %2035 = vmax.xlane.f32.xlu0 %v2034
      %v2036 = vpop.xlane.xlu0 %2035
      %v2037 = vsel %vm1949, %v1946, -inf
      %2038 = vmax.xlane.f32.xlu0 %v2037
      %v2039 = vpop.xlane.xlu0 %2038
      %v2040 = vsel %vm1949, %v1947, -inf
      %2041 = vmax.xlane.f32.xlu0 %v2040
      %v2042 = vpop.xlane.xlu0 %2041
      %v2043 = vsel %vm1949, %v1948, -inf
      %2044 = vmax.xlane.f32.xlu0 %v2043
      %v2045 = vpop.xlane.xlu0 %2044
      %v2046 = vsub.f32 %v1917, %v1952
      %v2047 = vsub.f32 %v1918, %v1955
      %v2048 = vsub.f32 %v1919, %v1958
      %v2049 = vsub.f32 %v1920, %v1961
      %v2050 = vsub.f32 %v1921, %v1964
      %v2051 = vsub.f32 %v1922, %v1967
      %v2052 = vsub.f32 %v1923, %v1970
      %v2053 = vsub.f32 %v1924, %v1973
      %v2054 = vsub.f32 %v1925, %v1976
      %v2055 = vsub.f32 %v1926, %v1979
      %v2056 = vsub.f32 %v1927, %v1982
      %v2057 = vsub.f32 %v1928, %v1985
      %v2058 = vsub.f32 %v1929, %v1988
      %v2059 = vsub.f32 %v1930, %v1991
      %v2060 = vsub.f32 %v1931, %v1994
      %v2061 = vsub.f32 %v1932, %v1997
      %v2062 = vsub.f32 %v1933, %v2000
      %v2063 = vsub.f32 %v1934, %v2003
      %v2064 = vsub.f32 %v1935, %v2006
      %v2065 = vsub.f32 %v1936, %v2009
      %v2066 = vsub.f32 %v1937, %v2012
      %v2067 = vsub.f32 %v1938, %v2015
      %v2068 = vsub.f32 %v1939, %v2018
      %v2069 = vsub.f32 %v1940, %v2021
      %v2070 = vsub.f32 %v1941, %v2024
      %v2071 = vsub.f32 %v1942, %v2027
      %v2072 = vsub.f32 %v1943, %v2030
      %v2073 = vsub.f32 %v1944, %v2033
      %v2074 = vsub.f32 %v1945, %v2036
      %v2075 = vsub.f32 %v1946, %v2039
      %v2076 = vsub.f32 %v1947, %v2042
      %v2077 = vsub.f32 %v1948, %v2045
      %v2078 = vmul.f32 %v2046, 1.442695
      %v2079 = vpow.pop %v2078
      %v2080 = vmul.f32 %v2047, 1.442695
      %v2081 = vpow.pop %v2080
      %v2082 = vmul.f32 %v2048, 1.442695
      %v2083 = vpow.pop %v2082
      %v2084 = vmul.f32 %v2049, 1.442695
      %v2085 = vpow.pop %v2084
      %v2086 = vmul.f32 %v2050, 1.442695
      %v2087 = vpow.pop %v2086
      %v2088 = vmul.f32 %v2051, 1.442695
      %v2089 = vpow.pop %v2088
      %v2090 = vmul.f32 %v2052, 1.442695
      %v2091 = vpow.pop %v2090
      %v2092 = vmul.f32 %v2053, 1.442695
      %v2093 = vpow.pop %v2092
      %v2094 = vmul.f32 %v2054, 1.442695
      %v2095 = vpow.pop %v2094
      %v2096 = vmul.f32 %v2055, 1.442695
      %v2097 = vpow.pop %v2096
      %v2098 = vmul.f32 %v2056, 1.442695
      %v2099 = vpow.pop %v2098
      %v2100 = vmul.f32 %v2057, 1.442695
      %v2101 = vpow.pop %v2100
      %v2102 = vmul.f32 %v2058, 1.442695
      %v2103 = vpow.pop %v2102
      %v2104 = vmul.f32 %v2059, 1.442695
      %v2105 = vpow.pop %v2104
      %v2106 = vmul.f32 %v2060, 1.442695
      %v2107 = vpow.pop %v2106
      %v2108 = vmul.f32 %v2061, 1.442695
      %v2109 = vpow.pop %v2108
      %v2110 = vmul.f32 %v2062, 1.442695
      %v2111 = vpow.pop %v2110
      %v2112 = vmul.f32 %v2063, 1.442695
      %v2113 = vpow.pop %v2112
      %v2114 = vmul.f32 %v2064, 1.442695
      %v2115 = vpow.pop %v2114
      %v2116 = vmul.f32 %v2065, 1.442695
      %v2117 = vpow.pop %v2116
      %v2118 = vmul.f32 %v2066, 1.442695
      %v2119 = vpow.pop %v2118
      %v2120 = vmul.f32 %v2067, 1.442695
      %v2121 = vpow.pop %v2120
      %v2122 = vmul.f32 %v2068, 1.442695
      %v2123 = vpow.pop %v2122
      %v2124 = vmul.f32 %v2069, 1.442695
      %v2125 = vpow.pop %v2124
      %v2126 = vmul.f32 %v2070, 1.442695
      %v2127 = vpow.pop %v2126
      %v2128 = vmul.f32 %v2071, 1.442695
      %v2129 = vpow.pop %v2128
      %v2130 = vmul.f32 %v2072, 1.442695
      %v2131 = vpow.pop %v2130
      %v2132 = vmul.f32 %v2073, 1.442695
      %v2133 = vpow.pop %v2132
      %v2134 = vmul.f32 %v2074, 1.442695
      %v2135 = vpow.pop %v2134
      %v2136 = vmul.f32 %v2075, 1.442695
      %v2137 = vpow.pop %v2136
      %v2138 = vmul.f32 %v2076, 1.442695
      %v2139 = vpow.pop %v2138
      %v2140 = vmul.f32 %v2077, 1.442695
      %v2141 = vpow.pop %v2140
      %v2142 = vsel %vm1949, %v2079, 0.0
      %2143 = vadd.xlane.f32.xlu0 %v2142
      %v2144 = vpop.xlane.xlu0 %2143
      %v2145 = vsel %vm1949, %v2081, 0.0
      %2146 = vadd.xlane.f32.xlu0 %v2145
      %v2147 = vpop.xlane.xlu0 %2146
      %v2148 = vsel %vm1949, %v2083, 0.0
      %2149 = vadd.xlane.f32.xlu0 %v2148
      %v2150 = vpop.xlane.xlu0 %2149
      %v2151 = vsel %vm1949, %v2085, 0.0
      %2152 = vadd.xlane.f32.xlu0 %v2151
      %v2153 = vpop.xlane.xlu0 %2152
      %v2154 = vsel %vm1949, %v2087, 0.0
      %2155 = vadd.xlane.f32.xlu0 %v2154
      %v2156 = vpop.xlane.xlu0 %2155
      %v2157 = vsel %vm1949, %v2089, 0.0
      %2158 = vadd.xlane.f32.xlu0 %v2157
      %v2159 = vpop.xlane.xlu0 %2158
      %v2160 = vsel %vm1949, %v2091, 0.0
      %2161 = vadd.xlane.f32.xlu0 %v2160
      %v2162 = vpop.xlane.xlu0 %2161
      %v2163 = vsel %vm1949, %v2093, 0.0
      %2164 = vadd.xlane.f32.xlu0 %v2163
      %v2165 = vpop.xlane.xlu0 %2164
      %v2166 = vsel %vm1949, %v2095, 0.0
      %2167 = vadd.xlane.f32.xlu0 %v2166
      %v2168 = vpop.xlane.xlu0 %2167
      %v2169 = vsel %vm1949, %v2097, 0.0
      %2170 = vadd.xlane.f32.xlu0 %v2169
      %v2171 = vpop.xlane.xlu0 %2170
      %v2172 = vsel %vm1949, %v2099, 0.0
      %2173 = vadd.xlane.f32.xlu0 %v2172
      %v2174 = vpop.xlane.xlu0 %2173
      %v2175 = vsel %vm1949, %v2101, 0.0
      %2176 = vadd.xlane.f32.xlu0 %v2175
      %v2177 = vpop.xlane.xlu0 %2176
      %v2178 = vsel %vm1949, %v2103, 0.0
      %2179 = vadd.xlane.f32.xlu0 %v2178
      %v2180 = vpop.xlane.xlu0 %2179
      %v2181 = vsel %vm1949, %v2105, 0.0
      %2182 = vadd.xlane.f32.xlu0 %v2181
      %v2183 = vpop.xlane.xlu0 %2182
      %v2184 = vsel %vm1949, %v2107, 0.0
      %2185 = vadd.xlane.f32.xlu0 %v2184
      %v2186 = vpop.xlane.xlu0 %2185
      %v2187 = vsel %vm1949, %v2109, 0.0
      %2188 = vadd.xlane.f32.xlu0 %v2187
      %v2189 = vpop.xlane.xlu0 %2188
      %v2190 = vsel %vm1949, %v2111, 0.0
      %2191 = vadd.xlane.f32.xlu0 %v2190
      %v2192 = vpop.xlane.xlu0 %2191
      %v2193 = vsel %vm1949, %v2113, 0.0
      %2194 = vadd.xlane.f32.xlu0 %v2193
      %v2195 = vpop.xlane.xlu0 %2194
      %v2196 = vsel %vm1949, %v2115, 0.0
      %2197 = vadd.xlane.f32.xlu0 %v2196
      %v2198 = vpop.xlane.xlu0 %2197
      %v2199 = vsel %vm1949, %v2117, 0.0
      %2200 = vadd.xlane.f32.xlu0 %v2199
      %v2201 = vpop.xlane.xlu0 %2200
      %v2202 = vsel %vm1949, %v2119, 0.0
      %2203 = vadd.xlane.f32.xlu0 %v2202
      %v2204 = vpop.xlane.xlu0 %2203
      %v2205 = vsel %vm1949, %v2121, 0.0
      %2206 = vadd.xlane.f32.xlu0 %v2205
      %v2207 = vpop.xlane.xlu0 %2206
      %v2208 = vsel %vm1949, %v2123, 0.0
      %2209 = vadd.xlane.f32.xlu0 %v2208
      %v2210 = vpop.xlane.xlu0 %2209
      %v2211 = vsel %vm1949, %v2125, 0.0
      %2212 = vadd.xlane.f32.xlu0 %v2211
      %v2213 = vpop.xlane.xlu0 %2212
      %v2214 = vsel %vm1949, %v2127, 0.0
      %2215 = vadd.xlane.f32.xlu0 %v2214
      %v2216 = vpop.xlane.xlu0 %2215
      %v2217 = vsel %vm1949, %v2129, 0.0
      %2218 = vadd.xlane.f32.xlu0 %v2217
      %v2219 = vpop.xlane.xlu0 %2218
      %v2220 = vsel %vm1949, %v2131, 0.0
      %2221 = vadd.xlane.f32.xlu0 %v2220
      %v2222 = vpop.xlane.xlu0 %2221
      %v2223 = vsel %vm1949, %v2133, 0.0
      %2224 = vadd.xlane.f32.xlu0 %v2223
      %v2225 = vpop.xlane.xlu0 %2224
      %v2226 = vsel %vm1949, %v2135, 0.0
      %2227 = vadd.xlane.f32.xlu0 %v2226
      %v2228 = vpop.xlane.xlu0 %2227
      %v2229 = vsel %vm1949, %v2137, 0.0
      %2230 = vadd.xlane.f32.xlu0 %v2229
      %v2231 = vpop.xlane.xlu0 %2230
      %v2232 = vsel %vm1949, %v2139, 0.0
      %2233 = vadd.xlane.f32.xlu0 %v2232
      %v2234 = vpop.xlane.xlu0 %2233
      %v2235 = vsel %vm1949, %v2141, 0.0
      %2236 = vadd.xlane.f32.xlu0 %v2235
      %v2237 = vpop.xlane.xlu0 %2236
      %v2238 = vrcp.pop %v2144
      %v2239 = vrcp.pop %v2147
      %v2240 = vrcp.pop %v2150
      %v2241 = vrcp.pop %v2153
      %v2242 = vrcp.pop %v2156
      %v2243 = vrcp.pop %v2159
      %v2244 = vrcp.pop %v2162
      %v2245 = vrcp.pop %v2165
      %v2246 = vrcp.pop %v2168
      %v2247 = vrcp.pop %v2171
      %v2248 = vrcp.pop %v2174
      %v2249 = vrcp.pop %v2177
      %v2250 = vrcp.pop %v2180
      %v2251 = vrcp.pop %v2183
      %v2252 = vrcp.pop %v2186
      %v2253 = vrcp.pop %v2189
      %v2254 = vrcp.pop %v2192
      %v2255 = vrcp.pop %v2195
      %v2256 = vrcp.pop %v2198
      %v2257 = vrcp.pop %v2201
      %v2258 = vrcp.pop %v2204
      %v2259 = vrcp.pop %v2207
      %v2260 = vrcp.pop %v2210
      %v2261 = vrcp.pop %v2213
      %v2262 = vrcp.pop %v2216
      %v2263 = vrcp.pop %v2219
      %v2264 = vrcp.pop %v2222
      %v2265 = vrcp.pop %v2225
      %v2266 = vrcp.pop %v2228
      %v2267 = vrcp.pop %v2231
      %v2268 = vrcp.pop %v2234
      %v2269 = vrcp.pop %v2237
      %v2270 = vmul.f32 %v2079, %v2238
      %v2271 = vmul.f32 %v2081, %v2239
      %v2272 = vmul.f32 %v2083, %v2240
      %v2273 = vmul.f32 %v2085, %v2241
      %v2274 = vmul.f32 %v2087, %v2242
      %v2275 = vmul.f32 %v2089, %v2243
      %v2276 = vmul.f32 %v2091, %v2244
      %v2277 = vmul.f32 %v2093, %v2245
      %v2278 = vmul.f32 %v2095, %v2246
      %v2279 = vmul.f32 %v2097, %v2247
      %v2280 = vmul.f32 %v2099, %v2248
      %v2281 = vmul.f32 %v2101, %v2249
      %v2282 = vmul.f32 %v2103, %v2250
      %v2283 = vmul.f32 %v2105, %v2251
      %v2284 = vmul.f32 %v2107, %v2252
      %v2285 = vmul.f32 %v2109, %v2253
      %v2286 = vmul.f32 %v2111, %v2254
      %v2287 = vmul.f32 %v2113, %v2255
      %v2288 = vmul.f32 %v2115, %v2256
      %v2289 = vmul.f32 %v2117, %v2257
      %v2290 = vmul.f32 %v2119, %v2258
      %v2291 = vmul.f32 %v2121, %v2259
      %v2292 = vmul.f32 %v2123, %v2260
      %v2293 = vmul.f32 %v2125, %v2261
      %v2294 = vmul.f32 %v2127, %v2262
      %v2295 = vmul.f32 %v2129, %v2263
      %v2296 = vmul.f32 %v2131, %v2264
      %v2297 = vmul.f32 %v2133, %v2265
      %v2298 = vmul.f32 %v2135, %v2266
      %v2299 = vmul.f32 %v2137, %v2267
      %v2300 = vmul.f32 %v2139, %v2268
      %v2301 = vmul.f32 %v2141, %v2269
      %vm2302 = vcmask 97344
      %v2303 = vsel %vm2302, %v1917, -inf
      %2304 = vmax.xlane.f32.xlu0 %v2303
      %v2305 = vpop.xlane.xlu0 %2304
      %v2306 = vsel %vm2302, %v1918, -inf
      %2307 = vmax.xlane.f32.xlu0 %v2306
      %v2308 = vpop.xlane.xlu0 %2307
      %v2309 = vsel %vm2302, %v1919, -inf
      %2310 = vmax.xlane.f32.xlu0 %v2309
      %v2311 = vpop.xlane.xlu0 %2310
      %v2312 = vsel %vm2302, %v1920, -inf
      %2313 = vmax.xlane.f32.xlu0 %v2312
      %v2314 = vpop.xlane.xlu0 %2313
      %v2315 = vsel %vm2302, %v1921, -inf
      %2316 = vmax.xlane.f32.xlu0 %v2315
      %v2317 = vpop.xlane.xlu0 %2316
      %v2318 = vsel %vm2302, %v1922, -inf
      %2319 = vmax.xlane.f32.xlu0 %v2318
      %v2320 = vpop.xlane.xlu0 %2319
      %v2321 = vsel %vm2302, %v1923, -inf
      %2322 = vmax.xlane.f32.xlu0 %v2321
      %v2323 = vpop.xlane.xlu0 %2322
      %v2324 = vsel %vm2302, %v1924, -inf
      %2325 = vmax.xlane.f32.xlu0 %v2324
      %v2326 = vpop.xlane.xlu0 %2325
      %v2327 = vsel %vm2302, %v1925, -inf
      %2328 = vmax.xlane.f32.xlu0 %v2327
      %v2329 = vpop.xlane.xlu0 %2328
      %v2330 = vsel %vm2302, %v1926, -inf
      %2331 = vmax.xlane.f32.xlu0 %v2330
      %v2332 = vpop.xlane.xlu0 %2331
      %v2333 = vsel %vm2302, %v1927, -inf
      %2334 = vmax.xlane.f32.xlu0 %v2333
      %v2335 = vpop.xlane.xlu0 %2334
      %v2336 = vsel %vm2302, %v1928, -inf
      %2337 = vmax.xlane.f32.xlu0 %v2336
      %v2338 = vpop.xlane.xlu0 %2337
      %v2339 = vsel %vm2302, %v1929, -inf
      %2340 = vmax.xlane.f32.xlu0 %v2339
      %v2341 = vpop.xlane.xlu0 %2340
      %v2342 = vsel %vm2302, %v1930, -inf
      %2343 = vmax.xlane.f32.xlu0 %v2342
      %v2344 = vpop.xlane.xlu0 %2343
      %v2345 = vsel %vm2302, %v1931, -inf
      %2346 = vmax.xlane.f32.xlu0 %v2345
      %v2347 = vpop.xlane.xlu0 %2346
      %v2348 = vsel %vm2302, %v1932, -inf
      %2349 = vmax.xlane.f32.xlu0 %v2348
      %v2350 = vpop.xlane.xlu0 %2349
      %v2351 = vsel %vm2302, %v1933, -inf
      %2352 = vmax.xlane.f32.xlu0 %v2351
      %v2353 = vpop.xlane.xlu0 %2352
      %v2354 = vsel %vm2302, %v1934, -inf
      %2355 = vmax.xlane.f32.xlu0 %v2354
      %v2356 = vpop.xlane.xlu0 %2355
      %v2357 = vsel %vm2302, %v1935, -inf
      %2358 = vmax.xlane.f32.xlu0 %v2357
      %v2359 = vpop.xlane.xlu0 %2358
      %v2360 = vsel %vm2302, %v1936, -inf
      %2361 = vmax.xlane.f32.xlu0 %v2360
      %v2362 = vpop.xlane.xlu0 %2361
      %v2363 = vsel %vm2302, %v1937, -inf
      %2364 = vmax.xlane.f32.xlu0 %v2363
      %v2365 = vpop.xlane.xlu0 %2364
      %v2366 = vsel %vm2302, %v1938, -inf
      %2367 = vmax.xlane.f32.xlu0 %v2366
      %v2368 = vpop.xlane.xlu0 %2367
      %v2369 = vsel %vm2302, %v1939, -inf
      %2370 = vmax.xlane.f32.xlu0 %v2369
      %v2371 = vpop.xlane.xlu0 %2370
      %v2372 = vsel %vm2302, %v1940, -inf
      %2373 = vmax.xlane.f32.xlu0 %v2372
      %v2374 = vpop.xlane.xlu0 %2373
      %v2375 = vsel %vm2302, %v1941, -inf
      %2376 = vmax.xlane.f32.xlu0 %v2375
      %v2377 = vpop.xlane.xlu0 %2376
      %v2378 = vsel %vm2302, %v1942, -inf
      %2379 = vmax.xlane.f32.xlu0 %v2378
      %v2380 = vpop.xlane.xlu0 %2379
      %v2381 = vsel %vm2302, %v1943, -inf
      %2382 = vmax.xlane.f32.xlu0 %v2381
      %v2383 = vpop.xlane.xlu0 %2382
      %v2384 = vsel %vm2302, %v1944, -inf
      %2385 = vmax.xlane.f32.xlu0 %v2384
      %v2386 = vpop.xlane.xlu0 %2385
      %v2387 = vsel %vm2302, %v1945, -inf
      %2388 = vmax.xlane.f32.xlu0 %v2387
      %v2389 = vpop.xlane.xlu0 %2388
      %v2390 = vsel %vm2302, %v1946, -inf
      %2391 = vmax.xlane.f32.xlu0 %v2390
      %v2392 = vpop.xlane.xlu0 %2391
      %v2393 = vsel %vm2302, %v1947, -inf
      %2394 = vmax.xlane.f32.xlu0 %v2393
      %v2395 = vpop.xlane.xlu0 %2394
      %v2396 = vsel %vm2302, %v1948, -inf
      %2397 = vmax.xlane.f32.xlu0 %v2396
      %v2398 = vpop.xlane.xlu0 %2397
      %v2399 = vsub.f32 %v1917, %v2305
      %v2400 = vsub.f32 %v1918, %v2308
      %v2401 = vsub.f32 %v1919, %v2311
      %v2402 = vsub.f32 %v1920, %v2314
      %v2403 = vsub.f32 %v1921, %v2317
      %v2404 = vsub.f32 %v1922, %v2320
      %v2405 = vsub.f32 %v1923, %v2323
      %v2406 = vsub.f32 %v1924, %v2326
      %v2407 = vsub.f32 %v1925, %v2329
      %v2408 = vsub.f32 %v1926, %v2332
      %v2409 = vsub.f32 %v1927, %v2335
      %v2410 = vsub.f32 %v1928, %v2338
      %v2411 = vsub.f32 %v1929, %v2341
      %v2412 = vsub.f32 %v1930, %v2344
      %v2413 = vsub.f32 %v1931, %v2347
      %v2414 = vsub.f32 %v1932, %v2350
      %v2415 = vsub.f32 %v1933, %v2353
      %v2416 = vsub.f32 %v1934, %v2356
      %v2417 = vsub.f32 %v1935, %v2359
      %v2418 = vsub.f32 %v1936, %v2362
      %v2419 = vsub.f32 %v1937, %v2365
      %v2420 = vsub.f32 %v1938, %v2368
      %v2421 = vsub.f32 %v1939, %v2371
      %v2422 = vsub.f32 %v1940, %v2374
      %v2423 = vsub.f32 %v1941, %v2377
      %v2424 = vsub.f32 %v1942, %v2380
      %v2425 = vsub.f32 %v1943, %v2383
      %v2426 = vsub.f32 %v1944, %v2386
      %v2427 = vsub.f32 %v1945, %v2389
      %v2428 = vsub.f32 %v1946, %v2392
      %v2429 = vsub.f32 %v1947, %v2395
      %v2430 = vsub.f32 %v1948, %v2398
      %v2431 = vmul.f32 %v2399, 1.442695
      %v2432 = vpow.pop %v2431
      %v2433 = vmul.f32 %v2400, 1.442695
      %v2434 = vpow.pop %v2433
      %v2435 = vmul.f32 %v2401, 1.442695
      %v2436 = vpow.pop %v2435
      %v2437 = vmul.f32 %v2402, 1.442695
      %v2438 = vpow.pop %v2437
      %v2439 = vmul.f32 %v2403, 1.442695
      %v2440 = vpow.pop %v2439
      %v2441 = vmul.f32 %v2404, 1.442695
      %v2442 = vpow.pop %v2441
      %v2443 = vmul.f32 %v2405, 1.442695
      %v2444 = vpow.pop %v2443
      %v2445 = vmul.f32 %v2406, 1.442695
      %v2446 = vpow.pop %v2445
      %v2447 = vmul.f32 %v2407, 1.442695
      %v2448 = vpow.pop %v2447
      %v2449 = vmul.f32 %v2408, 1.442695
      %v2450 = vpow.pop %v2449
      %v2451 = vmul.f32 %v2409, 1.442695
      %v2452 = vpow.pop %v2451
      %v2453 = vmul.f32 %v2410, 1.442695
      %v2454 = vpow.pop %v2453
      %v2455 = vmul.f32 %v2411, 1.442695
      %v2456 = vpow.pop %v2455
      %v2457 = vmul.f32 %v2412, 1.442695
      %v2458 = vpow.pop %v2457
      %v2459 = vmul.f32 %v2413, 1.442695
      %v2460 = vpow.pop %v2459
      %v2461 = vmul.f32 %v2414, 1.442695
      %v2462 = vpow.pop %v2461
      %v2463 = vmul.f32 %v2415, 1.442695
      %v2464 = vpow.pop %v2463
      %v2465 = vmul.f32 %v2416, 1.442695
      %v2466 = vpow.pop %v2465
      %v2467 = vmul.f32 %v2417, 1.442695
      %v2468 = vpow.pop %v2467
      %v2469 = vmul.f32 %v2418, 1.442695
      %v2470 = vpow.pop %v2469
      %v2471 = vmul.f32 %v2419, 1.442695
      %v2472 = vpow.pop %v2471
      %v2473 = vmul.f32 %v2420, 1.442695
      %v2474 = vpow.pop %v2473
      %v2475 = vmul.f32 %v2421, 1.442695
      %v2476 = vpow.pop %v2475
      %v2477 = vmul.f32 %v2422, 1.442695
      %v2478 = vpow.pop %v2477
      %v2479 = vmul.f32 %v2423, 1.442695
      %v2480 = vpow.pop %v2479
      %v2481 = vmul.f32 %v2424, 1.442695
      %v2482 = vpow.pop %v2481
      %v2483 = vmul.f32 %v2425, 1.442695
      %v2484 = vpow.pop %v2483
      %v2485 = vmul.f32 %v2426, 1.442695
      %v2486 = vpow.pop %v2485
      %v2487 = vmul.f32 %v2427, 1.442695
      %v2488 = vpow.pop %v2487
      %v2489 = vmul.f32 %v2428, 1.442695
      %v2490 = vpow.pop %v2489
      %v2491 = vmul.f32 %v2429, 1.442695
      %v2492 = vpow.pop %v2491
      %v2493 = vmul.f32 %v2430, 1.442695
      %v2494 = vpow.pop %v2493
      %2527 = vrot.lane.b32.xlu0 %v2432, 120
      %v2528 = vpop.permute.xlu0 %2527
      %2529 = vrot.lane.b32.xlu0 %v2434, 120
      %v2530 = vpop.permute.xlu0 %2529
      %2531 = vrot.lane.b32.xlu0 %v2436, 120
      %v2532 = vpop.permute.xlu0 %2531
      %2533 = vrot.lane.b32.xlu0 %v2438, 120
      %v2534 = vpop.permute.xlu0 %2533
      %2535 = vrot.lane.b32.xlu0 %v2440, 120
      %v2536 = vpop.permute.xlu0 %2535
      %2537 = vrot.lane.b32.xlu0 %v2442, 120
      %v2538 = vpop.permute.xlu0 %2537
      %2539 = vrot.lane.b32.xlu0 %v2444, 120
      %v2540 = vpop.permute.xlu0 %2539
      %2541 = vrot.lane.b32.xlu0 %v2446, 120
      %v2542 = vpop.permute.xlu0 %2541
      %2543 = vrot.lane.b32.xlu0 %v2448, 120
      %v2544 = vpop.permute.xlu0 %2543
      %2545 = vrot.lane.b32.xlu0 %v2450, 120
      %v2546 = vpop.permute.xlu0 %2545
      %2547 = vrot.lane.b32.xlu0 %v2452, 120
      %v2548 = vpop.permute.xlu0 %2547
      %2549 = vrot.lane.b32.xlu0 %v2454, 120
      %v2550 = vpop.permute.xlu0 %2549
      %2551 = vrot.lane.b32.xlu0 %v2456, 120
      %v2552 = vpop.permute.xlu0 %2551
      %2553 = vrot.lane.b32.xlu0 %v2458, 120
      %v2554 = vpop.permute.xlu0 %2553
      %2555 = vrot.lane.b32.xlu0 %v2460, 120
      %v2556 = vpop.permute.xlu0 %2555
      %2557 = vrot.lane.b32.xlu0 %v2462, 120
      %v2558 = vpop.permute.xlu0 %2557
      %2559 = vrot.lane.b32.xlu0 %v2464, 120
      %v2560 = vpop.permute.xlu0 %2559
      %2561 = vrot.lane.b32.xlu0 %v2466, 120
      %v2562 = vpop.permute.xlu0 %2561
      %2563 = vrot.lane.b32.xlu0 %v2468, 120
      %v2564 = vpop.permute.xlu0 %2563
      %2565 = vrot.lane.b32.xlu0 %v2470, 120
      %v2566 = vpop.permute.xlu0 %2565
      %2567 = vrot.lane.b32.xlu0 %v2472, 120
      %v2568 = vpop.permute.xlu0 %2567
      %2569 = vrot.lane.b32.xlu0 %v2474, 120
      %v2570 = vpop.permute.xlu0 %2569
      %2571 = vrot.lane.b32.xlu0 %v2476, 120
      %v2572 = vpop.permute.xlu0 %2571
      %2573 = vrot.lane.b32.xlu0 %v2478, 120
      %v2574 = vpop.permute.xlu0 %2573
      %2575 = vrot.lane.b32.xlu0 %v2480, 120
      %v2576 = vpop.permute.xlu0 %2575
      %2577 = vrot.lane.b32.xlu0 %v2482, 120
      %v2578 = vpop.permute.xlu0 %2577
      %2579 = vrot.lane.b32.xlu0 %v2484, 120
      %v2580 = vpop.permute.xlu0 %2579
      %2581 = vrot.lane.b32.xlu0 %v2486, 120
      %v2582 = vpop.permute.xlu0 %2581
      %2583 = vrot.lane.b32.xlu0 %v2488, 120
      %v2584 = vpop.permute.xlu0 %2583
      %2585 = vrot.lane.b32.xlu0 %v2490, 120
      %v2586 = vpop.permute.xlu0 %2585
      %2587 = vrot.lane.b32.xlu0 %v2492, 120
      %v2588 = vpop.permute.xlu0 %2587
      %2589 = vrot.lane.b32.xlu0 %v2494, 120
      %v2590 = vpop.permute.xlu0 %2589
      %vm2623 = vcmask 31744
      %v2624 = vsel %vm2623, %v2528, 0.0
      %2625 = vadd.xlane.f32.xlu0 %v2624
      %v2626 = vpop.xlane.xlu0 %2625
      %v2627 = vsel %vm2623, %v2530, 0.0
      %2628 = vadd.xlane.f32.xlu0 %v2627
      %v2629 = vpop.xlane.xlu0 %2628
      %v2630 = vsel %vm2623, %v2532, 0.0
      %2631 = vadd.xlane.f32.xlu0 %v2630
      %v2632 = vpop.xlane.xlu0 %2631
      %v2633 = vsel %vm2623, %v2534, 0.0
      %2634 = vadd.xlane.f32.xlu0 %v2633
      %v2635 = vpop.xlane.xlu0 %2634
      %v2636 = vsel %vm2623, %v2536, 0.0
      %2637 = vadd.xlane.f32.xlu0 %v2636
      %v2638 = vpop.xlane.xlu0 %2637
      %v2639 = vsel %vm2623, %v2538, 0.0
      %2640 = vadd.xlane.f32.xlu0 %v2639
      %v2641 = vpop.xlane.xlu0 %2640
      %v2642 = vsel %vm2623, %v2540, 0.0
      %2643 = vadd.xlane.f32.xlu0 %v2642
      %v2644 = vpop.xlane.xlu0 %2643
      %v2645 = vsel %vm2623, %v2542, 0.0
      %2646 = vadd.xlane.f32.xlu0 %v2645
      %v2647 = vpop.xlane.xlu0 %2646
      %v2648 = vsel %vm2623, %v2544, 0.0
      %2649 = vadd.xlane.f32.xlu0 %v2648
      %v2650 = vpop.xlane.xlu0 %2649
      %v2651 = vsel %vm2623, %v2546, 0.0
      %2652 = vadd.xlane.f32.xlu0 %v2651
      %v2653 = vpop.xlane.xlu0 %2652
      %v2654 = vsel %vm2623, %v2548, 0.0
      %2655 = vadd.xlane.f32.xlu0 %v2654
      %v2656 = vpop.xlane.xlu0 %2655
      %v2657 = vsel %vm2623, %v2550, 0.0
      %2658 = vadd.xlane.f32.xlu0 %v2657
      %v2659 = vpop.xlane.xlu0 %2658
      %v2660 = vsel %vm2623, %v2552, 0.0
      %2661 = vadd.xlane.f32.xlu0 %v2660
      %v2662 = vpop.xlane.xlu0 %2661
      %v2663 = vsel %vm2623, %v2554, 0.0
      %2664 = vadd.xlane.f32.xlu0 %v2663
      %v2665 = vpop.xlane.xlu0 %2664
      %v2666 = vsel %vm2623, %v2556, 0.0
      %2667 = vadd.xlane.f32.xlu0 %v2666
      %v2668 = vpop.xlane.xlu0 %2667
      %v2669 = vsel %vm2623, %v2558, 0.0
      %2670 = vadd.xlane.f32.xlu0 %v2669
      %v2671 = vpop.xlane.xlu0 %2670
      %v2672 = vsel %vm2623, %v2560, 0.0
      %2673 = vadd.xlane.f32.xlu0 %v2672
      %v2674 = vpop.xlane.xlu0 %2673
      %v2675 = vsel %vm2623, %v2562, 0.0
      %2676 = vadd.xlane.f32.xlu0 %v2675
      %v2677 = vpop.xlane.xlu0 %2676
      %v2678 = vsel %vm2623, %v2564, 0.0
      %2679 = vadd.xlane.f32.xlu0 %v2678
      %v2680 = vpop.xlane.xlu0 %2679
      %v2681 = vsel %vm2623, %v2566, 0.0
      %2682 = vadd.xlane.f32.xlu0 %v2681
      %v2683 = vpop.xlane.xlu0 %2682
      %v2684 = vsel %vm2623, %v2568, 0.0
      %2685 = vadd.xlane.f32.xlu0 %v2684
      %v2686 = vpop.xlane.xlu0 %2685
      %v2687 = vsel %vm2623, %v2570, 0.0
      %2688 = vadd.xlane.f32.xlu0 %v2687
      %v2689 = vpop.xlane.xlu0 %2688
      %v2690 = vsel %vm2623, %v2572, 0.0
      %2691 = vadd.xlane.f32.xlu0 %v2690
      %v2692 = vpop.xlane.xlu0 %2691
      %v2693 = vsel %vm2623, %v2574, 0.0
      %2694 = vadd.xlane.f32.xlu0 %v2693
      %v2695 = vpop.xlane.xlu0 %2694
      %v2696 = vsel %vm2623, %v2576, 0.0
      %2697 = vadd.xlane.f32.xlu0 %v2696
      %v2698 = vpop.xlane.xlu0 %2697
      %v2699 = vsel %vm2623, %v2578, 0.0
      %2700 = vadd.xlane.f32.xlu0 %v2699
      %v2701 = vpop.xlane.xlu0 %2700
      %v2702 = vsel %vm2623, %v2580, 0.0
      %2703 = vadd.xlane.f32.xlu0 %v2702
      %v2704 = vpop.xlane.xlu0 %2703
      %v2705 = vsel %vm2623, %v2582, 0.0
      %2706 = vadd.xlane.f32.xlu0 %v2705
      %v2707 = vpop.xlane.xlu0 %2706
      %v2708 = vsel %vm2623, %v2584, 0.0
      %2709 = vadd.xlane.f32.xlu0 %v2708
      %v2710 = vpop.xlane.xlu0 %2709
      %v2711 = vsel %vm2623, %v2586, 0.0
      %2712 = vadd.xlane.f32.xlu0 %v2711
      %v2713 = vpop.xlane.xlu0 %2712
      %v2714 = vsel %vm2623, %v2588, 0.0
      %2715 = vadd.xlane.f32.xlu0 %v2714
      %v2716 = vpop.xlane.xlu0 %2715
      %v2717 = vsel %vm2623, %v2590, 0.0
      %2718 = vadd.xlane.f32.xlu0 %v2717
      %v2719 = vpop.xlane.xlu0 %2718
      %v2720 = vrcp.pop %v2626
      %v2721 = vrcp.pop %v2629
      %v2722 = vrcp.pop %v2632
      %v2723 = vrcp.pop %v2635
      %v2724 = vrcp.pop %v2638
      %v2725 = vrcp.pop %v2641
      %v2726 = vrcp.pop %v2644
      %v2727 = vrcp.pop %v2647
      %v2728 = vrcp.pop %v2650
      %v2729 = vrcp.pop %v2653
      %v2730 = vrcp.pop %v2656
      %v2731 = vrcp.pop %v2659
      %v2732 = vrcp.pop %v2662
      %v2733 = vrcp.pop %v2665
      %v2734 = vrcp.pop %v2668
      %v2735 = vrcp.pop %v2671
      %v2736 = vrcp.pop %v2674
      %v2737 = vrcp.pop %v2677
      %v2738 = vrcp.pop %v2680
      %v2739 = vrcp.pop %v2683
      %v2740 = vrcp.pop %v2686
      %v2741 = vrcp.pop %v2689
      %v2742 = vrcp.pop %v2692
      %v2743 = vrcp.pop %v2695
      %v2744 = vrcp.pop %v2698
      %v2745 = vrcp.pop %v2701
      %v2746 = vrcp.pop %v2704
      %v2747 = vrcp.pop %v2707
      %v2748 = vrcp.pop %v2710
      %v2749 = vrcp.pop %v2713
      %v2750 = vrcp.pop %v2716
      %v2751 = vrcp.pop %v2719
      %v2752 = vmul.f32 %v2432, %v2720
      %v2753 = vmul.f32 %v2434, %v2721
      %v2754 = vmul.f32 %v2436, %v2722
      %v2755 = vmul.f32 %v2438, %v2723
      %v2756 = vmul.f32 %v2440, %v2724
      %v2757 = vmul.f32 %v2442, %v2725
      %v2758 = vmul.f32 %v2444, %v2726
      %v2759 = vmul.f32 %v2446, %v2727
      %v2760 = vmul.f32 %v2448, %v2728
      %v2761 = vmul.f32 %v2450, %v2729
      %v2762 = vmul.f32 %v2452, %v2730
      %v2763 = vmul.f32 %v2454, %v2731
      %v2764 = vmul.f32 %v2456, %v2732
      %v2765 = vmul.f32 %v2458, %v2733
      %v2766 = vmul.f32 %v2460, %v2734
      %v2767 = vmul.f32 %v2462, %v2735
      %v2768 = vmul.f32 %v2464, %v2736
      %v2769 = vmul.f32 %v2466, %v2737
      %v2770 = vmul.f32 %v2468, %v2738
      %v2771 = vmul.f32 %v2470, %v2739
      %v2772 = vmul.f32 %v2472, %v2740
      %v2773 = vmul.f32 %v2474, %v2741
      %v2774 = vmul.f32 %v2476, %v2742
      %v2775 = vmul.f32 %v2478, %v2743
      %v2776 = vmul.f32 %v2480, %v2744
      %v2777 = vmul.f32 %v2482, %v2745
      %v2778 = vmul.f32 %v2484, %v2746
      %v2779 = vmul.f32 %v2486, %v2747
      %v2780 = vmul.f32 %v2488, %v2748
      %v2781 = vmul.f32 %v2490, %v2749
      %v2782 = vmul.f32 %v2492, %v2750
      %v2783 = vmul.f32 %v2494, %v2751
      %v2784 = vsel %vm1949, %v2270, %v2752
      %v2785 = vsel %vm1949, %v2271, %v2753
      %v2786 = vsel %vm1949, %v2272, %v2754
      %v2787 = vsel %vm1949, %v2273, %v2755
      %v2788 = vsel %vm1949, %v2274, %v2756
      %v2789 = vsel %vm1949, %v2275, %v2757
      %v2790 = vsel %vm1949, %v2276, %v2758
      %v2791 = vsel %vm1949, %v2277, %v2759
      %v2792 = vsel %vm1949, %v2278, %v2760
      %v2793 = vsel %vm1949, %v2279, %v2761
      %v2794 = vsel %vm1949, %v2280, %v2762
      %v2795 = vsel %vm1949, %v2281, %v2763
      %v2796 = vsel %vm1949, %v2282, %v2764
      %v2797 = vsel %vm1949, %v2283, %v2765
      %v2798 = vsel %vm1949, %v2284, %v2766
      %v2799 = vsel %vm1949, %v2285, %v2767
      %v2800 = vsel %vm1949, %v2286, %v2768
      %v2801 = vsel %vm1949, %v2287, %v2769
      %v2802 = vsel %vm1949, %v2288, %v2770
      %v2803 = vsel %vm1949, %v2289, %v2771
      %v2804 = vsel %vm1949, %v2290, %v2772
      %v2805 = vsel %vm1949, %v2291, %v2773
      %v2806 = vsel %vm1949, %v2292, %v2774
      %v2807 = vsel %vm1949, %v2293, %v2775
      %v2808 = vsel %vm1949, %v2294, %v2776
      %v2809 = vsel %vm1949, %v2295, %v2777
      %v2810 = vsel %vm1949, %v2296, %v2778
      %v2811 = vsel %vm1949, %v2297, %v2779
      %v2812 = vsel %vm1949, %v2298, %v2780
      %v2813 = vsel %vm1949, %v2299, %v2781
      %v2814 = vsel %vm1949, %v2300, %v2782
      %v2815 = vsel %vm1949, %v2301, %v2783
      %v2816 = vpack.c.bf16 %v2785, %v2784
      %v2817 = vpack.c.bf16 %v2787, %v2786
      %v2818 = vpack.c.bf16 %v2789, %v2788
      %v2819 = vpack.c.bf16 %v2791, %v2790
      %v2820 = vpack.c.bf16 %v2793, %v2792
      %v2821 = vpack.c.bf16 %v2795, %v2794
      %v2822 = vpack.c.bf16 %v2797, %v2796
      %v2823 = vpack.c.bf16 %v2799, %v2798
      %v2824 = vpack.c.bf16 %v2801, %v2800
      %v2825 = vpack.c.bf16 %v2803, %v2802
      %v2826 = vpack.c.bf16 %v2805, %v2804
      %v2827 = vpack.c.bf16 %v2807, %v2806
      %v2828 = vpack.c.bf16 %v2809, %v2808
      %v2829 = vpack.c.bf16 %v2811, %v2810
      %v2830 = vpack.c.bf16 %v2813, %v2812
      %v2831 = vpack.c.bf16 %v2815, %v2814
      %2833 = vrot.lane.b32.xlu0 %v955, 96
      %v2834 = vpop.permute.xlu0 %2833
      %vm2835 = vcmask 97280
      %v2837 = vsel %vm2835, %v2816, 0
      %v2840 = vsel %vm2835, %v2817, 0
      %v2843 = vsel %vm2835, %v2818, 0
      %v2846 = vsel %vm2835, %v2819, 0
      %v2849 = vsel %vm2835, %v2820, 0
      %v2852 = vsel %vm2835, %v2821, 0
      %v2855 = vsel %vm2835, %v2822, 0
      %v2858 = vsel %vm2835, %v2823, 0
      %v2861 = vsel %vm2835, %v2824, 0
      %v2864 = vsel %vm2835, %v2825, 0
      %v2867 = vsel %vm2835, %v2826, 0
      %v2870 = vsel %vm2835, %v2827, 0
      %v2873 = vsel %vm2835, %v2828, 0
      %v2876 = vsel %vm2835, %v2829, 0
      %v2879 = vsel %vm2835, %v2830, 0
      %v2882 = vsel %vm2835, %v2831, 0
      %v2885 = vsel %vm1066, %v2834, 0
      %2887 = vmatprep.subr.bf16.mxu0 0
      %2888 = vmatpush1.bf16.msra.mxu0 0
      %2889 = vmatprep.subr.bf16.mxu0 0
      %2890 = vmatpush1.bf16.msra.mxu0 0
      %2891 = vmatprep.subr.bf16.mxu0 0
      %2892 = vmatpush1.bf16.msra.mxu0 0
      %2893 = vmatprep.subr.bf16.mxu0 0
      %2894 = vmatpush1.bf16.msra.mxu0 0
      %2895 = vmatprep.subr.bf16.mxu0 0
      %2896 = vmatpush1.bf16.msra.mxu0 0
      %2897 = vmatprep.subr.bf16.mxu0 0
      %2898 = vmatpush1.bf16.msra.mxu0 0
      %2899 = vmatprep.subr.bf16.mxu0 0
      %2900 = vmatpush1.bf16.msra.mxu0 0
      %2901 = vmatprep.subr.bf16.mxu0 0
      %2902 = vmatpush1.bf16.msra.mxu0 %v2885
      %2903 = vmatprep.subr.bf16.mxu0 0
      %2904 = vmatpush2.bf16.msra.mxu0 0
      %2905 = vmatprep.subr.bf16.mxu0 0
      %2906 = vmatpush2.bf16.msra.mxu0 0
      %2907 = vmatprep.subr.bf16.mxu0 0
      %2908 = vmatpush2.bf16.msra.mxu0 0
      %2909 = vmatprep.subr.bf16.mxu0 0
      %2910 = vmatpush2.bf16.msra.mxu0 0
      %2911 = vmatprep.subr.bf16.mxu0 0
      %2912 = vmatpush2.bf16.msra.mxu0 0
      %2913 = vmatprep.subr.bf16.mxu0 0
      %2914 = vmatpush2.bf16.msra.mxu0 0
      %2915 = vmatprep.subr.bf16.mxu0 0
      %2916 = vmatpush2.bf16.msra.mxu0 0
      %2917 = vmatprep.subr.bf16.mxu0 0
      %2918 = vmatpush2.bf16.msra.mxu0 0
      %2919 = vmatprep.mubr.bf16.mxu0 0
      %2920 = vmatmul.mubr.bf16.gmra.mxu0 %v2837
      %v2921 = vpop.f32.mrf.mxu0
      %v2922 = vadd.f32 0.0, %v2921
      %v2923 = vpop.f32.mrf.mxu0
      %v2924 = vpop.f32.mrf.mxu0
      %v2925 = vadd.f32 0.0, %v2924
      %v2926 = vpop.f32.mrf.mxu0
      %2927 = vmatprep.mubr.bf16.mxu0 0
      %2928 = vmatmul.mubr.bf16.gmra.mxu0 %v2840
      %v2929 = vpop.f32.mrf.mxu0
      %v2930 = vadd.f32 0.0, %v2929
      %v2931 = vpop.f32.mrf.mxu0
      %v2932 = vpop.f32.mrf.mxu0
      %v2933 = vadd.f32 0.0, %v2932
      %v2934 = vpop.f32.mrf.mxu0
      %2935 = vmatprep.mubr.bf16.mxu0 0
      %2936 = vmatmul.mubr.bf16.gmra.mxu0 %v2843
      %v2937 = vpop.f32.mrf.mxu0
      %v2938 = vadd.f32 0.0, %v2937
      %v2939 = vpop.f32.mrf.mxu0
      %v2940 = vpop.f32.mrf.mxu0
      %v2941 = vadd.f32 0.0, %v2940
      %v2942 = vpop.f32.mrf.mxu0
      %2943 = vmatprep.mubr.bf16.mxu0 0
      %2944 = vmatmul.mubr.bf16.gmra.mxu0 %v2846
      %v2945 = vpop.f32.mrf.mxu0
      %v2946 = vadd.f32 0.0, %v2945
      %v2947 = vpop.f32.mrf.mxu0
      %v2948 = vpop.f32.mrf.mxu0
      %v2949 = vadd.f32 0.0, %v2948
      %v2950 = vpop.f32.mrf.mxu0
      %2951 = vmatprep.mubr.bf16.mxu0 0
      %2952 = vmatmul.mubr.bf16.gmra.mxu0 %v2849
      %v2953 = vpop.f32.mrf.mxu0
      %v2954 = vadd.f32 0.0, %v2953
      %v2955 = vpop.f32.mrf.mxu0
      %v2956 = vpop.f32.mrf.mxu0
      %v2957 = vadd.f32 0.0, %v2956
      %v2958 = vpop.f32.mrf.mxu0
      %2959 = vmatprep.mubr.bf16.mxu0 0
      %2960 = vmatmul.mubr.bf16.gmra.mxu0 %v2852
      %v2961 = vpop.f32.mrf.mxu0
      %v2962 = vadd.f32 0.0, %v2961
      %v2963 = vpop.f32.mrf.mxu0
      %v2964 = vpop.f32.mrf.mxu0
      %v2965 = vadd.f32 0.0, %v2964
      %v2966 = vpop.f32.mrf.mxu0
      %2967 = vmatprep.mubr.bf16.mxu0 0
      %2968 = vmatmul.mubr.bf16.gmra.mxu0 %v2855
      %v2969 = vpop.f32.mrf.mxu0
      %v2970 = vadd.f32 0.0, %v2969
      %v2971 = vpop.f32.mrf.mxu0
      %v2972 = vpop.f32.mrf.mxu0
      %v2973 = vadd.f32 0.0, %v2972
      %v2974 = vpop.f32.mrf.mxu0
      %2975 = vmatprep.mubr.bf16.mxu0 0
      %2976 = vmatmul.mubr.bf16.gmra.mxu0 %v2858
      %v2977 = vpop.f32.mrf.mxu0
      %v2978 = vadd.f32 0.0, %v2977
      %v2979 = vpop.f32.mrf.mxu0
      %v2980 = vpop.f32.mrf.mxu0
      %v2981 = vadd.f32 0.0, %v2980
      %v2982 = vpop.f32.mrf.mxu0
      %2983 = vmatprep.mubr.bf16.mxu0 0
      %2984 = vmatmul.mubr.bf16.gmra.mxu0 %v2861
      %v2985 = vpop.f32.mrf.mxu0
      %v2986 = vadd.f32 0.0, %v2985
      %v2987 = vpop.f32.mrf.mxu0
      %v2988 = vpop.f32.mrf.mxu0
      %v2989 = vadd.f32 0.0, %v2988
      %v2990 = vpop.f32.mrf.mxu0
      %2991 = vmatprep.mubr.bf16.mxu0 0
      %2992 = vmatmul.mubr.bf16.gmra.mxu0 %v2864
      %v2993 = vpop.f32.mrf.mxu0
      %v2994 = vadd.f32 0.0, %v2993
      %v2995 = vpop.f32.mrf.mxu0
      %v2996 = vpop.f32.mrf.mxu0
      %v2997 = vadd.f32 0.0, %v2996
      %v2998 = vpop.f32.mrf.mxu0
      %2999 = vmatprep.mubr.bf16.mxu0 0
      %3000 = vmatmul.mubr.bf16.gmra.mxu0 %v2867
      %v3001 = vpop.f32.mrf.mxu0
      %v3002 = vadd.f32 0.0, %v3001
      %v3003 = vpop.f32.mrf.mxu0
      %v3004 = vpop.f32.mrf.mxu0
      %v3005 = vadd.f32 0.0, %v3004
      %v3006 = vpop.f32.mrf.mxu0
      %3007 = vmatprep.mubr.bf16.mxu0 0
      %3008 = vmatmul.mubr.bf16.gmra.mxu0 %v2870
      %v3009 = vpop.f32.mrf.mxu0
      %v3010 = vadd.f32 0.0, %v3009
      %v3011 = vpop.f32.mrf.mxu0
      %v3012 = vpop.f32.mrf.mxu0
      %v3013 = vadd.f32 0.0, %v3012
      %v3014 = vpop.f32.mrf.mxu0
      %3015 = vmatprep.mubr.bf16.mxu0 0
      %3016 = vmatmul.mubr.bf16.gmra.mxu0 %v2873
      %v3017 = vpop.f32.mrf.mxu0
      %v3018 = vadd.f32 0.0, %v3017
      %v3019 = vpop.f32.mrf.mxu0
      %v3020 = vpop.f32.mrf.mxu0
      %v3021 = vadd.f32 0.0, %v3020
      %v3022 = vpop.f32.mrf.mxu0
      %3023 = vmatprep.mubr.bf16.mxu0 0
      %3024 = vmatmul.mubr.bf16.gmra.mxu0 %v2876
      %v3025 = vpop.f32.mrf.mxu0
      %v3026 = vadd.f32 0.0, %v3025
      %v3027 = vpop.f32.mrf.mxu0
      %v3028 = vpop.f32.mrf.mxu0
      %v3029 = vadd.f32 0.0, %v3028
      %v3030 = vpop.f32.mrf.mxu0
      %3031 = vmatprep.mubr.bf16.mxu0 0
      %3032 = vmatmul.mubr.bf16.gmra.mxu0 %v2879
      %v3033 = vpop.f32.mrf.mxu0
      %v3034 = vadd.f32 0.0, %v3033
      %v3035 = vpop.f32.mrf.mxu0
      %v3036 = vpop.f32.mrf.mxu0
      %v3037 = vadd.f32 0.0, %v3036
      %v3038 = vpop.f32.mrf.mxu0
      %3039 = vmatprep.mubr.bf16.mxu0 0
      %3040 = vmatmul.mubr.bf16.gmra.mxu0 %v2882
      %v3041 = vpop.f32.mrf.mxu0
      %v3042 = vadd.f32 0.0, %v3041
      %v3043 = vpop.f32.mrf.mxu0
      %v3044 = vpop.f32.mrf.mxu0
      %v3045 = vadd.f32 0.0, %v3044
      %v3046 = vpop.f32.mrf.mxu0
      %3047 = vdwg.mxu0
      %v3048 = vpack.c.bf16 %v2925, %v2922
      %v3049 = vpack.c.bf16 %v2933, %v2930
      %v3050 = vpack.c.bf16 %v2941, %v2938
      %v3051 = vpack.c.bf16 %v2949, %v2946
      %v3052 = vpack.c.bf16 %v2957, %v2954
      %v3053 = vpack.c.bf16 %v2965, %v2962
      %v3054 = vpack.c.bf16 %v2973, %v2970
      %v3055 = vpack.c.bf16 %v2981, %v2978
      %v3056 = vpack.c.bf16 %v2989, %v2986
      %v3057 = vpack.c.bf16 %v2997, %v2994
      %v3058 = vpack.c.bf16 %v3005, %v3002
      %v3059 = vpack.c.bf16 %v3013, %v3010
      %v3060 = vpack.c.bf16 %v3021, %v3018
      %v3061 = vpack.c.bf16 %v3029, %v3026
      %v3062 = vpack.c.bf16 %v3037, %v3034
      %v3063 = vpack.c.bf16 %v3045, %v3042
      %v3064 = vld [vmem:[%s18] sm:$0xf]
      %v3065 = vld [vmem:[%s18 + $0x4] sm:$0xf]
      %v3066 = vld [vmem:[%s18 + $0x8] sm:$0xf]
      %v3067 = vld [vmem:[%s18 + $0xc] sm:$0xf]
      %v3072 = vunpack.c.l.b16 %v3064
      %v3073 = vunpack.c.l.b16 %v3065
      %v3074 = vunpack.c.l.b16 %v3066
      %v3075 = vunpack.c.l.b16 %v3067
      %v3076 = vpack.c.b16 %v3073, %v3072
      %v3077 = vpack.c.b16 %v3075, %v3074
      %v3081 = vsel %vm740, %v3048, 0
      %v3084 = vsel %vm740, %v3049, 0
      %v3087 = vsel %vm740, %v3050, 0
      %v3090 = vsel %vm740, %v3051, 0
      %v3093 = vsel %vm740, %v3052, 0
      %v3096 = vsel %vm740, %v3053, 0
      %v3099 = vsel %vm740, %v3054, 0
      %v3102 = vsel %vm740, %v3055, 0
      %v3105 = vsel %vm740, %v3056, 0
      %v3108 = vsel %vm740, %v3057, 0
      %v3111 = vsel %vm740, %v3058, 0
      %v3114 = vsel %vm740, %v3059, 0
      %v3117 = vsel %vm740, %v3060, 0
      %v3120 = vsel %vm740, %v3061, 0
      %v3123 = vsel %vm740, %v3062, 0
      %v3126 = vsel %vm740, %v3063, 0
      %3128 = vmatprep.subr.bf16.mxu0 0
      %3129 = vmatpush1.bf16.msra.mxu0 0
      %3130 = vmatprep.subr.bf16.mxu0 0
      %3131 = vmatpush1.bf16.msra.mxu0 0
      %3132 = vmatprep.subr.bf16.mxu0 0
      %3133 = vmatpush1.bf16.msra.mxu0 0
      %3134 = vmatprep.subr.bf16.mxu0 0
      %3135 = vmatpush1.bf16.msra.mxu0 0
      %3136 = vmatprep.subr.bf16.mxu0 0
      %3137 = vmatpush1.bf16.msra.mxu0 0
      %3138 = vmatprep.subr.bf16.mxu0 0
      %3139 = vmatpush1.bf16.msra.mxu0 0
      %3140 = vmatprep.subr.bf16.mxu0 0
      %3141 = vmatpush1.bf16.msra.mxu0 %v3077
      %3142 = vmatprep.subr.bf16.mxu0 0
      %3143 = vmatpush1.bf16.msra.mxu0 %v3076
      %3144 = vmatprep.subr.bf16.mxu0 0
      %3145 = vmatpush2.bf16.msra.mxu0 0
      %3146 = vmatprep.subr.bf16.mxu0 0
      %3147 = vmatpush2.bf16.msra.mxu0 0
      %3148 = vmatprep.subr.bf16.mxu0 0
      %3149 = vmatpush2.bf16.msra.mxu0 0
      %3150 = vmatprep.subr.bf16.mxu0 0
      %3151 = vmatpush2.bf16.msra.mxu0 0
      %3152 = vmatprep.subr.bf16.mxu0 0
      %3153 = vmatpush2.bf16.msra.mxu0 0
      %3154 = vmatprep.subr.bf16.mxu0 0
      %3155 = vmatpush2.bf16.msra.mxu0 0
      %3156 = vmatprep.subr.bf16.mxu0 0
      %3157 = vmatpush2.bf16.msra.mxu0 0
      %3158 = vmatprep.subr.bf16.mxu0 0
      %3159 = vmatpush2.bf16.msra.mxu0 0
      %3160 = vmatprep.mubr.bf16.mxu0 0
      %3161 = vmatmul.mubr.bf16.gmra.mxu0 %v3081
      %v3162 = vpop.f32.mrf.mxu0
      %v3163 = vadd.f32 0.0, %v3162
      %v3164 = vpop.f32.mrf.mxu0
      %v3165 = vpop.f32.mrf.mxu0
      %v3166 = vadd.f32 0.0, %v3165
      %v3167 = vpop.f32.mrf.mxu0
      %3168 = vmatprep.mubr.bf16.mxu0 0
      %3169 = vmatmul.mubr.bf16.gmra.mxu0 %v3084
      %v3170 = vpop.f32.mrf.mxu0
      %v3171 = vadd.f32 0.0, %v3170
      %v3172 = vpop.f32.mrf.mxu0
      %v3173 = vpop.f32.mrf.mxu0
      %v3174 = vadd.f32 0.0, %v3173
      %v3175 = vpop.f32.mrf.mxu0
      %3176 = vmatprep.mubr.bf16.mxu0 0
      %3177 = vmatmul.mubr.bf16.gmra.mxu0 %v3087
      %v3178 = vpop.f32.mrf.mxu0
      %v3179 = vadd.f32 0.0, %v3178
      %v3180 = vpop.f32.mrf.mxu0
      %v3181 = vpop.f32.mrf.mxu0
      %v3182 = vadd.f32 0.0, %v3181
      %v3183 = vpop.f32.mrf.mxu0
      %3184 = vmatprep.mubr.bf16.mxu0 0
      %3185 = vmatmul.mubr.bf16.gmra.mxu0 %v3090
      %v3186 = vpop.f32.mrf.mxu0
      %v3187 = vadd.f32 0.0, %v3186
      %v3188 = vpop.f32.mrf.mxu0
      %v3189 = vpop.f32.mrf.mxu0
      %v3190 = vadd.f32 0.0, %v3189
      %v3191 = vpop.f32.mrf.mxu0
      %3192 = vmatprep.mubr.bf16.mxu0 0
      %3193 = vmatmul.mubr.bf16.gmra.mxu0 %v3093
      %v3194 = vpop.f32.mrf.mxu0
      %v3195 = vadd.f32 0.0, %v3194
      %v3196 = vpop.f32.mrf.mxu0
      %v3197 = vpop.f32.mrf.mxu0
      %v3198 = vadd.f32 0.0, %v3197
      %v3199 = vpop.f32.mrf.mxu0
      %3200 = vmatprep.mubr.bf16.mxu0 0
      %3201 = vmatmul.mubr.bf16.gmra.mxu0 %v3096
      %v3202 = vpop.f32.mrf.mxu0
      %v3203 = vadd.f32 0.0, %v3202
      %v3204 = vpop.f32.mrf.mxu0
      %v3205 = vpop.f32.mrf.mxu0
      %v3206 = vadd.f32 0.0, %v3205
      %v3207 = vpop.f32.mrf.mxu0
      %3208 = vmatprep.mubr.bf16.mxu0 0
      %3209 = vmatmul.mubr.bf16.gmra.mxu0 %v3099
      %v3210 = vpop.f32.mrf.mxu0
      %v3211 = vadd.f32 0.0, %v3210
      %v3212 = vpop.f32.mrf.mxu0
      %v3213 = vpop.f32.mrf.mxu0
      %v3214 = vadd.f32 0.0, %v3213
      %v3215 = vpop.f32.mrf.mxu0
      %3216 = vmatprep.mubr.bf16.mxu0 0
      %3217 = vmatmul.mubr.bf16.gmra.mxu0 %v3102
      %v3218 = vpop.f32.mrf.mxu0
      %v3219 = vadd.f32 0.0, %v3218
      %v3220 = vpop.f32.mrf.mxu0
      %v3221 = vpop.f32.mrf.mxu0
      %v3222 = vadd.f32 0.0, %v3221
      %v3223 = vpop.f32.mrf.mxu0
      %3224 = vmatprep.mubr.bf16.mxu0 0
      %3225 = vmatmul.mubr.bf16.gmra.mxu0 %v3105
      %v3226 = vpop.f32.mrf.mxu0
      %v3227 = vadd.f32 0.0, %v3226
      %v3228 = vpop.f32.mrf.mxu0
      %v3229 = vpop.f32.mrf.mxu0
      %v3230 = vadd.f32 0.0, %v3229
      %v3231 = vpop.f32.mrf.mxu0
      %3232 = vmatprep.mubr.bf16.mxu0 0
      %3233 = vmatmul.mubr.bf16.gmra.mxu0 %v3108
      %v3234 = vpop.f32.mrf.mxu0
      %v3235 = vadd.f32 0.0, %v3234
      %v3236 = vpop.f32.mrf.mxu0
      %v3237 = vpop.f32.mrf.mxu0
      %v3238 = vadd.f32 0.0, %v3237
      %v3239 = vpop.f32.mrf.mxu0
      %3240 = vmatprep.mubr.bf16.mxu0 0
      %3241 = vmatmul.mubr.bf16.gmra.mxu0 %v3111
      %v3242 = vpop.f32.mrf.mxu0
      %v3243 = vadd.f32 0.0, %v3242
      %v3244 = vpop.f32.mrf.mxu0
      %v3245 = vpop.f32.mrf.mxu0
      %v3246 = vadd.f32 0.0, %v3245
      %v3247 = vpop.f32.mrf.mxu0
      %3248 = vmatprep.mubr.bf16.mxu0 0
      %3249 = vmatmul.mubr.bf16.gmra.mxu0 %v3114
      %v3250 = vpop.f32.mrf.mxu0
      %v3251 = vadd.f32 0.0, %v3250
      %v3252 = vpop.f32.mrf.mxu0
      %v3253 = vpop.f32.mrf.mxu0
      %v3254 = vadd.f32 0.0, %v3253
      %v3255 = vpop.f32.mrf.mxu0
      %3256 = vmatprep.mubr.bf16.mxu0 0
      %3257 = vmatmul.mubr.bf16.gmra.mxu0 %v3117
      %v3258 = vpop.f32.mrf.mxu0
      %v3259 = vadd.f32 0.0, %v3258
      %v3260 = vpop.f32.mrf.mxu0
      %v3261 = vpop.f32.mrf.mxu0
      %v3262 = vadd.f32 0.0, %v3261
      %v3263 = vpop.f32.mrf.mxu0
      %3264 = vmatprep.mubr.bf16.mxu0 0
      %3265 = vmatmul.mubr.bf16.gmra.mxu0 %v3120
      %v3266 = vpop.f32.mrf.mxu0
      %v3267 = vadd.f32 0.0, %v3266
      %v3268 = vpop.f32.mrf.mxu0
      %v3269 = vpop.f32.mrf.mxu0
      %v3270 = vadd.f32 0.0, %v3269
      %v3271 = vpop.f32.mrf.mxu0
      %3272 = vmatprep.mubr.bf16.mxu0 0
      %3273 = vmatmul.mubr.bf16.gmra.mxu0 %v3123
      %v3274 = vpop.f32.mrf.mxu0
      %v3275 = vadd.f32 0.0, %v3274
      %v3276 = vpop.f32.mrf.mxu0
      %v3277 = vpop.f32.mrf.mxu0
      %v3278 = vadd.f32 0.0, %v3277
      %v3279 = vpop.f32.mrf.mxu0
      %3280 = vmatprep.mubr.bf16.mxu0 0
      %3281 = vmatmul.mubr.bf16.gmra.mxu0 %v3126
      %v3282 = vpop.f32.mrf.mxu0
      %v3283 = vadd.f32 0.0, %v3282
      %v3284 = vpop.f32.mrf.mxu0
      %v3285 = vpop.f32.mrf.mxu0
      %v3286 = vadd.f32 0.0, %v3285
      %v3287 = vpop.f32.mrf.mxu0
      %3288 = vdwg.mxu0
      %v3289 = vadd.f32 %v1569, %v3163
      %v3290 = vadd.f32 %v1570, %v3166
      %v3291 = vadd.f32 %v1571, %v3171
      %v3292 = vadd.f32 %v1572, %v3174
      %v3293 = vadd.f32 %v1573, %v3179
      %v3294 = vadd.f32 %v1574, %v3182
      %v3295 = vadd.f32 %v1575, %v3187
      %v3296 = vadd.f32 %v1576, %v3190
      %v3297 = vadd.f32 %v1577, %v3195
      %v3298 = vadd.f32 %v1578, %v3198
      %v3299 = vadd.f32 %v1579, %v3203
      %v3300 = vadd.f32 %v1580, %v3206
      %v3301 = vadd.f32 %v1581, %v3211
      %v3302 = vadd.f32 %v1582, %v3214
      %v3303 = vadd.f32 %v1583, %v3219
      %v3304 = vadd.f32 %v1584, %v3222
      %v3305 = vadd.f32 %v1585, %v3227
      %v3306 = vadd.f32 %v1586, %v3230
      %v3307 = vadd.f32 %v1587, %v3235
      %v3308 = vadd.f32 %v1588, %v3238
      %v3309 = vadd.f32 %v1589, %v3243
      %v3310 = vadd.f32 %v1590, %v3246
      %v3311 = vadd.f32 %v1591, %v3251
      %v3312 = vadd.f32 %v1592, %v3254
      %v3313 = vadd.f32 %v1593, %v3259
      %v3314 = vadd.f32 %v1594, %v3262
      %v3315 = vadd.f32 %v1595, %v3267
      %v3316 = vadd.f32 %v1596, %v3270
      %v3317 = vadd.f32 %v1597, %v3275
      %v3318 = vadd.f32 %v1598, %v3278
      %v3319 = vadd.f32 %v1599, %v3283
      %v3320 = vadd.f32 %v1600, %v3286
      %v3321 = vpack.c.bf16 %v3290, %v3289
      %v3322 = vpack.c.bf16 %v3292, %v3291
      %v3323 = vpack.c.bf16 %v3294, %v3293
      %v3324 = vpack.c.bf16 %v3296, %v3295
      %v3325 = vpack.c.bf16 %v3298, %v3297
      %v3326 = vpack.c.bf16 %v3300, %v3299
      %v3327 = vpack.c.bf16 %v3302, %v3301
      %v3328 = vpack.c.bf16 %v3304, %v3303
      %v3329 = vpack.c.bf16 %v3306, %v3305
      %v3330 = vpack.c.bf16 %v3308, %v3307
      %v3331 = vpack.c.bf16 %v3310, %v3309
      %v3332 = vpack.c.bf16 %v3312, %v3311
      %v3333 = vpack.c.bf16 %v3314, %v3313
      %v3334 = vpack.c.bf16 %v3316, %v3315
      %v3335 = vpack.c.bf16 %v3318, %v3317
      %v3336 = vpack.c.bf16 %v3320, %v3319
      %v3337 = vlaneseq
      %v3338 = vshrl.u32 %v3337, 7
      %v3339 = vadd.s32 %v3338, 8
      %v3340 = vadd.s32 %v3338, 16
      %v3341 = vadd.s32 %v3338, 24
      %v3342 = vadd.s32 %v3338, 32
      %v3343 = vadd.s32 %v3338, 40
      %v3344 = vadd.s32 %v3338, 48
      %v3345 = vadd.s32 %v3338, 56
      %v3346 = vadd.s32 %v3338, 64
      %v3347 = vadd.s32 %v3338, 72
      %v3348 = vadd.s32 %v3338, 80
      %v3349 = vadd.s32 %v3338, 88
      %v3350 = vadd.s32 %v3338, 96
      %v3351 = vadd.s32 %v3338, 104
      %v3352 = vadd.s32 %v3338, 112
      %v3353 = vadd.s32 %v3338, 120
      %v3354 = vadd.s32 %v3338, 128
      %v3355 = vadd.s32 %v3338, 136
      %v3356 = vadd.s32 %v3338, 144
      %v3357 = vadd.s32 %v3338, 152
      %v3358 = vadd.s32 %v3338, 160
      %v3359 = vadd.s32 %v3338, 168
      %v3360 = vadd.s32 %v3338, 176
      %v3361 = vadd.s32 %v3338, 184
      %v3362 = vadd.s32 %v3338, 192
      %v3363 = vadd.s32 %v3338, 200
      %v3364 = vadd.s32 %v3338, 208
      %v3365 = vadd.s32 %v3338, 216
      %v3366 = vadd.s32 %v3338, 224
      %v3367 = vadd.s32 %v3338, 232
      %v3368 = vadd.s32 %v3338, 240
      %v3369 = vadd.s32 %v3338, 248
      %vm3370 = vcmp.lt.s32.totalorder %v3338, 0
      %v3371 = vsub.s32 0, %v3338
      %v3372 = vsel %vm3370, %v3371, %v3338
      %v3373 = vshrl.u32 %v3372, 4
      %v3374 = vand.u32 %v3372, 15
      %v3375 = vsub.s32 0, %v3374
      %v3376 = vsel %vm3370, %v3375, %v3374
      %vm3377 = vcmp.lt.s32.totalorder %v3339, 0
      %v3378 = vsub.s32 0, %v3339
      %v3379 = vsel %vm3377, %v3378, %v3339
      %v3380 = vshrl.u32 %v3379, 4
      %v3381 = vand.u32 %v3379, 15
      %v3382 = vsub.s32 0, %v3381
      %v3383 = vsel %vm3377, %v3382, %v3381
      %vm3384 = vcmp.lt.s32.totalorder %v3340, 0
      %v3385 = vsub.s32 0, %v3340
      %v3386 = vsel %vm3384, %v3385, %v3340
      %v3387 = vshrl.u32 %v3386, 4
      %v3388 = vand.u32 %v3386, 15
      %v3389 = vsub.s32 0, %v3388
      %v3390 = vsel %vm3384, %v3389, %v3388
      %vm3391 = vcmp.lt.s32.totalorder %v3341, 0
      %v3392 = vsub.s32 0, %v3341
      %v3393 = vsel %vm3391, %v3392, %v3341
      %v3394 = vshrl.u32 %v3393, 4
      %v3395 = vand.u32 %v3393, 15
      %v3396 = vsub.s32 0, %v3395
      %v3397 = vsel %vm3391, %v3396, %v3395
      %vm3398 = vcmp.lt.s32.totalorder %v3342, 0
      %v3399 = vsub.s32 0, %v3342
      %v3400 = vsel %vm3398, %v3399, %v3342
      %v3401 = vshrl.u32 %v3400, 4
      %v3402 = vand.u32 %v3400, 15
      %v3403 = vsub.s32 0, %v3402
      %v3404 = vsel %vm3398, %v3403, %v3402
      %vm3405 = vcmp.lt.s32.totalorder %v3343, 0
      %v3406 = vsub.s32 0, %v3343
      %v3407 = vsel %vm3405, %v3406, %v3343
      %v3408 = vshrl.u32 %v3407, 4
      %v3409 = vand.u32 %v3407, 15
      %v3410 = vsub.s32 0, %v3409
      %v3411 = vsel %vm3405, %v3410, %v3409
      %vm3412 = vcmp.lt.s32.totalorder %v3344, 0
      %v3413 = vsub.s32 0, %v3344
      %v3414 = vsel %vm3412, %v3413, %v3344
      %v3415 = vshrl.u32 %v3414, 4
      %v3416 = vand.u32 %v3414, 15
      %v3417 = vsub.s32 0, %v3416
      %v3418 = vsel %vm3412, %v3417, %v3416
      %vm3419 = vcmp.lt.s32.totalorder %v3345, 0
      %v3420 = vsub.s32 0, %v3345
      %v3421 = vsel %vm3419, %v3420, %v3345
      %v3422 = vshrl.u32 %v3421, 4
      %v3423 = vand.u32 %v3421, 15
      %v3424 = vsub.s32 0, %v3423
      %v3425 = vsel %vm3419, %v3424, %v3423
      %vm3426 = vcmp.lt.s32.totalorder %v3346, 0
      %v3427 = vsub.s32 0, %v3346
      %v3428 = vsel %vm3426, %v3427, %v3346
      %v3429 = vshrl.u32 %v3428, 4
      %v3430 = vand.u32 %v3428, 15
      %v3431 = vsub.s32 0, %v3430
      %v3432 = vsel %vm3426, %v3431, %v3430
      %vm3433 = vcmp.lt.s32.totalorder %v3347, 0
      %v3434 = vsub.s32 0, %v3347
      %v3435 = vsel %vm3433, %v3434, %v3347
      %v3436 = vshrl.u32 %v3435, 4
      %v3437 = vand.u32 %v3435, 15
      %v3438 = vsub.s32 0, %v3437
      %v3439 = vsel %vm3433, %v3438, %v3437
      %vm3440 = vcmp.lt.s32.totalorder %v3348, 0
      %v3441 = vsub.s32 0, %v3348
      %v3442 = vsel %vm3440, %v3441, %v3348
      %v3443 = vshrl.u32 %v3442, 4
      %v3444 = vand.u32 %v3442, 15
      %v3445 = vsub.s32 0, %v3444
      %v3446 = vsel %vm3440, %v3445, %v3444
      %vm3447 = vcmp.lt.s32.totalorder %v3349, 0
      %v3448 = vsub.s32 0, %v3349
      %v3449 = vsel %vm3447, %v3448, %v3349
      %v3450 = vshrl.u32 %v3449, 4
      %v3451 = vand.u32 %v3449, 15
      %v3452 = vsub.s32 0, %v3451
      %v3453 = vsel %vm3447, %v3452, %v3451
      %vm3454 = vcmp.lt.s32.totalorder %v3350, 0
      %v3455 = vsub.s32 0, %v3350
      %v3456 = vsel %vm3454, %v3455, %v3350
      %v3457 = vshrl.u32 %v3456, 4
      %v3458 = vand.u32 %v3456, 15
      %v3459 = vsub.s32 0, %v3458
      %v3460 = vsel %vm3454, %v3459, %v3458
      %vm3461 = vcmp.lt.s32.totalorder %v3351, 0
      %v3462 = vsub.s32 0, %v3351
      %v3463 = vsel %vm3461, %v3462, %v3351
      %v3464 = vshrl.u32 %v3463, 4
      %v3465 = vand.u32 %v3463, 15
      %v3466 = vsub.s32 0, %v3465
      %v3467 = vsel %vm3461, %v3466, %v3465
      %vm3468 = vcmp.lt.s32.totalorder %v3352, 0
      %v3469 = vsub.s32 0, %v3352
      %v3470 = vsel %vm3468, %v3469, %v3352
      %v3471 = vshrl.u32 %v3470, 4
      %v3472 = vand.u32 %v3470, 15
      %v3473 = vsub.s32 0, %v3472
      %v3474 = vsel %vm3468, %v3473, %v3472
      %vm3475 = vcmp.lt.s32.totalorder %v3353, 0
      %v3476 = vsub.s32 0, %v3353
      %v3477 = vsel %vm3475, %v3476, %v3353
      %v3478 = vshrl.u32 %v3477, 4
      %v3479 = vand.u32 %v3477, 15
      %v3480 = vsub.s32 0, %v3479
      %v3481 = vsel %vm3475, %v3480, %v3479
      %vm3482 = vcmp.lt.s32.totalorder %v3354, 0
      %v3483 = vsub.s32 0, %v3354
      %v3484 = vsel %vm3482, %v3483, %v3354
      %v3485 = vshrl.u32 %v3484, 4
      %v3486 = vand.u32 %v3484, 15
      %v3487 = vsub.s32 0, %v3486
      %v3488 = vsel %vm3482, %v3487, %v3486
      %vm3489 = vcmp.lt.s32.totalorder %v3355, 0
      %v3490 = vsub.s32 0, %v3355
      %v3491 = vsel %vm3489, %v3490, %v3355
      %v3492 = vshrl.u32 %v3491, 4
      %v3493 = vand.u32 %v3491, 15
      %v3494 = vsub.s32 0, %v3493
      %v3495 = vsel %vm3489, %v3494, %v3493
      %vm3496 = vcmp.lt.s32.totalorder %v3356, 0
      %v3497 = vsub.s32 0, %v3356
      %v3498 = vsel %vm3496, %v3497, %v3356
      %v3499 = vshrl.u32 %v3498, 4
      %v3500 = vand.u32 %v3498, 15
      %v3501 = vsub.s32 0, %v3500
      %v3502 = vsel %vm3496, %v3501, %v3500
      %vm3503 = vcmp.lt.s32.totalorder %v3357, 0
      %v3504 = vsub.s32 0, %v3357
      %v3505 = vsel %vm3503, %v3504, %v3357
      %v3506 = vshrl.u32 %v3505, 4
      %v3507 = vand.u32 %v3505, 15
      %v3508 = vsub.s32 0, %v3507
      %v3509 = vsel %vm3503, %v3508, %v3507
      %vm3510 = vcmp.lt.s32.totalorder %v3358, 0
      %v3511 = vsub.s32 0, %v3358
      %v3512 = vsel %vm3510, %v3511, %v3358
      %v3513 = vshrl.u32 %v3512, 4
      %v3514 = vand.u32 %v3512, 15
      %v3515 = vsub.s32 0, %v3514
      %v3516 = vsel %vm3510, %v3515, %v3514
      %vm3517 = vcmp.lt.s32.totalorder %v3359, 0
      %v3518 = vsub.s32 0, %v3359
      %v3519 = vsel %vm3517, %v3518, %v3359
      %v3520 = vshrl.u32 %v3519, 4
      %v3521 = vand.u32 %v3519, 15
      %v3522 = vsub.s32 0, %v3521
      %v3523 = vsel %vm3517, %v3522, %v3521
      %vm3524 = vcmp.lt.s32.totalorder %v3360, 0
      %v3525 = vsub.s32 0, %v3360
      %v3526 = vsel %vm3524, %v3525, %v3360
      %v3527 = vshrl.u32 %v3526, 4
      %v3528 = vand.u32 %v3526, 15
      %v3529 = vsub.s32 0, %v3528
      %v3530 = vsel %vm3524, %v3529, %v3528
      %vm3531 = vcmp.lt.s32.totalorder %v3361, 0
      %v3532 = vsub.s32 0, %v3361
      %v3533 = vsel %vm3531, %v3532, %v3361
      %v3534 = vshrl.u32 %v3533, 4
      %v3535 = vand.u32 %v3533, 15
      %v3536 = vsub.s32 0, %v3535
      %v3537 = vsel %vm3531, %v3536, %v3535
      %vm3538 = vcmp.lt.s32.totalorder %v3362, 0
      %v3539 = vsub.s32 0, %v3362
      %v3540 = vsel %vm3538, %v3539, %v3362
      %v3541 = vshrl.u32 %v3540, 4
      %v3542 = vand.u32 %v3540, 15
      %v3543 = vsub.s32 0, %v3542
      %v3544 = vsel %vm3538, %v3543, %v3542
      %vm3545 = vcmp.lt.s32.totalorder %v3363, 0
      %v3546 = vsub.s32 0, %v3363
      %v3547 = vsel %vm3545, %v3546, %v3363
      %v3548 = vshrl.u32 %v3547, 4
      %v3549 = vand.u32 %v3547, 15
      %v3550 = vsub.s32 0, %v3549
      %v3551 = vsel %vm3545, %v3550, %v3549
      %vm3552 = vcmp.lt.s32.totalorder %v3364, 0
      %v3553 = vsub.s32 0, %v3364
      %v3554 = vsel %vm3552, %v3553, %v3364
      %v3555 = vshrl.u32 %v3554, 4
      %v3556 = vand.u32 %v3554, 15
      %v3557 = vsub.s32 0, %v3556
      %v3558 = vsel %vm3552, %v3557, %v3556
      %vm3559 = vcmp.lt.s32.totalorder %v3365, 0
      %v3560 = vsub.s32 0, %v3365
      %v3561 = vsel %vm3559, %v3560, %v3365
      %v3562 = vshrl.u32 %v3561, 4
      %v3563 = vand.u32 %v3561, 15
      %v3564 = vsub.s32 0, %v3563
      %v3565 = vsel %vm3559, %v3564, %v3563
      %vm3566 = vcmp.lt.s32.totalorder %v3366, 0
      %v3567 = vsub.s32 0, %v3366
      %v3568 = vsel %vm3566, %v3567, %v3366
      %v3569 = vshrl.u32 %v3568, 4
      %v3570 = vand.u32 %v3568, 15
      %v3571 = vsub.s32 0, %v3570
      %v3572 = vsel %vm3566, %v3571, %v3570
      %vm3573 = vcmp.lt.s32.totalorder %v3367, 0
      %v3574 = vsub.s32 0, %v3367
      %v3575 = vsel %vm3573, %v3574, %v3367
      %v3576 = vshrl.u32 %v3575, 4
      %v3577 = vand.u32 %v3575, 15
      %v3578 = vsub.s32 0, %v3577
      %v3579 = vsel %vm3573, %v3578, %v3577
      %vm3580 = vcmp.lt.s32.totalorder %v3368, 0
      %v3581 = vsub.s32 0, %v3368
      %v3582 = vsel %vm3580, %v3581, %v3368
      %v3583 = vshrl.u32 %v3582, 4
      %v3584 = vand.u32 %v3582, 15
      %v3585 = vsub.s32 0, %v3584
      %v3586 = vsel %vm3580, %v3585, %v3584
      %vm3587 = vcmp.lt.s32.totalorder %v3369, 0
      %v3588 = vsub.s32 0, %v3369
      %v3589 = vsel %vm3587, %v3588, %v3369
      %v3590 = vshrl.u32 %v3589, 4
      %v3591 = vand.u32 %v3589, 15
      %v3592 = vsub.s32 0, %v3591
      %v3593 = vsel %vm3587, %v3592, %v3591
      %vm3594 = vcmp.ne.s32.totalorder %v3376, 0
      %vm3595 = vcmp.ne.s32.totalorder %v3383, 0
      %vm3596 = vcmp.ne.s32.totalorder %v3390, 0
      %vm3597 = vcmp.ne.s32.totalorder %v3397, 0
      %vm3598 = vcmp.ne.s32.totalorder %v3404, 0
      %vm3599 = vcmp.ne.s32.totalorder %v3411, 0
      %vm3600 = vcmp.ne.s32.totalorder %v3418, 0
      %vm3601 = vcmp.ne.s32.totalorder %v3425, 0
      %vm3602 = vcmp.ne.s32.totalorder %v3432, 0
      %vm3603 = vcmp.ne.s32.totalorder %v3439, 0
      %vm3604 = vcmp.ne.s32.totalorder %v3446, 0
      %vm3605 = vcmp.ne.s32.totalorder %v3453, 0
      %vm3606 = vcmp.ne.s32.totalorder %v3460, 0
      %vm3607 = vcmp.ne.s32.totalorder %v3467, 0
      %vm3608 = vcmp.ne.s32.totalorder %v3474, 0
      %vm3609 = vcmp.ne.s32.totalorder %v3481, 0
      %vm3610 = vcmp.ne.s32.totalorder %v3488, 0
      %vm3611 = vcmp.ne.s32.totalorder %v3495, 0
      %vm3612 = vcmp.ne.s32.totalorder %v3502, 0
      %vm3613 = vcmp.ne.s32.totalorder %v3509, 0
      %vm3614 = vcmp.ne.s32.totalorder %v3516, 0
      %vm3615 = vcmp.ne.s32.totalorder %v3523, 0
      %vm3616 = vcmp.ne.s32.totalorder %v3530, 0
      %vm3617 = vcmp.ne.s32.totalorder %v3537, 0
      %vm3618 = vcmp.ne.s32.totalorder %v3544, 0
      %vm3619 = vcmp.ne.s32.totalorder %v3551, 0
      %vm3620 = vcmp.ne.s32.totalorder %v3558, 0
      %vm3621 = vcmp.ne.s32.totalorder %v3565, 0
      %vm3622 = vcmp.ne.s32.totalorder %v3572, 0
      %vm3623 = vcmp.ne.s32.totalorder %v3579, 0
      %vm3624 = vcmp.ne.s32.totalorder %v3586, 0
      %vm3625 = vcmp.ne.s32.totalorder %v3593, 0
      %vm3626 = vcmp.lt.s32.totalorder %v3376, 0
      %vm3627 = vcmp.lt.s32.totalorder %v3383, 0
      %vm3628 = vcmp.lt.s32.totalorder %v3390, 0
      %vm3629 = vcmp.lt.s32.totalorder %v3397, 0
      %vm3630 = vcmp.lt.s32.totalorder %v3404, 0
      %vm3631 = vcmp.lt.s32.totalorder %v3411, 0
      %vm3632 = vcmp.lt.s32.totalorder %v3418, 0
      %vm3633 = vcmp.lt.s32.totalorder %v3425, 0
      %vm3634 = vcmp.lt.s32.totalorder %v3432, 0
      %vm3635 = vcmp.lt.s32.totalorder %v3439, 0
      %vm3636 = vcmp.lt.s32.totalorder %v3446, 0
      %vm3637 = vcmp.lt.s32.totalorder %v3453, 0
      %vm3638 = vcmp.lt.s32.totalorder %v3460, 0
      %vm3639 = vcmp.lt.s32.totalorder %v3467, 0
      %vm3640 = vcmp.lt.s32.totalorder %v3474, 0
      %vm3641 = vcmp.lt.s32.totalorder %v3481, 0
      %vm3642 = vcmp.lt.s32.totalorder %v3488, 0
      %vm3643 = vcmp.lt.s32.totalorder %v3495, 0
      %vm3644 = vcmp.lt.s32.totalorder %v3502, 0
      %vm3645 = vcmp.lt.s32.totalorder %v3509, 0
      %vm3646 = vcmp.lt.s32.totalorder %v3516, 0
      %vm3647 = vcmp.lt.s32.totalorder %v3523, 0
      %vm3648 = vcmp.lt.s32.totalorder %v3530, 0
      %vm3649 = vcmp.lt.s32.totalorder %v3537, 0
      %vm3650 = vcmp.lt.s32.totalorder %v3544, 0
      %vm3651 = vcmp.lt.s32.totalorder %v3551, 0
      %vm3652 = vcmp.lt.s32.totalorder %v3558, 0
      %vm3653 = vcmp.lt.s32.totalorder %v3565, 0
      %vm3654 = vcmp.lt.s32.totalorder %v3572, 0
      %vm3655 = vcmp.lt.s32.totalorder %v3579, 0
      %vm3656 = vcmp.lt.s32.totalorder %v3586, 0
      %vm3657 = vcmp.lt.s32.totalorder %v3593, 0
      %vm3658 = vmand %vm3626, %vm3594
      %vm3659 = vmand %vm3627, %vm3595
      %vm3660 = vmand %vm3628, %vm3596
      %vm3661 = vmand %vm3629, %vm3597
      %vm3662 = vmand %vm3630, %vm3598
      %vm3663 = vmand %vm3631, %vm3599
      %vm3664 = vmand %vm3632, %vm3600
      %vm3665 = vmand %vm3633, %vm3601
      %vm3666 = vmand %vm3634, %vm3602
      %vm3667 = vmand %vm3635, %vm3603
      %vm3668 = vmand %vm3636, %vm3604
      %vm3669 = vmand %vm3637, %vm3605
      %vm3670 = vmand %vm3638, %vm3606
      %vm3671 = vmand %vm3639, %vm3607
      %vm3672 = vmand %vm3640, %vm3608
      %vm3673 = vmand %vm3641, %vm3609
      %vm3674 = vmand %vm3642, %vm3610
      %vm3675 = vmand %vm3643, %vm3611
      %vm3676 = vmand %vm3644, %vm3612
      %vm3677 = vmand %vm3645, %vm3613
      %vm3678 = vmand %vm3646, %vm3614
      %vm3679 = vmand %vm3647, %vm3615
      %vm3680 = vmand %vm3648, %vm3616
      %vm3681 = vmand %vm3649, %vm3617
      %vm3682 = vmand %vm3650, %vm3618
      %vm3683 = vmand %vm3651, %vm3619
      %vm3684 = vmand %vm3652, %vm3620
      %vm3685 = vmand %vm3653, %vm3621
      %vm3686 = vmand %vm3654, %vm3622
      %vm3687 = vmand %vm3655, %vm3623
      %vm3688 = vmand %vm3656, %vm3624
      %vm3689 = vmand %vm3657, %vm3625
      %v3690 = vadd.s32 %v3376, 16
      %v3691 = vadd.s32 %v3383, 16
      %v3692 = vadd.s32 %v3390, 16
      %v3693 = vadd.s32 %v3397, 16
      %v3694 = vadd.s32 %v3404, 16
      %v3695 = vadd.s32 %v3411, 16
      %v3696 = vadd.s32 %v3418, 16
      %v3697 = vadd.s32 %v3425, 16
      %v3698 = vadd.s32 %v3432, 16
      %v3699 = vadd.s32 %v3439, 16
      %v3700 = vadd.s32 %v3446, 16
      %v3701 = vadd.s32 %v3453, 16
      %v3702 = vadd.s32 %v3460, 16
      %v3703 = vadd.s32 %v3467, 16
      %v3704 = vadd.s32 %v3474, 16
      %v3705 = vadd.s32 %v3481, 16
      %v3706 = vadd.s32 %v3488, 16
      %v3707 = vadd.s32 %v3495, 16
      %v3708 = vadd.s32 %v3502, 16
      %v3709 = vadd.s32 %v3509, 16
      %v3710 = vadd.s32 %v3516, 16
      %v3711 = vadd.s32 %v3523, 16
      %v3712 = vadd.s32 %v3530, 16
      %v3713 = vadd.s32 %v3537, 16
      %v3714 = vadd.s32 %v3544, 16
      %v3715 = vadd.s32 %v3551, 16
      %v3716 = vadd.s32 %v3558, 16
      %v3717 = vadd.s32 %v3565, 16
      %v3718 = vadd.s32 %v3572, 16
      %v3719 = vadd.s32 %v3579, 16
      %v3720 = vadd.s32 %v3586, 16
      %v3721 = vadd.s32 %v3593, 16
      %v3722 = vsel %vm3658, %v3690, %v3376
      %v3723 = vsel %vm3659, %v3691, %v3383
      %v3724 = vsel %vm3660, %v3692, %v3390
      %v3725 = vsel %vm3661, %v3693, %v3397
      %v3726 = vsel %vm3662, %v3694, %v3404
      %v3727 = vsel %vm3663, %v3695, %v3411
      %v3728 = vsel %vm3664, %v3696, %v3418
      %v3729 = vsel %vm3665, %v3697, %v3425
      %v3730 = vsel %vm3666, %v3698, %v3432
      %v3731 = vsel %vm3667, %v3699, %v3439
      %v3732 = vsel %vm3668, %v3700, %v3446
      %v3733 = vsel %vm3669, %v3701, %v3453
      %v3734 = vsel %vm3670, %v3702, %v3460
      %v3735 = vsel %vm3671, %v3703, %v3467
      %v3736 = vsel %vm3672, %v3704, %v3474
      %v3737 = vsel %vm3673, %v3705, %v3481
      %v3738 = vsel %vm3674, %v3706, %v3488
      %v3739 = vsel %vm3675, %v3707, %v3495
      %v3740 = vsel %vm3676, %v3708, %v3502
      %v3741 = vsel %vm3677, %v3709, %v3509
      %v3742 = vsel %vm3678, %v3710, %v3516
      %v3743 = vsel %vm3679, %v3711, %v3523
      %v3744 = vsel %vm3680, %v3712, %v3530
      %v3745 = vsel %vm3681, %v3713, %v3537
      %v3746 = vsel %vm3682, %v3714, %v3544
      %v3747 = vsel %vm3683, %v3715, %v3551
      %v3748 = vsel %vm3684, %v3716, %v3558
      %v3749 = vsel %vm3685, %v3717, %v3565
      %v3750 = vsel %vm3686, %v3718, %v3572
      %v3751 = vsel %vm3687, %v3719, %v3579
      %v3752 = vsel %vm3688, %v3720, %v3586
      %v3753 = vsel %vm3689, %v3721, %v3593
      %vm3754 = vcmp.ge.s32.totalorder %v3722, 1
      %vm3755 = vcmp.ge.s32.totalorder %v3723, 1
      %vm3756 = vcmp.ge.s32.totalorder %v3724, 1
      %vm3757 = vcmp.ge.s32.totalorder %v3725, 1
      %vm3758 = vcmp.ge.s32.totalorder %v3726, 1
      %vm3759 = vcmp.ge.s32.totalorder %v3727, 1
      %vm3760 = vcmp.ge.s32.totalorder %v3728, 1
      %vm3761 = vcmp.ge.s32.totalorder %v3729, 1
      %vm3762 = vcmp.ge.s32.totalorder %v3730, 1
      %vm3763 = vcmp.ge.s32.totalorder %v3731, 1
      %vm3764 = vcmp.ge.s32.totalorder %v3732, 1
      %vm3765 = vcmp.ge.s32.totalorder %v3733, 1
      %vm3766 = vcmp.ge.s32.totalorder %v3734, 1
      %vm3767 = vcmp.ge.s32.totalorder %v3735, 1
      %vm3768 = vcmp.ge.s32.totalorder %v3736, 1
      %vm3769 = vcmp.ge.s32.totalorder %v3737, 1
      %vm3770 = vcmp.ge.s32.totalorder %v3738, 1
      %vm3771 = vcmp.ge.s32.totalorder %v3739, 1
      %vm3772 = vcmp.ge.s32.totalorder %v3740, 1
      %vm3773 = vcmp.ge.s32.totalorder %v3741, 1
      %vm3774 = vcmp.ge.s32.totalorder %v3742, 1
      %vm3775 = vcmp.ge.s32.totalorder %v3743, 1
      %vm3776 = vcmp.ge.s32.totalorder %v3744, 1
      %vm3777 = vcmp.ge.s32.totalorder %v3745, 1
      %vm3778 = vcmp.ge.s32.totalorder %v3746, 1
      %vm3779 = vcmp.ge.s32.totalorder %v3747, 1
      %vm3780 = vcmp.ge.s32.totalorder %v3748, 1
      %vm3781 = vcmp.ge.s32.totalorder %v3749, 1
      %vm3782 = vcmp.ge.s32.totalorder %v3750, 1
      %vm3783 = vcmp.ge.s32.totalorder %v3751, 1
      %vm3784 = vcmp.ge.s32.totalorder %v3752, 1
      %vm3785 = vcmp.ge.s32.totalorder %v3753, 1
      %vm3786 = vcmp.le.s32.totalorder %v3722, 14
      %vm3787 = vcmp.le.s32.totalorder %v3723, 14
      %vm3788 = vcmp.le.s32.totalorder %v3724, 14
      %vm3789 = vcmp.le.s32.totalorder %v3725, 14
      %vm3790 = vcmp.le.s32.totalorder %v3726, 14
      %vm3791 = vcmp.le.s32.totalorder %v3727, 14
      %vm3792 = vcmp.le.s32.totalorder %v3728, 14
      %vm3793 = vcmp.le.s32.totalorder %v3729, 14
      %vm3794 = vcmp.le.s32.totalorder %v3730, 14
      %vm3795 = vcmp.le.s32.totalorder %v3731, 14
      %vm3796 = vcmp.le.s32.totalorder %v3732, 14
      %vm3797 = vcmp.le.s32.totalorder %v3733, 14
      %vm3798 = vcmp.le.s32.totalorder %v3734, 14
      %vm3799 = vcmp.le.s32.totalorder %v3735, 14
      %vm3800 = vcmp.le.s32.totalorder %v3736, 14
      %vm3801 = vcmp.le.s32.totalorder %v3737, 14
      %vm3802 = vcmp.le.s32.totalorder %v3738, 14
      %vm3803 = vcmp.le.s32.totalorder %v3739, 14
      %vm3804 = vcmp.le.s32.totalorder %v3740, 14
      %vm3805 = vcmp.le.s32.totalorder %v3741, 14
      %vm3806 = vcmp.le.s32.totalorder %v3742, 14
      %vm3807 = vcmp.le.s32.totalorder %v3743, 14
      %vm3808 = vcmp.le.s32.totalorder %v3744, 14
      %vm3809 = vcmp.le.s32.totalorder %v3745, 14
      %vm3810 = vcmp.le.s32.totalorder %v3746, 14
      %vm3811 = vcmp.le.s32.totalorder %v3747, 14
      %vm3812 = vcmp.le.s32.totalorder %v3748, 14
      %vm3813 = vcmp.le.s32.totalorder %v3749, 14
      %vm3814 = vcmp.le.s32.totalorder %v3750, 14
      %vm3815 = vcmp.le.s32.totalorder %v3751, 14
      %vm3816 = vcmp.le.s32.totalorder %v3752, 14
      %vm3817 = vcmp.le.s32.totalorder %v3753, 14
      %vm3818 = vsmask.f32 256
      %v3820 = vshrl.u32 %v3321, 16
      %v3822 = vrot.slane %v3820, 7
      %v3823 = vshll.u32 %v3321, 16
      %v3825 = vor.u32 %v3822, %v3823
      %v3827 = vshrl.u32 %v3322, 16
      %v3829 = vrot.slane %v3827, 7
      %v3830 = vshll.u32 %v3322, 16
      %v3832 = vor.u32 %v3829, %v3830
      %v3833 = vsel %vm3818, %v3822, %v3832
      %v3835 = vshrl.u32 %v3323, 16
      %v3837 = vrot.slane %v3835, 7
      %v3838 = vshll.u32 %v3323, 16
      %v3840 = vor.u32 %v3837, %v3838
      %v3841 = vsel %vm3818, %v3829, %v3840
      %v3843 = vshrl.u32 %v3324, 16
      %v3845 = vrot.slane %v3843, 7
      %v3846 = vshll.u32 %v3324, 16
      %v3848 = vor.u32 %v3845, %v3846
      %v3849 = vsel %vm3818, %v3837, %v3848
      %v3851 = vshrl.u32 %v3325, 16
      %v3853 = vrot.slane %v3851, 7
      %v3854 = vshll.u32 %v3325, 16
      %v3856 = vor.u32 %v3853, %v3854
      %v3857 = vsel %vm3818, %v3845, %v3856
      %v3859 = vshrl.u32 %v3326, 16
      %v3861 = vrot.slane %v3859, 7
      %v3862 = vshll.u32 %v3326, 16
      %v3864 = vor.u32 %v3861, %v3862
      %v3865 = vsel %vm3818, %v3853, %v3864
      %v3867 = vshrl.u32 %v3327, 16
      %v3869 = vrot.slane %v3867, 7
      %v3870 = vshll.u32 %v3327, 16
      %v3872 = vor.u32 %v3869, %v3870
      %v3873 = vsel %vm3818, %v3861, %v3872
      %v3875 = vshrl.u32 %v3328, 16
      %v3877 = vrot.slane %v3875, 7
      %v3878 = vshll.u32 %v3328, 16
      %v3880 = vor.u32 %v3877, %v3878
      %v3881 = vsel %vm3818, %v3869, %v3880
      %v3883 = vshrl.u32 %v3329, 16
      %v3885 = vrot.slane %v3883, 7
      %v3886 = vshll.u32 %v3329, 16
      %v3888 = vor.u32 %v3885, %v3886
      %v3889 = vsel %vm3818, %v3877, %v3888
      %v3891 = vshrl.u32 %v3330, 16
      %v3893 = vrot.slane %v3891, 7
      %v3894 = vshll.u32 %v3330, 16
      %v3896 = vor.u32 %v3893, %v3894
      %v3897 = vsel %vm3818, %v3885, %v3896
      %v3899 = vshrl.u32 %v3331, 16
      %v3901 = vrot.slane %v3899, 7
      %v3902 = vshll.u32 %v3331, 16
      %v3904 = vor.u32 %v3901, %v3902
      %v3905 = vsel %vm3818, %v3893, %v3904
      %v3907 = vshrl.u32 %v3332, 16
      %v3909 = vrot.slane %v3907, 7
      %v3910 = vshll.u32 %v3332, 16
      %v3912 = vor.u32 %v3909, %v3910
      %v3913 = vsel %vm3818, %v3901, %v3912
      %v3915 = vshrl.u32 %v3333, 16
      %v3917 = vrot.slane %v3915, 7
      %v3918 = vshll.u32 %v3333, 16
      %v3920 = vor.u32 %v3917, %v3918
      %v3921 = vsel %vm3818, %v3909, %v3920
      %v3923 = vshrl.u32 %v3334, 16
      %v3925 = vrot.slane %v3923, 7
      %v3926 = vshll.u32 %v3334, 16
      %v3928 = vor.u32 %v3925, %v3926
      %v3929 = vsel %vm3818, %v3917, %v3928
      %v3931 = vshrl.u32 %v3335, 16
      %v3933 = vrot.slane %v3931, 7
      %v3934 = vshll.u32 %v3335, 16
      %v3936 = vor.u32 %v3933, %v3934
      %v3937 = vsel %vm3818, %v3925, %v3936
      %vm3953 = vcmask 1040384
      %vm3954 = vmand %vm3953, %vm3818
      %v3955 = vsel %vm3954, 0, %v3825
      %v3956 = vsel %vm3754, 1, 0
      %v3957 = vsel %vm3755, 1, 0
      %v3958 = vsel %vm3756, 1, 0
      %v3959 = vsel %vm3757, 1, 0
      %v3960 = vsel %vm3758, 1, 0
      %v3961 = vsel %vm3759, 1, 0
      %v3962 = vsel %vm3760, 1, 0
      %v3963 = vsel %vm3761, 1, 0
      %v3964 = vsel %vm3762, 1, 0
      %v3965 = vsel %vm3763, 1, 0
      %v3966 = vsel %vm3764, 1, 0
      %v3967 = vsel %vm3765, 1, 0
      %v3968 = vsel %vm3766, 1, 0
      %v3969 = vsel %vm3767, 1, 0
      %v3970 = vsel %vm3768, 1, 0
      %v3971 = vsel %vm3769, 1, 0
      %v3972 = vsel %vm3770, 1, 0
      %v3973 = vsel %vm3771, 1, 0
      %v3974 = vsel %vm3772, 1, 0
      %v3975 = vsel %vm3773, 1, 0
      %v3976 = vsel %vm3774, 1, 0
      %v3977 = vsel %vm3775, 1, 0
      %v3978 = vsel %vm3776, 1, 0
      %v3979 = vsel %vm3777, 1, 0
      %v3980 = vsel %vm3778, 1, 0
      %v3981 = vsel %vm3779, 1, 0
      %v3982 = vsel %vm3780, 1, 0
      %v3983 = vsel %vm3781, 1, 0
      %v3984 = vsel %vm3782, 1, 0
      %v3985 = vsel %vm3783, 1, 0
      %v3986 = vsel %vm3784, 1, 0
      %v3987 = vsel %vm3785, 1, 0
      %vm3988 = vcmp.eq.s32.totalorder %v3956, 1
      %vm3989 = vcmp.eq.s32.totalorder %v3957, 1
      %vm3990 = vcmp.eq.s32.totalorder %v3958, 1
      %vm3991 = vcmp.eq.s32.totalorder %v3959, 1
      %vm3992 = vcmp.eq.s32.totalorder %v3960, 1
      %vm3993 = vcmp.eq.s32.totalorder %v3961, 1
      %vm3994 = vcmp.eq.s32.totalorder %v3962, 1
      %vm3995 = vcmp.eq.s32.totalorder %v3963, 1
      %vm3996 = vcmp.eq.s32.totalorder %v3964, 1
      %vm3997 = vcmp.eq.s32.totalorder %v3965, 1
      %vm3998 = vcmp.eq.s32.totalorder %v3966, 1
      %vm3999 = vcmp.eq.s32.totalorder %v3967, 1
      %vm4000 = vcmp.eq.s32.totalorder %v3968, 1
      %vm4001 = vcmp.eq.s32.totalorder %v3969, 1
      %vm4002 = vcmp.eq.s32.totalorder %v3970, 1
      %vm4003 = vcmp.eq.s32.totalorder %v3971, 1
      %vm4004 = vcmp.eq.s32.totalorder %v3972, 1
      %vm4005 = vcmp.eq.s32.totalorder %v3973, 1
      %vm4006 = vcmp.eq.s32.totalorder %v3974, 1
      %vm4007 = vcmp.eq.s32.totalorder %v3975, 1
      %vm4008 = vcmp.eq.s32.totalorder %v3976, 1
      %vm4009 = vcmp.eq.s32.totalorder %v3977, 1
      %vm4010 = vcmp.eq.s32.totalorder %v3978, 1
      %vm4011 = vcmp.eq.s32.totalorder %v3979, 1
      %vm4012 = vcmp.eq.s32.totalorder %v3980, 1
      %vm4013 = vcmp.eq.s32.totalorder %v3981, 1
      %vm4014 = vcmp.eq.s32.totalorder %v3982, 1
      %vm4015 = vcmp.eq.s32.totalorder %v3983, 1
      %vm4016 = vcmp.eq.s32.totalorder %v3984, 1
      %vm4017 = vcmp.eq.s32.totalorder %v3985, 1
      %vm4018 = vcmp.eq.s32.totalorder %v3986, 1
      %vm4019 = vcmp.eq.s32.totalorder %v3987, 1
      %vm4020 = vmpackc.low %vm3990, %vm3990
      %vm4021 = vmpackc.low %vm3991, %vm3991
      %vm4022 = vmpackc.low %vm3992, %vm3992
      %vm4023 = vmpackc.low %vm3993, %vm3993
      %vm4024 = vmpackc.low %vm3994, %vm3994
      %vm4025 = vmpackc.low %vm3995, %vm3995
      %vm4026 = vmpackc.low %vm3996, %vm3996
      %vm4027 = vmpackc.low %vm3997, %vm3997
      %vm4028 = vmpackc.low %vm3998, %vm3998
      %vm4029 = vmpackc.low %vm3999, %vm3999
      %vm4030 = vmpackc.low %vm4000, %vm4000
      %vm4031 = vmpackc.low %vm4001, %vm4001
      %vm4032 = vmpackc.low %vm4002, %vm4002
      %vm4033 = vmpackc.low %vm4003, %vm4003
      %vm4034 = vmpackc.low %vm4004, %vm4004
      %vm4035 = vmpackc.low %vm4005, %vm4005
      %vm4036 = vmpackc.low %vm4006, %vm4006
      %vm4037 = vmpackc.low %vm4007, %vm4007
      %vm4038 = vmpackc.low %vm4008, %vm4008
      %vm4039 = vmpackc.low %vm4009, %vm4009
      %vm4040 = vmpackc.low %vm4010, %vm4010
      %vm4041 = vmpackc.low %vm4011, %vm4011
      %vm4042 = vmpackc.low %vm4012, %vm4012
      %vm4043 = vmpackc.low %vm4013, %vm4013
      %vm4044 = vmpackc.low %vm4014, %vm4014
      %vm4045 = vmpackc.low %vm4015, %vm4015
      %vm4046 = vmpackc.low %vm4016, %vm4016
      %vm4047 = vmpackc.low %vm4017, %vm4017
      %vm4048 = vmpackc.low %vm4018, %vm4018
      %vm4049 = vmpackc.low %vm4019, %vm4019
      %v4050 = vsel %vm4020, 65537, 0
      %v4051 = vsel %vm4021, 65537, 0
      %v4052 = vsel %vm4022, 65537, 0
      %v4053 = vsel %vm4023, 65537, 0
      %v4054 = vsel %vm4024, 65537, 0
      %v4055 = vsel %vm4025, 65537, 0
      %v4056 = vsel %vm4026, 65537, 0
      %v4057 = vsel %vm4027, 65537, 0
      %v4058 = vsel %vm4028, 65537, 0
      %v4059 = vsel %vm4029, 65537, 0
      %v4060 = vsel %vm4030, 65537, 0
      %v4061 = vsel %vm4031, 65537, 0
      %v4062 = vsel %vm4032, 65537, 0
      %v4063 = vsel %vm4033, 65537, 0
      %v4064 = vsel %vm4034, 65537, 0
      %v4065 = vsel %vm4035, 65537, 0
      %v4066 = vsel %vm4036, 65537, 0
      %v4067 = vsel %vm4037, 65537, 0
      %v4068 = vsel %vm4038, 65537, 0
      %v4069 = vsel %vm4039, 65537, 0
      %v4070 = vsel %vm4040, 65537, 0
      %v4071 = vsel %vm4041, 65537, 0
      %v4072 = vsel %vm4042, 65537, 0
      %v4073 = vsel %vm4043, 65537, 0
      %v4074 = vsel %vm4044, 65537, 0
      %v4075 = vsel %vm4045, 65537, 0
      %v4076 = vsel %vm4046, 65537, 0
      %v4077 = vsel %vm4047, 65537, 0
      %v4078 = vsel %vm4048, 65537, 0
      %v4079 = vsel %vm4049, 65537, 0
      %v4080 = vunpack.c.l.b16 %v4050
      %v4081 = vunpack.c.l.b16 %v4051
      %v4082 = vunpack.c.l.b16 %v4052
      %v4083 = vunpack.c.l.b16 %v4053
      %v4084 = vunpack.c.l.b16 %v4054
      %v4085 = vunpack.c.l.b16 %v4055
      %v4086 = vunpack.c.l.b16 %v4056
      %v4087 = vunpack.c.l.b16 %v4057
      %v4088 = vunpack.c.l.b16 %v4058
      %v4089 = vunpack.c.l.b16 %v4059
      %v4090 = vunpack.c.l.b16 %v4060
      %v4091 = vunpack.c.l.b16 %v4061
      %v4092 = vunpack.c.l.b16 %v4062
      %v4093 = vunpack.c.l.b16 %v4063
      %v4094 = vunpack.c.l.b16 %v4064
      %v4095 = vunpack.c.l.b16 %v4065
      %v4096 = vunpack.c.l.b16 %v4066
      %v4097 = vunpack.c.l.b16 %v4067
      %v4098 = vunpack.c.l.b16 %v4068
      %v4099 = vunpack.c.l.b16 %v4069
      %v4100 = vunpack.c.l.b16 %v4070
      %v4101 = vunpack.c.l.b16 %v4071
      %v4102 = vunpack.c.l.b16 %v4072
      %v4103 = vunpack.c.l.b16 %v4073
      %v4104 = vunpack.c.l.b16 %v4074
      %v4105 = vunpack.c.l.b16 %v4075
      %v4106 = vunpack.c.l.b16 %v4076
      %v4107 = vunpack.c.l.b16 %v4077
      %v4108 = vunpack.c.l.b16 %v4078
      %v4109 = vunpack.c.l.b16 %v4079
      %v4110 = vpack.c.b16 %v4081, %v4080
      %v4111 = vpack.c.b16 %v4083, %v4082
      %v4112 = vpack.c.b16 %v4085, %v4084
      %v4113 = vpack.c.b16 %v4087, %v4086
      %v4114 = vpack.c.b16 %v4089, %v4088
      %v4115 = vpack.c.b16 %v4091, %v4090
      %v4116 = vpack.c.b16 %v4093, %v4092
      %v4117 = vpack.c.b16 %v4095, %v4094
      %v4118 = vpack.c.b16 %v4097, %v4096
      %v4119 = vpack.c.b16 %v4099, %v4098
      %v4120 = vpack.c.b16 %v4101, %v4100
      %v4121 = vpack.c.b16 %v4103, %v4102
      %v4122 = vpack.c.b16 %v4105, %v4104
      %v4123 = vpack.c.b16 %v4107, %v4106
      %v4124 = vpack.c.b16 %v4109, %v4108
      %vm4125 = vcmp.ne.s16.totalorder %v4110, 0
      %vm4126 = vcmp.ne.s16.totalorder %v4111, 0
      %vm4127 = vcmp.ne.s16.totalorder %v4112, 0
      %vm4128 = vcmp.ne.s16.totalorder %v4113, 0
      %vm4129 = vcmp.ne.s16.totalorder %v4114, 0
      %vm4130 = vcmp.ne.s16.totalorder %v4115, 0
      %vm4131 = vcmp.ne.s16.totalorder %v4116, 0
      %vm4132 = vcmp.ne.s16.totalorder %v4117, 0
      %vm4133 = vcmp.ne.s16.totalorder %v4118, 0
      %vm4134 = vcmp.ne.s16.totalorder %v4119, 0
      %vm4135 = vcmp.ne.s16.totalorder %v4120, 0
      %vm4136 = vcmp.ne.s16.totalorder %v4121, 0
      %vm4137 = vcmp.ne.s16.totalorder %v4122, 0
      %vm4138 = vcmp.ne.s16.totalorder %v4123, 0
      %vm4139 = vcmp.ne.s16.totalorder %v4124, 0
      %v4140 = vsel %vm4125, %v3955, 0
      %v4141 = vsel %vm4126, %v3833, 0
      %v4142 = vsel %vm4127, %v3841, 0
      %v4143 = vsel %vm4128, %v3849, 0
      %v4144 = vsel %vm4129, %v3857, 0
      %v4145 = vsel %vm4130, %v3865, 0
      %v4146 = vsel %vm4131, %v3873, 0
      %v4147 = vsel %vm4132, %v3881, 0
      %v4148 = vsel %vm4133, %v3889, 0
      %v4149 = vsel %vm4134, %v3897, 0
      %v4150 = vsel %vm4135, %v3905, 0
      %v4151 = vsel %vm4136, %v3913, 0
      %v4152 = vsel %vm4137, %v3921, 0
      %v4153 = vsel %vm4138, %v3929, 0
      %v4154 = vsel %vm4139, %v3937, 0
      %v4155 = vld [vmem:[%s19] sm:$0x3]
      %s4156 = scalar_lea.vmem %s19, 2
      %v4157 = vld [vmem:[%s4156] sm:$0x3]
      %v4159 = vsel %vm740, %v4157, 0
      %v4162 = vsel %vm740, 0, 0
      %v4164 = vsel %vm740, %v3321, 0
      %v4166 = vsel %vm740, %v3322, 0
      %v4168 = vsel %vm740, %v3323, 0
      %v4170 = vsel %vm740, %v3324, 0
      %v4172 = vsel %vm740, %v3325, 0
      %v4174 = vsel %vm740, %v3326, 0
      %v4176 = vsel %vm740, %v3327, 0
      %v4178 = vsel %vm740, %v3328, 0
      %v4180 = vsel %vm740, %v3329, 0
      %v4182 = vsel %vm740, %v3330, 0
      %v4184 = vsel %vm740, %v3331, 0
      %v4186 = vsel %vm740, %v3332, 0
      %v4188 = vsel %vm740, %v3333, 0
      %v4190 = vsel %vm740, %v3334, 0
      %v4192 = vsel %vm740, %v3335, 0
      %4194 = vmatprep.subr.bf16.mxu0 0
      %4195 = vmatpush1.bf16.xpose.msra.mxu0 %v4176
      %4196 = vmatprep.subr.bf16.mxu0 0
      %4197 = vmatpush1.bf16.xpose.msra.mxu0 %v4174
      %4198 = vmatprep.subr.bf16.mxu0 0
      %4199 = vmatpush1.bf16.xpose.msra.mxu0 %v4172
      %4200 = vmatprep.subr.bf16.mxu0 0
      %4201 = vmatpush1.bf16.xpose.msra.mxu0 %v4170
      %4202 = vmatprep.subr.bf16.mxu0 0
      %4203 = vmatpush1.bf16.xpose.msra.mxu0 %v4168
      %4204 = vmatprep.subr.bf16.mxu0 0
      %4205 = vmatpush1.bf16.xpose.msra.mxu0 %v4166
      %4206 = vmatprep.subr.bf16.mxu0 0
      %4207 = vmatpush1.bf16.xpose.msra.mxu0 %v4164
      %4208 = vmatprep.subr.bf16.mxu0 0
      %4209 = vmatpush1.bf16.xpose.msra.mxu0 %v4162
      %4210 = vmatprep.subr.bf16.mxu0 0
      %4211 = vmatpush2.bf16.xpose.msra.mxu0 %v4192
      %4212 = vmatprep.subr.bf16.mxu0 0
      %4213 = vmatpush2.bf16.xpose.msra.mxu0 %v4190
      %4214 = vmatprep.subr.bf16.mxu0 0
      %4215 = vmatpush2.bf16.xpose.msra.mxu0 %v4188
      %4216 = vmatprep.subr.bf16.mxu0 0
      %4217 = vmatpush2.bf16.xpose.msra.mxu0 %v4186
      %4218 = vmatprep.subr.bf16.mxu0 0
      %4219 = vmatpush2.bf16.xpose.msra.mxu0 %v4184
      %4220 = vmatprep.subr.bf16.mxu0 0
      %4221 = vmatpush2.bf16.xpose.msra.mxu0 %v4182
      %4222 = vmatprep.subr.bf16.mxu0 0
      %4223 = vmatpush2.bf16.xpose.msra.mxu0 %v4180
      %4224 = vmatprep.subr.bf16.mxu0 0
      %4225 = vmatpush2.bf16.xpose.msra.mxu0 %v4178
      %4226 = vmatprep.mubr.bf16.mxu0 0
      %4227 = vmatmul.mubr.bf16.gmra.mxu0 %v4159
      %v4228 = vpop.f32.mrf.mxu0
      %v4229 = vadd.f32 0.0, %v4228
      %v4230 = vpop.f32.mrf.mxu0
      %v4231 = vadd.f32 0.0, %v4230
      %v4232 = vpop.f32.mrf.mxu0
      %v4233 = vpop.f32.mrf.mxu0
      %4234 = vdwg.mxu0
      %v4236 = vsel %vm740, %v4155, 0
      %v4239 = vsel %vm740, %v4140, 0
      %v4242 = vsel %vm740, %v4141, 0
      %v4245 = vsel %vm740, %v4142, 0
      %v4248 = vsel %vm740, %v4143, 0
      %v4251 = vsel %vm740, %v4144, 0
      %v4254 = vsel %vm740, %v4145, 0
      %v4257 = vsel %vm740, %v4146, 0
      %v4260 = vsel %vm740, %v4147, 0
      %v4263 = vsel %vm740, %v4148, 0
      %v4266 = vsel %vm740, %v4149, 0
      %v4269 = vsel %vm740, %v4150, 0
      %v4272 = vsel %vm740, %v4151, 0
      %v4275 = vsel %vm740, %v4152, 0
      %v4278 = vsel %vm740, %v4153, 0
      %v4281 = vsel %vm740, %v4154, 0
      %4283 = vmatprep.subr.bf16.mxu0 0
      %4284 = vmatpush1.bf16.xpose.msra.mxu0 %v4257
      %4285 = vmatprep.subr.bf16.mxu0 0
      %4286 = vmatpush1.bf16.xpose.msra.mxu0 %v4254
      %4287 = vmatprep.subr.bf16.mxu0 0
      %4288 = vmatpush1.bf16.xpose.msra.mxu0 %v4251
      %4289 = vmatprep.subr.bf16.mxu0 0
      %4290 = vmatpush1.bf16.xpose.msra.mxu0 %v4248
      %4291 = vmatprep.subr.bf16.mxu0 0
      %4292 = vmatpush1.bf16.xpose.msra.mxu0 %v4245
      %4293 = vmatprep.subr.bf16.mxu0 0
      %4294 = vmatpush1.bf16.xpose.msra.mxu0 %v4242
      %4295 = vmatprep.subr.bf16.mxu0 0
      %4296 = vmatpush1.bf16.xpose.msra.mxu0 %v4239
      %4297 = vmatprep.subr.bf16.mxu0 0
      %4298 = vmatpush1.bf16.xpose.msra.mxu0 %v4162
      %4299 = vmatprep.subr.bf16.mxu0 0
      %4300 = vmatpush2.bf16.xpose.msra.mxu0 %v4281
      %4301 = vmatprep.subr.bf16.mxu0 0
      %4302 = vmatpush2.bf16.xpose.msra.mxu0 %v4278
      %4303 = vmatprep.subr.bf16.mxu0 0
      %4304 = vmatpush2.bf16.xpose.msra.mxu0 %v4275
      %4305 = vmatprep.subr.bf16.mxu0 0
      %4306 = vmatpush2.bf16.xpose.msra.mxu0 %v4272
      %4307 = vmatprep.subr.bf16.mxu0 0
      %4308 = vmatpush2.bf16.xpose.msra.mxu0 %v4269
      %4309 = vmatprep.subr.bf16.mxu0 0
      %4310 = vmatpush2.bf16.xpose.msra.mxu0 %v4266
      %4311 = vmatprep.subr.bf16.mxu0 0
      %4312 = vmatpush2.bf16.xpose.msra.mxu0 %v4263
      %4313 = vmatprep.subr.bf16.mxu0 0
      %4314 = vmatpush2.bf16.xpose.msra.mxu0 %v4260
      %4315 = vmatprep.mubr.bf16.mxu0 0
      %4316 = vmatmul.mubr.bf16.gmra.mxu0 %v4236
      %v4317 = vpop.f32.mrf.mxu0
      %v4318 = vadd.f32 %v4229, %v4317
      %v4319 = vpop.f32.mrf.mxu0
      %v4320 = vadd.f32 %v4231, %v4319
      %v4321 = vpop.f32.mrf.mxu0
      %v4322 = vpop.f32.mrf.mxu0
      %4323 = vdwg.mxu0
      %vm4324 = vsmask.f32 7424
      %v4325 = vrot.slane %v3823, 1
      %v4326 = vor.u32 %v3820, %v4325
      %v4327 = vrot.slane %v3830, 1
      %v4328 = vsel %vm4324, %v4326, %v4327
      %v4329 = vor.u32 %v3827, %v4327
      %v4330 = vrot.slane %v3838, 1
      %v4331 = vsel %vm4324, %v4329, %v4330
      %v4332 = vor.u32 %v3835, %v4330
      %v4333 = vrot.slane %v3846, 1
      %v4334 = vsel %vm4324, %v4332, %v4333
      %v4335 = vor.u32 %v3843, %v4333
      %v4336 = vrot.slane %v3854, 1
      %v4337 = vsel %vm4324, %v4335, %v4336
      %v4338 = vor.u32 %v3851, %v4336
      %v4339 = vrot.slane %v3862, 1
      %v4340 = vsel %vm4324, %v4338, %v4339
      %v4341 = vor.u32 %v3859, %v4339
      %v4342 = vrot.slane %v3870, 1
      %v4343 = vsel %vm4324, %v4341, %v4342
      %v4344 = vor.u32 %v3867, %v4342
      %v4345 = vrot.slane %v3878, 1
      %v4346 = vsel %vm4324, %v4344, %v4345
      %v4347 = vor.u32 %v3875, %v4345
      %v4348 = vrot.slane %v3886, 1
      %v4349 = vsel %vm4324, %v4347, %v4348
      %v4350 = vor.u32 %v3883, %v4348
      %v4351 = vrot.slane %v3894, 1
      %v4352 = vsel %vm4324, %v4350, %v4351
      %v4353 = vor.u32 %v3891, %v4351
      %v4354 = vrot.slane %v3902, 1
      %v4355 = vsel %vm4324, %v4353, %v4354
      %v4356 = vor.u32 %v3899, %v4354
      %v4357 = vrot.slane %v3910, 1
      %v4358 = vsel %vm4324, %v4356, %v4357
      %v4359 = vor.u32 %v3907, %v4357
      %v4360 = vrot.slane %v3918, 1
      %v4361 = vsel %vm4324, %v4359, %v4360
      %v4362 = vor.u32 %v3915, %v4360
      %v4363 = vrot.slane %v3926, 1
      %v4364 = vsel %vm4324, %v4362, %v4363
      %v4365 = vor.u32 %v3923, %v4363
      %v4366 = vrot.slane %v3934, 1
      %v4367 = vsel %vm4324, %v4365, %v4366
      %v4368 = vor.u32 %v3931, %v4366
      %v4370 = vshll.u32 %v3336, 16
      %v4372 = vrot.slane %v4370, 1
      %v4373 = vsel %vm4324, %v4368, %v4372
      %vm4390 = vcmask 1047552
      %vm4391 = vmand %vm4390, %vm4324
      %v4392 = vsel %vm4391, 0, %v4325
      %v4393 = vsel %vm3786, 1, 0
      %v4394 = vsel %vm3787, 1, 0
      %v4395 = vsel %vm3788, 1, 0
      %v4396 = vsel %vm3789, 1, 0
      %v4397 = vsel %vm3790, 1, 0
      %v4398 = vsel %vm3791, 1, 0
      %v4399 = vsel %vm3792, 1, 0
      %v4400 = vsel %vm3793, 1, 0
      %v4401 = vsel %vm3794, 1, 0
      %v4402 = vsel %vm3795, 1, 0
      %v4403 = vsel %vm3796, 1, 0
      %v4404 = vsel %vm3797, 1, 0
      %v4405 = vsel %vm3798, 1, 0
      %v4406 = vsel %vm3799, 1, 0
      %v4407 = vsel %vm3800, 1, 0
      %v4408 = vsel %vm3801, 1, 0
      %v4409 = vsel %vm3802, 1, 0
      %v4410 = vsel %vm3803, 1, 0
      %v4411 = vsel %vm3804, 1, 0
      %v4412 = vsel %vm3805, 1, 0
      %v4413 = vsel %vm3806, 1, 0
      %v4414 = vsel %vm3807, 1, 0
      %v4415 = vsel %vm3808, 1, 0
      %v4416 = vsel %vm3809, 1, 0
      %v4417 = vsel %vm3810, 1, 0
      %v4418 = vsel %vm3811, 1, 0
      %v4419 = vsel %vm3812, 1, 0
      %v4420 = vsel %vm3813, 1, 0
      %v4421 = vsel %vm3814, 1, 0
      %v4422 = vsel %vm3815, 1, 0
      %v4423 = vsel %vm3816, 1, 0
      %v4424 = vsel %vm3817, 1, 0
      %vm4425 = vcmp.eq.s32.totalorder %v4393, 1
      %vm4426 = vcmp.eq.s32.totalorder %v4394, 1
      %vm4427 = vcmp.eq.s32.totalorder %v4395, 1
      %vm4428 = vcmp.eq.s32.totalorder %v4396, 1
      %vm4429 = vcmp.eq.s32.totalorder %v4397, 1
      %vm4430 = vcmp.eq.s32.totalorder %v4398, 1
      %vm4431 = vcmp.eq.s32.totalorder %v4399, 1
      %vm4432 = vcmp.eq.s32.totalorder %v4400, 1
      %vm4433 = vcmp.eq.s32.totalorder %v4401, 1
      %vm4434 = vcmp.eq.s32.totalorder %v4402, 1
      %vm4435 = vcmp.eq.s32.totalorder %v4403, 1
      %vm4436 = vcmp.eq.s32.totalorder %v4404, 1
      %vm4437 = vcmp.eq.s32.totalorder %v4405, 1
      %vm4438 = vcmp.eq.s32.totalorder %v4406, 1
      %vm4439 = vcmp.eq.s32.totalorder %v4407, 1
      %vm4440 = vcmp.eq.s32.totalorder %v4408, 1
      %vm4441 = vcmp.eq.s32.totalorder %v4409, 1
      %vm4442 = vcmp.eq.s32.totalorder %v4410, 1
      %vm4443 = vcmp.eq.s32.totalorder %v4411, 1
      %vm4444 = vcmp.eq.s32.totalorder %v4412, 1
      %vm4445 = vcmp.eq.s32.totalorder %v4413, 1
      %vm4446 = vcmp.eq.s32.totalorder %v4414, 1
      %vm4447 = vcmp.eq.s32.totalorder %v4415, 1
      %vm4448 = vcmp.eq.s32.totalorder %v4416, 1
      %vm4449 = vcmp.eq.s32.totalorder %v4417, 1
      %vm4450 = vcmp.eq.s32.totalorder %v4418, 1
      %vm4451 = vcmp.eq.s32.totalorder %v4419, 1
      %vm4452 = vcmp.eq.s32.totalorder %v4420, 1
      %vm4453 = vcmp.eq.s32.totalorder %v4421, 1
      %vm4454 = vcmp.eq.s32.totalorder %v4422, 1
      %vm4455 = vcmp.eq.s32.totalorder %v4423, 1
      %vm4456 = vcmp.eq.s32.totalorder %v4424, 1
      %vm4457 = vmpackc.low %vm4425, %vm4425
      %vm4458 = vmpackc.low %vm4426, %vm4426
      %vm4459 = vmpackc.low %vm4427, %vm4427
      %vm4460 = vmpackc.low %vm4428, %vm4428
      %vm4461 = vmpackc.low %vm4429, %vm4429
      %vm4462 = vmpackc.low %vm4430, %vm4430
      %vm4463 = vmpackc.low %vm4431, %vm4431
      %vm4464 = vmpackc.low %vm4432, %vm4432
      %vm4465 = vmpackc.low %vm4433, %vm4433
      %vm4466 = vmpackc.low %vm4434, %vm4434
      %vm4467 = vmpackc.low %vm4435, %vm4435
      %vm4468 = vmpackc.low %vm4436, %vm4436
      %vm4469 = vmpackc.low %vm4437, %vm4437
      %vm4470 = vmpackc.low %vm4438, %vm4438
      %vm4471 = vmpackc.low %vm4439, %vm4439
      %vm4472 = vmpackc.low %vm4440, %vm4440
      %vm4473 = vmpackc.low %vm4441, %vm4441
      %vm4474 = vmpackc.low %vm4442, %vm4442
      %vm4475 = vmpackc.low %vm4443, %vm4443
      %vm4476 = vmpackc.low %vm4444, %vm4444
      %vm4477 = vmpackc.low %vm4445, %vm4445
      %vm4478 = vmpackc.low %vm4446, %vm4446
      %vm4479 = vmpackc.low %vm4447, %vm4447
      %vm4480 = vmpackc.low %vm4448, %vm4448
      %vm4481 = vmpackc.low %vm4449, %vm4449
      %vm4482 = vmpackc.low %vm4450, %vm4450
      %vm4483 = vmpackc.low %vm4451, %vm4451
      %vm4484 = vmpackc.low %vm4452, %vm4452
      %vm4485 = vmpackc.low %vm4453, %vm4453
      %vm4486 = vmpackc.low %vm4454, %vm4454
      %vm4487 = vmpackc.low %vm4455, %vm4455
      %vm4488 = vmpackc.low %vm4456, %vm4456
      %v4489 = vsel %vm4457, 65537, 0
      %v4490 = vsel %vm4458, 65537, 0
      %v4491 = vsel %vm4459, 65537, 0
      %v4492 = vsel %vm4460, 65537, 0
      %v4493 = vsel %vm4461, 65537, 0
      %v4494 = vsel %vm4462, 65537, 0
      %v4495 = vsel %vm4463, 65537, 0
      %v4496 = vsel %vm4464, 65537, 0
      %v4497 = vsel %vm4465, 65537, 0
      %v4498 = vsel %vm4466, 65537, 0
      %v4499 = vsel %vm4467, 65537, 0
      %v4500 = vsel %vm4468, 65537, 0
      %v4501 = vsel %vm4469, 65537, 0
      %v4502 = vsel %vm4470, 65537, 0
      %v4503 = vsel %vm4471, 65537, 0
      %v4504 = vsel %vm4472, 65537, 0
      %v4505 = vsel %vm4473, 65537, 0
      %v4506 = vsel %vm4474, 65537, 0
      %v4507 = vsel %vm4475, 65537, 0
      %v4508 = vsel %vm4476, 65537, 0
      %v4509 = vsel %vm4477, 65537, 0
      %v4510 = vsel %vm4478, 65537, 0
      %v4511 = vsel %vm4479, 65537, 0
      %v4512 = vsel %vm4480, 65537, 0
      %v4513 = vsel %vm4481, 65537, 0
      %v4514 = vsel %vm4482, 65537, 0
      %v4515 = vsel %vm4483, 65537, 0
      %v4516 = vsel %vm4484, 65537, 0
      %v4517 = vsel %vm4485, 65537, 0
      %v4518 = vsel %vm4486, 65537, 0
      %v4519 = vsel %vm4487, 65537, 0
      %v4520 = vsel %vm4488, 65537, 0
      %v4521 = vunpack.c.l.b16 %v4489
      %v4522 = vunpack.c.l.b16 %v4490
      %v4523 = vunpack.c.l.b16 %v4491
      %v4524 = vunpack.c.l.b16 %v4492
      %v4525 = vunpack.c.l.b16 %v4493
      %v4526 = vunpack.c.l.b16 %v4494
      %v4527 = vunpack.c.l.b16 %v4495
      %v4528 = vunpack.c.l.b16 %v4496
      %v4529 = vunpack.c.l.b16 %v4497
      %v4530 = vunpack.c.l.b16 %v4498
      %v4531 = vunpack.c.l.b16 %v4499
      %v4532 = vunpack.c.l.b16 %v4500
      %v4533 = vunpack.c.l.b16 %v4501
      %v4534 = vunpack.c.l.b16 %v4502
      %v4535 = vunpack.c.l.b16 %v4503
      %v4536 = vunpack.c.l.b16 %v4504
      %v4537 = vunpack.c.l.b16 %v4505
      %v4538 = vunpack.c.l.b16 %v4506
      %v4539 = vunpack.c.l.b16 %v4507
      %v4540 = vunpack.c.l.b16 %v4508
      %v4541 = vunpack.c.l.b16 %v4509
      %v4542 = vunpack.c.l.b16 %v4510
      %v4543 = vunpack.c.l.b16 %v4511
      %v4544 = vunpack.c.l.b16 %v4512
      %v4545 = vunpack.c.l.b16 %v4513
      %v4546 = vunpack.c.l.b16 %v4514
      %v4547 = vunpack.c.l.b16 %v4515
      %v4548 = vunpack.c.l.b16 %v4516
      %v4549 = vunpack.c.l.b16 %v4517
      %v4550 = vunpack.c.l.b16 %v4518
      %v4551 = vunpack.c.l.b16 %v4519
      %v4552 = vunpack.c.l.b16 %v4520
      %v4553 = vpack.c.b16 %v4522, %v4521
      %v4554 = vpack.c.b16 %v4524, %v4523
      %v4555 = vpack.c.b16 %v4526, %v4525
      %v4556 = vpack.c.b16 %v4528, %v4527
      %v4557 = vpack.c.b16 %v4530, %v4529
      %v4558 = vpack.c.b16 %v4532, %v4531
      %v4559 = vpack.c.b16 %v4534, %v4533
      %v4560 = vpack.c.b16 %v4536, %v4535
      %v4561 = vpack.c.b16 %v4538, %v4537
      %v4562 = vpack.c.b16 %v4540, %v4539
      %v4563 = vpack.c.b16 %v4542, %v4541
      %v4564 = vpack.c.b16 %v4544, %v4543
      %v4565 = vpack.c.b16 %v4546, %v4545
      %v4566 = vpack.c.b16 %v4548, %v4547
      %v4567 = vpack.c.b16 %v4550, %v4549
      %v4568 = vpack.c.b16 %v4552, %v4551
      %vm4569 = vcmp.ne.s16.totalorder %v4553, 0
      %vm4570 = vcmp.ne.s16.totalorder %v4554, 0
      %vm4571 = vcmp.ne.s16.totalorder %v4555, 0
      %vm4572 = vcmp.ne.s16.totalorder %v4556, 0
      %vm4573 = vcmp.ne.s16.totalorder %v4557, 0
      %vm4574 = vcmp.ne.s16.totalorder %v4558, 0
      %vm4575 = vcmp.ne.s16.totalorder %v4559, 0
      %vm4576 = vcmp.ne.s16.totalorder %v4560, 0
      %vm4577 = vcmp.ne.s16.totalorder %v4561, 0
      %vm4578 = vcmp.ne.s16.totalorder %v4562, 0
      %vm4579 = vcmp.ne.s16.totalorder %v4563, 0
      %vm4580 = vcmp.ne.s16.totalorder %v4564, 0
      %vm4581 = vcmp.ne.s16.totalorder %v4565, 0
      %vm4582 = vcmp.ne.s16.totalorder %v4566, 0
      %vm4583 = vcmp.ne.s16.totalorder %v4567, 0
      %vm4584 = vcmp.ne.s16.totalorder %v4568, 0
      %v4585 = vsel %vm4569, %v4392, 0
      %v4586 = vsel %vm4570, %v4328, 0
      %v4587 = vsel %vm4571, %v4331, 0
      %v4588 = vsel %vm4572, %v4334, 0
      %v4589 = vsel %vm4573, %v4337, 0
      %v4590 = vsel %vm4574, %v4340, 0
      %v4591 = vsel %vm4575, %v4343, 0
      %v4592 = vsel %vm4576, %v4346, 0
      %v4593 = vsel %vm4577, %v4349, 0
      %v4594 = vsel %vm4578, %v4352, 0
      %v4595 = vsel %vm4579, %v4355, 0
      %v4596 = vsel %vm4580, %v4358, 0
      %v4597 = vsel %vm4581, %v4361, 0
      %v4598 = vsel %vm4582, %v4364, 0
      %v4599 = vsel %vm4583, %v4367, 0
      %v4600 = vsel %vm4584, %v4373, 0
      %s4601 = scalar_lea.vmem %s19, 4
      %v4602 = vld [vmem:[%s4601] sm:$0x3]
      %v4604 = vsel %vm740, %v4602, 0
      %v4607 = vsel %vm740, %v4585, 0
      %v4610 = vsel %vm740, %v4586, 0
      %v4613 = vsel %vm740, %v4587, 0
      %v4616 = vsel %vm740, %v4588, 0
      %v4619 = vsel %vm740, %v4589, 0
      %v4622 = vsel %vm740, %v4590, 0
      %v4625 = vsel %vm740, %v4591, 0
      %v4628 = vsel %vm740, %v4592, 0
      %v4631 = vsel %vm740, %v4593, 0
      %v4634 = vsel %vm740, %v4594, 0
      %v4637 = vsel %vm740, %v4595, 0
      %v4640 = vsel %vm740, %v4596, 0
      %v4643 = vsel %vm740, %v4597, 0
      %v4646 = vsel %vm740, %v4598, 0
      %v4649 = vsel %vm740, %v4599, 0
      %v4652 = vsel %vm740, %v4600, 0
      %4654 = vmatprep.subr.bf16.mxu0 0
      %4655 = vmatpush1.bf16.xpose.msra.mxu0 %v4628
      %4656 = vmatprep.subr.bf16.mxu0 0
      %4657 = vmatpush1.bf16.xpose.msra.mxu0 %v4625
      %4658 = vmatprep.subr.bf16.mxu0 0
      %4659 = vmatpush1.bf16.xpose.msra.mxu0 %v4622
      %4660 = vmatprep.subr.bf16.mxu0 0
      %4661 = vmatpush1.bf16.xpose.msra.mxu0 %v4619
      %4662 = vmatprep.subr.bf16.mxu0 0
      %4663 = vmatpush1.bf16.xpose.msra.mxu0 %v4616
      %4664 = vmatprep.subr.bf16.mxu0 0
      %4665 = vmatpush1.bf16.xpose.msra.mxu0 %v4613
      %4666 = vmatprep.subr.bf16.mxu0 0
      %4667 = vmatpush1.bf16.xpose.msra.mxu0 %v4610
      %4668 = vmatprep.subr.bf16.mxu0 0
      %4669 = vmatpush1.bf16.xpose.msra.mxu0 %v4607
      %4670 = vmatprep.subr.bf16.mxu0 0
      %4671 = vmatpush2.bf16.xpose.msra.mxu0 %v4652
      %4672 = vmatprep.subr.bf16.mxu0 0
      %4673 = vmatpush2.bf16.xpose.msra.mxu0 %v4649
      %4674 = vmatprep.subr.bf16.mxu0 0
      %4675 = vmatpush2.bf16.xpose.msra.mxu0 %v4646
      %4676 = vmatprep.subr.bf16.mxu0 0
      %4677 = vmatpush2.bf16.xpose.msra.mxu0 %v4643
      %4678 = vmatprep.subr.bf16.mxu0 0
      %4679 = vmatpush2.bf16.xpose.msra.mxu0 %v4640
      %4680 = vmatprep.subr.bf16.mxu0 0
      %4681 = vmatpush2.bf16.xpose.msra.mxu0 %v4637
      %4682 = vmatprep.subr.bf16.mxu0 0
      %4683 = vmatpush2.bf16.xpose.msra.mxu0 %v4634
      %4684 = vmatprep.subr.bf16.mxu0 0
      %4685 = vmatpush2.bf16.xpose.msra.mxu0 %v4631
      %4686 = vmatprep.mubr.bf16.mxu0 0
      %4687 = vmatmul.mubr.bf16.gmra.mxu0 %v4604
      %v4688 = vpop.f32.mrf.mxu0
      %v4689 = vadd.f32 0.0, %v4688
      %v4690 = vpop.f32.mrf.mxu0
      %v4691 = vadd.f32 0.0, %v4690
      %v4692 = vpop.f32.mrf.mxu0
      %v4693 = vpop.f32.mrf.mxu0
      %4694 = vdwg.mxu0
      %v4695 = vadd.f32 %v4318, %v4689
      %v4696 = vadd.f32 %v4320, %v4691
      %v4697 = vshrl.u32 %v3336, 16
      %v4699 = vrot.slane %v4697, 7
      %v4700 = vor.u32 %v4699, %v4370
      %v4701 = vsel %vm3818, %v3933, %v4700
      %vm4703 = vmpackc.low %vm3988, %vm3988
      %vm4704 = vmpackc.low %vm3989, %vm3989
      %v4705 = vsel %vm4703, 65537, 0
      %v4706 = vsel %vm4704, 65537, 0
      %v4707 = vunpack.c.l.b16 %v4705
      %v4708 = vunpack.c.l.b16 %v4706
      %v4709 = vpack.c.b16 %v4708, %v4707
      %vm4710 = vcmp.ne.s16.totalorder %v4709, 0
      %v4711 = vsel %vm4710, %v3955, 0
      %v4712 = vsel %vm4125, %v3833, 0
      %v4713 = vsel %vm4126, %v3841, 0
      %v4714 = vsel %vm4127, %v3849, 0
      %v4715 = vsel %vm4128, %v3857, 0
      %v4716 = vsel %vm4129, %v3865, 0
      %v4717 = vsel %vm4130, %v3873, 0
      %v4718 = vsel %vm4131, %v3881, 0
      %v4719 = vsel %vm4132, %v3889, 0
      %v4720 = vsel %vm4133, %v3897, 0
      %v4721 = vsel %vm4134, %v3905, 0
      %v4722 = vsel %vm4135, %v3913, 0
      %v4723 = vsel %vm4136, %v3921, 0
      %v4724 = vsel %vm4137, %v3929, 0
      %v4725 = vsel %vm4138, %v3937, 0
      %v4726 = vsel %vm4139, %v4701, 0
      %s4727 = scalar_lea.vmem %s19, 6
      %v4728 = vld [vmem:[%s4727] sm:$0x3]
      %v4730 = vsel %vm740, %v4728, 0
      %v4733 = vsel %vm740, %v4711, 0
      %v4736 = vsel %vm740, %v4712, 0
      %v4739 = vsel %vm740, %v4713, 0
      %v4742 = vsel %vm740, %v4714, 0
      %v4745 = vsel %vm740, %v4715, 0
      %v4748 = vsel %vm740, %v4716, 0
      %v4751 = vsel %vm740, %v4717, 0
      %v4754 = vsel %vm740, %v4718, 0
      %v4757 = vsel %vm740, %v4719, 0
      %v4760 = vsel %vm740, %v4720, 0
      %v4763 = vsel %vm740, %v4721, 0
      %v4766 = vsel %vm740, %v4722, 0
      %v4769 = vsel %vm740, %v4723, 0
      %v4772 = vsel %vm740, %v4724, 0
      %v4775 = vsel %vm740, %v4725, 0
      %v4778 = vsel %vm740, %v4726, 0
      %4780 = vmatprep.subr.bf16.mxu0 0
      %4781 = vmatpush1.bf16.xpose.msra.mxu0 %v4754
      %4782 = vmatprep.subr.bf16.mxu0 0
      %4783 = vmatpush1.bf16.xpose.msra.mxu0 %v4751
      %4784 = vmatprep.subr.bf16.mxu0 0
      %4785 = vmatpush1.bf16.xpose.msra.mxu0 %v4748
      %4786 = vmatprep.subr.bf16.mxu0 0
      %4787 = vmatpush1.bf16.xpose.msra.mxu0 %v4745
      %4788 = vmatprep.subr.bf16.mxu0 0
      %4789 = vmatpush1.bf16.xpose.msra.mxu0 %v4742
      %4790 = vmatprep.subr.bf16.mxu0 0
      %4791 = vmatpush1.bf16.xpose.msra.mxu0 %v4739
      %4792 = vmatprep.subr.bf16.mxu0 0
      %4793 = vmatpush1.bf16.xpose.msra.mxu0 %v4736
      %4794 = vmatprep.subr.bf16.mxu0 0
      %4795 = vmatpush1.bf16.xpose.msra.mxu0 %v4733
      %4796 = vmatprep.subr.bf16.mxu0 0
      %4797 = vmatpush2.bf16.xpose.msra.mxu0 %v4778
      %4798 = vmatprep.subr.bf16.mxu0 0
      %4799 = vmatpush2.bf16.xpose.msra.mxu0 %v4775
      %4800 = vmatprep.subr.bf16.mxu0 0
      %4801 = vmatpush2.bf16.xpose.msra.mxu0 %v4772
      %4802 = vmatprep.subr.bf16.mxu0 0
      %4803 = vmatpush2.bf16.xpose.msra.mxu0 %v4769
      %4804 = vmatprep.subr.bf16.mxu0 0
      %4805 = vmatpush2.bf16.xpose.msra.mxu0 %v4766
      %4806 = vmatprep.subr.bf16.mxu0 0
      %4807 = vmatpush2.bf16.xpose.msra.mxu0 %v4763
      %4808 = vmatprep.subr.bf16.mxu0 0
      %4809 = vmatpush2.bf16.xpose.msra.mxu0 %v4760
      %4810 = vmatprep.subr.bf16.mxu0 0
      %4811 = vmatpush2.bf16.xpose.msra.mxu0 %v4757
      %4812 = vmatprep.mubr.bf16.mxu0 0
      %4813 = vmatmul.mubr.bf16.gmra.mxu0 %v4730
      %v4814 = vpop.f32.mrf.mxu0
      %v4815 = vadd.f32 0.0, %v4814
      %v4816 = vpop.f32.mrf.mxu0
      %v4817 = vadd.f32 0.0, %v4816
      %v4818 = vpop.f32.mrf.mxu0
      %v4819 = vpop.f32.mrf.mxu0
      %4820 = vdwg.mxu0
      %v4821 = vadd.f32 %v4695, %v4815
      %v4822 = vadd.f32 %v4696, %v4817
      %s4823 = scalar_lea.vmem %s19, 8
      %v4824 = vld [vmem:[%s4823] sm:$0x3]
      %v4826 = vsel %vm740, %v4824, 0
      %v4828 = vsel %vm740, %v3336, 0
      %4830 = vmatprep.subr.bf16.mxu0 0
      %4831 = vmatpush1.bf16.xpose.msra.mxu0 %v4178
      %4832 = vmatprep.subr.bf16.mxu0 0
      %4833 = vmatpush1.bf16.xpose.msra.mxu0 %v4176
      %4834 = vmatprep.subr.bf16.mxu0 0
      %4835 = vmatpush1.bf16.xpose.msra.mxu0 %v4174
      %4836 = vmatprep.subr.bf16.mxu0 0
      %4837 = vmatpush1.bf16.xpose.msra.mxu0 %v4172
      %4838 = vmatprep.subr.bf16.mxu0 0
      %4839 = vmatpush1.bf16.xpose.msra.mxu0 %v4170
      %4840 = vmatprep.subr.bf16.mxu0 0
      %4841 = vmatpush1.bf16.xpose.msra.mxu0 %v4168
      %4842 = vmatprep.subr.bf16.mxu0 0
      %4843 = vmatpush1.bf16.xpose.msra.mxu0 %v4166
      %4844 = vmatprep.subr.bf16.mxu0 0
      %4845 = vmatpush1.bf16.xpose.msra.mxu0 %v4164
      %4846 = vmatprep.subr.bf16.mxu0 0
      %4847 = vmatpush2.bf16.xpose.msra.mxu0 %v4828
      %4848 = vmatprep.subr.bf16.mxu0 0
      %4849 = vmatpush2.bf16.xpose.msra.mxu0 %v4192
      %4850 = vmatprep.subr.bf16.mxu0 0
      %4851 = vmatpush2.bf16.xpose.msra.mxu0 %v4190
      %4852 = vmatprep.subr.bf16.mxu0 0
      %4853 = vmatpush2.bf16.xpose.msra.mxu0 %v4188
      %4854 = vmatprep.subr.bf16.mxu0 0
      %4855 = vmatpush2.bf16.xpose.msra.mxu0 %v4186
      %4856 = vmatprep.subr.bf16.mxu0 0
      %4857 = vmatpush2.bf16.xpose.msra.mxu0 %v4184
      %4858 = vmatprep.subr.bf16.mxu0 0
      %4859 = vmatpush2.bf16.xpose.msra.mxu0 %v4182
      %4860 = vmatprep.subr.bf16.mxu0 0
      %4861 = vmatpush2.bf16.xpose.msra.mxu0 %v4180
      %4862 = vmatprep.mubr.bf16.mxu0 0
      %4863 = vmatmul.mubr.bf16.gmra.mxu0 %v4826
      %v4864 = vpop.f32.mrf.mxu0
      %v4865 = vadd.f32 0.0, %v4864
      %v4866 = vpop.f32.mrf.mxu0
      %v4867 = vadd.f32 0.0, %v4866
      %v4868 = vpop.f32.mrf.mxu0
      %v4869 = vpop.f32.mrf.mxu0
      %4870 = vdwg.mxu0
      %v4871 = vadd.f32 %v4821, %v4865
      %v4872 = vadd.f32 %v4822, %v4867
      %v4873 = vor.u32 %v4697, %v4372
      %v4875 = vsel %vm4391, %v4873, 0
      %v4876 = vsel %vm4569, %v4328, 0
      %v4877 = vsel %vm4570, %v4331, 0
      %v4878 = vsel %vm4571, %v4334, 0
      %v4879 = vsel %vm4572, %v4337, 0
      %v4880 = vsel %vm4573, %v4340, 0
      %v4881 = vsel %vm4574, %v4343, 0
      %v4882 = vsel %vm4575, %v4346, 0
      %v4883 = vsel %vm4576, %v4349, 0
      %v4884 = vsel %vm4577, %v4352, 0
      %v4885 = vsel %vm4578, %v4355, 0
      %v4886 = vsel %vm4579, %v4358, 0
      %v4887 = vsel %vm4580, %v4361, 0
      %v4888 = vsel %vm4581, %v4364, 0
      %v4889 = vsel %vm4582, %v4367, 0
      %v4890 = vsel %vm4583, %v4373, 0
      %v4891 = vsel %vm4584, %v4875, 0
      %s4892 = scalar_lea.vmem %s19, 10
      %v4893 = vld [vmem:[%s4892] sm:$0x3]
      %v4895 = vsel %vm740, %v4893, 0
      %v4898 = vsel %vm740, %v4876, 0
      %v4901 = vsel %vm740, %v4877, 0
      %v4904 = vsel %vm740, %v4878, 0
      %v4907 = vsel %vm740, %v4879, 0
      %v4910 = vsel %vm740, %v4880, 0
      %v4913 = vsel %vm740, %v4881, 0
      %v4916 = vsel %vm740, %v4882, 0
      %v4919 = vsel %vm740, %v4883, 0
      %v4922 = vsel %vm740, %v4884, 0
      %v4925 = vsel %vm740, %v4885, 0
      %v4928 = vsel %vm740, %v4886, 0
      %v4931 = vsel %vm740, %v4887, 0
      %v4934 = vsel %vm740, %v4888, 0
      %v4937 = vsel %vm740, %v4889, 0
      %v4940 = vsel %vm740, %v4890, 0
      %v4943 = vsel %vm740, %v4891, 0
      %4945 = vmatprep.subr.bf16.mxu0 0
      %4946 = vmatpush1.bf16.xpose.msra.mxu0 %v4919
      %4947 = vmatprep.subr.bf16.mxu0 0
      %4948 = vmatpush1.bf16.xpose.msra.mxu0 %v4916
      %4949 = vmatprep.subr.bf16.mxu0 0
      %4950 = vmatpush1.bf16.xpose.msra.mxu0 %v4913
      %4951 = vmatprep.subr.bf16.mxu0 0
      %4952 = vmatpush1.bf16.xpose.msra.mxu0 %v4910
      %4953 = vmatprep.subr.bf16.mxu0 0
      %4954 = vmatpush1.bf16.xpose.msra.mxu0 %v4907
      %4955 = vmatprep.subr.bf16.mxu0 0
      %4956 = vmatpush1.bf16.xpose.msra.mxu0 %v4904
      %4957 = vmatprep.subr.bf16.mxu0 0
      %4958 = vmatpush1.bf16.xpose.msra.mxu0 %v4901
      %4959 = vmatprep.subr.bf16.mxu0 0
      %4960 = vmatpush1.bf16.xpose.msra.mxu0 %v4898
      %4961 = vmatprep.subr.bf16.mxu0 0
      %4962 = vmatpush2.bf16.xpose.msra.mxu0 %v4943
      %4963 = vmatprep.subr.bf16.mxu0 0
      %4964 = vmatpush2.bf16.xpose.msra.mxu0 %v4940
      %4965 = vmatprep.subr.bf16.mxu0 0
      %4966 = vmatpush2.bf16.xpose.msra.mxu0 %v4937
      %4967 = vmatprep.subr.bf16.mxu0 0
      %4968 = vmatpush2.bf16.xpose.msra.mxu0 %v4934
      %4969 = vmatprep.subr.bf16.mxu0 0
      %4970 = vmatpush2.bf16.xpose.msra.mxu0 %v4931
      %4971 = vmatprep.subr.bf16.mxu0 0
      %4972 = vmatpush2.bf16.xpose.msra.mxu0 %v4928
      %4973 = vmatprep.subr.bf16.mxu0 0
      %4974 = vmatpush2.bf16.xpose.msra.mxu0 %v4925
      %4975 = vmatprep.subr.bf16.mxu0 0
      %4976 = vmatpush2.bf16.xpose.msra.mxu0 %v4922
      %4977 = vmatprep.mubr.bf16.mxu0 0
      %4978 = vmatmul.mubr.bf16.gmra.mxu0 %v4895
      %v4979 = vpop.f32.mrf.mxu0
      %v4980 = vadd.f32 0.0, %v4979
      %v4981 = vpop.f32.mrf.mxu0
      %v4982 = vadd.f32 0.0, %v4981
      %v4983 = vpop.f32.mrf.mxu0
      %v4984 = vpop.f32.mrf.mxu0
      %4985 = vdwg.mxu0
      %v4986 = vadd.f32 %v4871, %v4980
      %v4987 = vadd.f32 %v4872, %v4982
      %v4989 = vsel %vm3954, %v4699, 0
      %v4990 = vsel %vm4710, %v3833, 0
      %v4991 = vsel %vm4125, %v3841, 0
      %v4992 = vsel %vm4126, %v3849, 0
      %v4993 = vsel %vm4127, %v3857, 0
      %v4994 = vsel %vm4128, %v3865, 0
      %v4995 = vsel %vm4129, %v3873, 0
      %v4996 = vsel %vm4130, %v3881, 0
      %v4997 = vsel %vm4131, %v3889, 0
      %v4998 = vsel %vm4132, %v3897, 0
      %v4999 = vsel %vm4133, %v3905, 0
      %v5000 = vsel %vm4134, %v3913, 0
      %v5001 = vsel %vm4135, %v3921, 0
      %v5002 = vsel %vm4136, %v3929, 0
      %v5003 = vsel %vm4137, %v3937, 0
      %v5004 = vsel %vm4138, %v4701, 0
      %v5005 = vsel %vm4139, %v4989, 0
      %s5006 = scalar_lea.vmem %s19, 12
      %v5007 = vld [vmem:[%s5006] sm:$0x3]
      %v5009 = vsel %vm740, %v5007, 0
      %v5012 = vsel %vm740, %v4990, 0
      %v5015 = vsel %vm740, %v4991, 0
      %v5018 = vsel %vm740, %v4992, 0
      %v5021 = vsel %vm740, %v4993, 0
      %v5024 = vsel %vm740, %v4994, 0
      %v5027 = vsel %vm740, %v4995, 0
      %v5030 = vsel %vm740, %v4996, 0
      %v5033 = vsel %vm740, %v4997, 0
      %v5036 = vsel %vm740, %v4998, 0
      %v5039 = vsel %vm740, %v4999, 0
      %v5042 = vsel %vm740, %v5000, 0
      %v5045 = vsel %vm740, %v5001, 0
      %v5048 = vsel %vm740, %v5002, 0
      %v5051 = vsel %vm740, %v5003, 0
      %v5054 = vsel %vm740, %v5004, 0
      %v5057 = vsel %vm740, %v5005, 0
      %5059 = vmatprep.subr.bf16.mxu0 0
      %5060 = vmatpush1.bf16.xpose.msra.mxu0 %v5033
      %5061 = vmatprep.subr.bf16.mxu0 0
      %5062 = vmatpush1.bf16.xpose.msra.mxu0 %v5030
      %5063 = vmatprep.subr.bf16.mxu0 0
      %5064 = vmatpush1.bf16.xpose.msra.mxu0 %v5027
      %5065 = vmatprep.subr.bf16.mxu0 0
      %5066 = vmatpush1.bf16.xpose.msra.mxu0 %v5024
      %5067 = vmatprep.subr.bf16.mxu0 0
      %5068 = vmatpush1.bf16.xpose.msra.mxu0 %v5021
      %5069 = vmatprep.subr.bf16.mxu0 0
      %5070 = vmatpush1.bf16.xpose.msra.mxu0 %v5018
      %5071 = vmatprep.subr.bf16.mxu0 0
      %5072 = vmatpush1.bf16.xpose.msra.mxu0 %v5015
      %5073 = vmatprep.subr.bf16.mxu0 0
      %5074 = vmatpush1.bf16.xpose.msra.mxu0 %v5012
      %5075 = vmatprep.subr.bf16.mxu0 0
      %5076 = vmatpush2.bf16.xpose.msra.mxu0 %v5057
      %5077 = vmatprep.subr.bf16.mxu0 0
      %5078 = vmatpush2.bf16.xpose.msra.mxu0 %v5054
      %5079 = vmatprep.subr.bf16.mxu0 0
      %5080 = vmatpush2.bf16.xpose.msra.mxu0 %v5051
      %5081 = vmatprep.subr.bf16.mxu0 0
      %5082 = vmatpush2.bf16.xpose.msra.mxu0 %v5048
      %5083 = vmatprep.subr.bf16.mxu0 0
      %5084 = vmatpush2.bf16.xpose.msra.mxu0 %v5045
      %5085 = vmatprep.subr.bf16.mxu0 0
      %5086 = vmatpush2.bf16.xpose.msra.mxu0 %v5042
      %5087 = vmatprep.subr.bf16.mxu0 0
      %5088 = vmatpush2.bf16.xpose.msra.mxu0 %v5039
      %5089 = vmatprep.subr.bf16.mxu0 0
      %5090 = vmatpush2.bf16.xpose.msra.mxu0 %v5036
      %5091 = vmatprep.mubr.bf16.mxu0 0
      %5092 = vmatmul.mubr.bf16.gmra.mxu0 %v5009
      %v5093 = vpop.f32.mrf.mxu0
      %v5094 = vadd.f32 0.0, %v5093
      %v5095 = vpop.f32.mrf.mxu0
      %v5096 = vadd.f32 0.0, %v5095
      %v5097 = vpop.f32.mrf.mxu0
      %v5098 = vpop.f32.mrf.mxu0
      %5099 = vdwg.mxu0
      %v5100 = vadd.f32 %v4986, %v5094
      %v5101 = vadd.f32 %v4987, %v5096
      %s5102 = scalar_lea.vmem %s19, 14
      %v5103 = vld [vmem:[%s5102] sm:$0x3]
      %v5105 = vsel %vm740, %v5103, 0
      %5107 = vmatprep.subr.bf16.mxu0 0
      %5108 = vmatpush1.bf16.xpose.msra.mxu0 %v4180
      %5109 = vmatprep.subr.bf16.mxu0 0
      %5110 = vmatpush1.bf16.xpose.msra.mxu0 %v4178
      %5111 = vmatprep.subr.bf16.mxu0 0
      %5112 = vmatpush1.bf16.xpose.msra.mxu0 %v4176
      %5113 = vmatprep.subr.bf16.mxu0 0
      %5114 = vmatpush1.bf16.xpose.msra.mxu0 %v4174
      %5115 = vmatprep.subr.bf16.mxu0 0
      %5116 = vmatpush1.bf16.xpose.msra.mxu0 %v4172
      %5117 = vmatprep.subr.bf16.mxu0 0
      %5118 = vmatpush1.bf16.xpose.msra.mxu0 %v4170
      %5119 = vmatprep.subr.bf16.mxu0 0
      %5120 = vmatpush1.bf16.xpose.msra.mxu0 %v4168
      %5121 = vmatprep.subr.bf16.mxu0 0
      %5122 = vmatpush1.bf16.xpose.msra.mxu0 %v4166
      %5123 = vmatprep.subr.bf16.mxu0 0
      %5124 = vmatpush2.bf16.xpose.msra.mxu0 %v4162
      %5125 = vmatprep.subr.bf16.mxu0 0
      %5126 = vmatpush2.bf16.xpose.msra.mxu0 %v4828
      %5127 = vmatprep.subr.bf16.mxu0 0
      %5128 = vmatpush2.bf16.xpose.msra.mxu0 %v4192
      %5129 = vmatprep.subr.bf16.mxu0 0
      %5130 = vmatpush2.bf16.xpose.msra.mxu0 %v4190
      %5131 = vmatprep.subr.bf16.mxu0 0
      %5132 = vmatpush2.bf16.xpose.msra.mxu0 %v4188
      %5133 = vmatprep.subr.bf16.mxu0 0
      %5134 = vmatpush2.bf16.xpose.msra.mxu0 %v4186
      %5135 = vmatprep.subr.bf16.mxu0 0
      %5136 = vmatpush2.bf16.xpose.msra.mxu0 %v4184
      %5137 = vmatprep.subr.bf16.mxu0 0
      %5138 = vmatpush2.bf16.xpose.msra.mxu0 %v4182
      %5139 = vmatprep.mubr.bf16.mxu0 0
      %5140 = vmatmul.mubr.bf16.gmra.mxu0 %v5105
      %v5141 = vpop.f32.mrf.mxu0
      %v5142 = vadd.f32 0.0, %v5141
      %v5143 = vpop.f32.mrf.mxu0
      %v5144 = vadd.f32 0.0, %v5143
      %v5145 = vpop.f32.mrf.mxu0
      %v5146 = vpop.f32.mrf.mxu0
      %5147 = vdwg.mxu0
      %v5148 = vadd.f32 %v5100, %v5142
      %v5149 = vadd.f32 %v5101, %v5144
      %v5150 = vsel %vm4569, %v4331, 0
      %v5151 = vsel %vm4570, %v4334, 0
      %v5152 = vsel %vm4571, %v4337, 0
      %v5153 = vsel %vm4572, %v4340, 0
      %v5154 = vsel %vm4573, %v4343, 0
      %v5155 = vsel %vm4574, %v4346, 0
      %v5156 = vsel %vm4575, %v4349, 0
      %v5157 = vsel %vm4576, %v4352, 0
      %v5158 = vsel %vm4577, %v4355, 0
      %v5159 = vsel %vm4578, %v4358, 0
      %v5160 = vsel %vm4579, %v4361, 0
      %v5161 = vsel %vm4580, %v4364, 0
      %v5162 = vsel %vm4581, %v4367, 0
      %v5163 = vsel %vm4582, %v4373, 0
      %v5164 = vsel %vm4583, %v4875, 0
      %s5165 = scalar_lea.vmem %s19, 16
      %v5166 = vld [vmem:[%s5165] sm:$0x3]
      %v5168 = vsel %vm740, %v5166, 0
      %v5171 = vsel %vm740, %v5150, 0
      %v5174 = vsel %vm740, %v5151, 0
      %v5177 = vsel %vm740, %v5152, 0
      %v5180 = vsel %vm740, %v5153, 0
      %v5183 = vsel %vm740, %v5154, 0
      %v5186 = vsel %vm740, %v5155, 0
      %v5189 = vsel %vm740, %v5156, 0
      %v5192 = vsel %vm740, %v5157, 0
      %v5195 = vsel %vm740, %v5158, 0
      %v5198 = vsel %vm740, %v5159, 0
      %v5201 = vsel %vm740, %v5160, 0
      %v5204 = vsel %vm740, %v5161, 0
      %v5207 = vsel %vm740, %v5162, 0
      %v5210 = vsel %vm740, %v5163, 0
      %v5213 = vsel %vm740, %v5164, 0
      %5215 = vmatprep.subr.bf16.mxu0 0
      %5216 = vmatpush1.bf16.xpose.msra.mxu0 %v5192
      %5217 = vmatprep.subr.bf16.mxu0 0
      %5218 = vmatpush1.bf16.xpose.msra.mxu0 %v5189
      %5219 = vmatprep.subr.bf16.mxu0 0
      %5220 = vmatpush1.bf16.xpose.msra.mxu0 %v5186
      %5221 = vmatprep.subr.bf16.mxu0 0
      %5222 = vmatpush1.bf16.xpose.msra.mxu0 %v5183
      %5223 = vmatprep.subr.bf16.mxu0 0
      %5224 = vmatpush1.bf16.xpose.msra.mxu0 %v5180
      %5225 = vmatprep.subr.bf16.mxu0 0
      %5226 = vmatpush1.bf16.xpose.msra.mxu0 %v5177
      %5227 = vmatprep.subr.bf16.mxu0 0
      %5228 = vmatpush1.bf16.xpose.msra.mxu0 %v5174
      %5229 = vmatprep.subr.bf16.mxu0 0
      %5230 = vmatpush1.bf16.xpose.msra.mxu0 %v5171
      %5231 = vmatprep.subr.bf16.mxu0 0
      %5232 = vmatpush2.bf16.xpose.msra.mxu0 %v4162
      %5233 = vmatprep.subr.bf16.mxu0 0
      %5234 = vmatpush2.bf16.xpose.msra.mxu0 %v5213
      %5235 = vmatprep.subr.bf16.mxu0 0
      %5236 = vmatpush2.bf16.xpose.msra.mxu0 %v5210
      %5237 = vmatprep.subr.bf16.mxu0 0
      %5238 = vmatpush2.bf16.xpose.msra.mxu0 %v5207
      %5239 = vmatprep.subr.bf16.mxu0 0
      %5240 = vmatpush2.bf16.xpose.msra.mxu0 %v5204
      %5241 = vmatprep.subr.bf16.mxu0 0
      %5242 = vmatpush2.bf16.xpose.msra.mxu0 %v5201
      %5243 = vmatprep.subr.bf16.mxu0 0
      %5244 = vmatpush2.bf16.xpose.msra.mxu0 %v5198
      %5245 = vmatprep.subr.bf16.mxu0 0
      %5246 = vmatpush2.bf16.xpose.msra.mxu0 %v5195
      %5247 = vmatprep.mubr.bf16.mxu0 0
      %5248 = vmatmul.mubr.bf16.gmra.mxu0 %v5168
      %v5249 = vpop.f32.mrf.mxu0
      %v5250 = vadd.f32 0.0, %v5249
      %v5251 = vpop.f32.mrf.mxu0
      %v5252 = vadd.f32 0.0, %v5251
      %v5253 = vpop.f32.mrf.mxu0
      %v5254 = vpop.f32.mrf.mxu0
      %5255 = vdwg.mxu0
      %v5256 = vadd.f32 %v5148, %v5250
      %v5257 = vadd.f32 %v5149, %v5252
      %v5258 = vld [vmem:[%s20] sm:$0xf]
      %5260 = vset.pattern.permute.xlu0 0
      %5261 = vperm.xlu0 %5260, %v5258
      %v5262 = vpop.permute.xlu0 %5261
      %v5264 = vadd.f32 %v5256, %v5262
      %v5265 = vadd.f32 %v5257, %v5262
      %v5268 = vcombine.low %v5264, %v5265
      %5270 = vst [vmem:[%s717] sm:$0xff] %v5268
      %p5271 = scmp.lt.s32.totalorder %s32, 1
      %s5272 = scalar_select %p5271, %s32, 1
      %s5273 = smul.addr %s5272, 2
      %s5274 = smul.addr %s5273, 4
      %s5275 = scalar_lea.vmem %s21, %s5274
      // Predicated region
      $region105: #{iqa_adapter_forward.1} parent=103 // pred_check
        %p5276 = pneg %p516
      $region106: #{iqa_adapter_forward.1} parent=103 // pred_check_branch
        %5278 = sbr.rel (%p5276) target = $region108
      $region107: #{iqa_adapter_forward.1} parent=103 // pred_region
        _
      $region108: #{iqa_adapter_forward.1} parent=103 // pred_fallthru
        _
    $region104: #{iqa_adapter_forward.1} parent=5 // pred_fallthru
      _
    %p5279 = scmp.le.s32.totalorder 2, %s27
    // Predicated region
    $region109: #{iqa_adapter_forward.1} parent=5 // pred_check
      %p5280 = pneg %p5279
    $region110: #{iqa_adapter_forward.1} parent=5 // pred_check_branch
      %5282 = sbr.rel (%p5280) target = $region112
    $region111: #{iqa_adapter_forward.1} parent=5 // pred_region
      %s5283 = ssub.s32 %s27, 2
      // Predicated region
      $region113: #{iqa_adapter_forward.1} parent=111 // pred_check
        %p5284 = pneg %p522
      $region114: #{iqa_adapter_forward.1} parent=111 // pred_check_branch
        %5286 = sbr.rel (%p5284) target = $region116
      $region115: #{iqa_adapter_forward.1} parent=111 // pred_region
        %p5287 = scmp.lt.s32.totalorder %s33, 1
        %s5288 = scalar_select %p5287, %s33, 1
        %s5289 = smul.addr %s5288, 2
        %s5290 = smul.addr %s5289, 4
        %s5291 = scalar_lea.vmem %s21, %s5290
      $region116: #{iqa_adapter_forward.1} parent=111 // pred_fallthru
        _
    $region112: #{iqa_adapter_forward.1} parent=5 // pred_fallthru
      _
  $region6: #{iqa_adapter_forward.1} parent=0 // loop_footer
    %s31 = sadd.s32 1, %s27
  $region7: #{iqa_adapter_forward.1} parent=0 // loop_footer_branch
    %26 = sbr.rel target = $region3
  $region8: #{iqa_adapter_forward.1} parent=0 // loop_exit
    _

</llo_original>
